<compile_context>
chip_gen: v7x
topology: tpu7x:2x2x1
jax: 0.10.0
libtpu: 0.0.40
codegen_flags: <defaults>
</compile_context>

<pallas_src>
import functools

import jax
import jax.numpy as jnp
from jax.experimental import pallas as pl
from jax.experimental.pallas import tpu as pltpu

_VMEM_LIMIT = 48 * 1024 * 1024  # > default scoped limits, < v7x 64 MiB physical


def _sigmoid(v):
    # tanh-form sigmoid: one EUP transcendental, no divide, numerically stable.
    return 0.5 * jnp.tanh(0.5 * v) + 0.5


# ---------------------------------------------------------------------------
# Kernel 1: ConvTranspose2d(inc, inc//2, k=2, s=2) channel-mixing matmul.
# With kernel == stride == 2 it is a pointwise matmul into 4*Cout sub-pixel
# channels; depth-to-space is a wrapper reshape/transpose on the bf16 result.
# Several frames are processed per grid step to amortize per-step overhead.
# ---------------------------------------------------------------------------
def _upconv_kernel(x_ref, w_ref, b_ref, o_ref):
    # x_ref: (F, Cin, S1) f32, w_ref: (4*Cout, Cin) f32, b_ref: (4*Cout, 1) f32
    # o_ref: (F, 4*Cout, S1) bf16
    nf = x_ref.shape[0]
    for f in range(nf):  # small static unroll; one MXU matmul per frame
        y = jnp.dot(w_ref[...], x_ref[f], preferred_element_type=jnp.float32)
        o_ref[f] = (y + b_ref[...]).astype(o_ref.dtype)


# ---------------------------------------------------------------------------
# Kernel 2: gx = conv3x3([x2 | x1_up], W_x) for one frame (fully parallel over
# B*T).  Per-tap accumulating bf16 matmuls over static halo-window slices.
# ---------------------------------------------------------------------------
def _gx_kernel(x2_ref, x1_ref, w_ref, m_ref, gx_ref, comb_scr,
               *, c2, c1, width, margin):
    S = x2_ref.shape[-1]
    cx = c2 + c1
    cdt = comb_scr.dtype

    # Zero the halo margins every program: under megacore "parallel" sharding
    # program_id==0 only runs on one core, so a one-time init is NOT safe.
    comb_scr[:, 0:margin] = jnp.zeros((cx, margin), cdt)
    comb_scr[:, margin + S:] = jnp.zeros((cx, margin), cdt)

    # In-VMEM channel concat [x2 | x1_up] (no HBM round-trip for the concat).
    comb_scr[0:c2, margin:margin + S] = x2_ref[...].astype(cdt)
    comb_scr[c2:cx, margin:margin + S] = x1_ref[...].astype(cdt)

    acc = jnp.zeros(gx_ref.shape, jnp.float32)
    k = 0
    for dy in (-1, 0, 1):
        for dx in (-1, 0, 1):
            off = margin + dy * width + dx            # static, >= 0
            win = comb_scr[:, off:off + S]            # (cx, S); halo reads = 0
            if dx == -1:
                win = win * m_ref[0:1, :]             # kill w==0 row-wrap col
            elif dx == 1:
                win = win * m_ref[1:2, :]             # kill w==W-1 row-wrap col
            acc = acc + jnp.dot(w_ref[k], win,
                                preferred_element_type=jnp.float32)
            k += 1
    gx_ref[...] = acc.astype(gx_ref.dtype)


# ---------------------------------------------------------------------------
# Kernel 3: sequential ConvLSTM recurrence.  grid = (B, T): B is the OUTER
# "parallel" axis (megacore-sharded), T the INNER "arbitrary" (sequential)
# axis.  h/c live in per-core VMEM scratch and are reset at t==0 of each batch
# element; this carry is only correct for this (B outer / T inner) ordering.
# ---------------------------------------------------------------------------
def _convlstm_step_kernel(gx_ref, w_ref, m_ref, o_ref, h_scr, c_scr,
                          *, chid, width, margin):
    S = gx_ref.shape[-1]
    t = pl.program_id(1)

    @pl.when(t == 0)
    def _():
        h_scr[...] = jnp.zeros_like(h_scr)
        c_scr[...] = jnp.zeros_like(c_scr)

    # gates = hoisted input contribution + recurrent conv3x3(h_prev, W_h)
    gates = gx_ref[...].astype(jnp.float32)            # (4*chid, S)
    k = 0
    for dy in (-1, 0, 1):
        for dx in (-1, 0, 1):
            off = margin + dy * width + dx
            win = h_scr[:, off:off + S]
            if dx == -1:
                win = win * m_ref[0:1, :]
            elif dx == 1:
                win = win * m_ref[1:2, :]
            gates = gates + jnp.dot(w_ref[k], win,
                                    preferred_element_type=jnp.float32)
            k += 1

    i_g = _sigmoid(gates[0 * chid:1 * chid])
    f_g = _sigmoid(gates[1 * chid:2 * chid])
    o_g = _sigmoid(gates[2 * chid:3 * chid])
    g_g = _sigmoid(gates[3 * chid:4 * chid])  # sigmoid (not tanh): matches ref ConvLSTMCell

    c_new = f_g * c_scr[...] + i_g * g_g
    h_new = o_g * jnp.tanh(c_new)
    c_scr[...] = c_new
    h_scr[:, margin:margin + S] = h_new.astype(h_scr.dtype)
    o_ref[...] = h_new.astype(o_ref.dtype)


# ---------------------------------------------------------------------------
# Wrapper: full `Up.forward`.
# ---------------------------------------------------------------------------
def up_forward(x1, x2, w_up, b_up, w_lstm, *, compute_dtype=jnp.bfloat16):
    B, T, Cin1, H1, W1 = x1.shape
    _, _, C2, H2, W2 = x2.shape
    C1u = w_up.shape[1]                      # inc // 2
    Chid4, Ctot, KH, KW = w_lstm.shape
    Chid = Chid4 // 4
    Cx = C2 + C1u
    assert Ctot == Cx + Chid and KH == 3 and KW == 3

    BT = B * T
    S1 = H1 * W1
    S = H2 * W2
    MARGIN = W2 + 1   # zero halo so every 3x3 tap is a plain static window

    # ---- ConvTranspose2d(inc, inc//2, 2, 2): MXU channel matmul -------------
    x1_flat = x1.reshape(BT, Cin1, S1)                          # free reshape
    w_up_flat = jnp.transpose(w_up, (1, 2, 3, 0)).reshape(4 * C1u, Cin1)
    b_up_flat = jnp.repeat(b_up, 4).reshape(4 * C1u, 1)
    F = next(f for f in (8, 4, 2, 1) if BT % f == 0)            # frames / step

    y = pl.pallas_call(
        _upconv_kernel,
        out_shape=jax.ShapeDtypeStruct((BT, 4 * C1u, S1), compute_dtype),
        grid=(BT // F,),
        in_specs=[
            pl.BlockSpec((F, Cin1, S1), lambda n: (n, 0, 0)),
            pl.BlockSpec((4 * C1u, Cin1), lambda n: (0, 0)),
            pl.BlockSpec((4 * C1u, 1), lambda n: (0, 0)),
        ],
        out_specs=pl.BlockSpec((F, 4 * C1u, S1), lambda n: (n, 0, 0)),
        compiler_params=pltpu.CompilerParams(
            dimension_semantics=("parallel",),
            vmem_limit_bytes=_VMEM_LIMIT),
    )(x1_flat, w_up_flat, b_up_flat)

    # depth-to-space + center pad (cheap XLA ops on a bf16 tensor that is read
    # exactly once by the gx kernel below).
    # TODO(synk): fuse the pixel shuffle / pad into the gx kernel to remove
    # this remaining HBM round-trip.
    y = y.reshape(BT, C1u, 2, 2, H1, W1)
    y = jnp.transpose(y, (0, 1, 4, 2, 5, 3)).reshape(BT, C1u, 2 * H1, 2 * W1)
    dY = H2 - 2 * H1
    dX = W2 - 2 * W1
    y = jnp.pad(y, ((0, 0), (0, 0),
                    (dY // 2, dY - dY // 2), (dX // 2, dX - dX // 2)))
    x1b = y.reshape(BT, C1u, S)        # free reshape (bf16)
    x2f = x2.reshape(BT, C2, S)        # free reshape (f32, cast in-kernel)

    # Column masks for the dx=+-1 taps only (vertical out-of-range taps read
    # the zero halo); exact 0/1 values so bf16 is lossless.
    ww = jnp.arange(S) % W2
    masks = jnp.stack([ww > 0, ww < W2 - 1]).astype(compute_dtype)   # (2, S)

    # Gate-conv weights split into input part (hoisted) and recurrent part,
    # one (4*Chid, C) matrix per 3x3 tap, bf16 for the MXU.
    wx_taps = jnp.transpose(w_lstm[:, :Cx], (2, 3, 0, 1)) \
        .reshape(9, Chid4, Cx).astype(compute_dtype)
    wh_taps = jnp.transpose(w_lstm[:, Cx:], (2, 3, 0, 1)) \
        .reshape(9, Chid4, Chid).astype(compute_dtype)

    # ---- gx = conv3x3([x2 | x1_up], W_x) for ALL frames (fully parallel) ----
    gx = pl.pallas_call(
        functools.partial(_gx_kernel, c2=C2, c1=C1u, width=W2, margin=MARGIN),
        out_shape=jax.ShapeDtypeStruct((BT, Chid4, S), compute_dtype),
        grid=(BT,),
        in_specs=[
            pl.BlockSpec((None, C2, S), lambda n: (n, 0, 0)),
            pl.BlockSpec((None, C1u, S), lambda n: (n, 0, 0)),
            pl.BlockSpec((9, Chid4, Cx), lambda n: (0, 0, 0)),
            pl.BlockSpec((2, S), lambda n: (0, 0)),
        ],
        out_specs=pl.BlockSpec((None, Chid4, S), lambda n: (n, 0, 0)),
        scratch_shapes=[pltpu.VMEM((Cx, S + 2 * MARGIN), compute_dtype)],
        compiler_params=pltpu.CompilerParams(
            dimension_semantics=("parallel",),
            vmem_limit_bytes=_VMEM_LIMIT),
    )(x2f, x1b, wx_taps, masks)

    gxr = gx.reshape(B, T, Chid4, S)   # free reshape

    # ---- serial ConvLSTM recurrence: only the W_h conv + gate math ----------
    hseq = pl.pallas_call(
        functools.partial(_convlstm_step_kernel,
                          chid=Chid, width=W2, margin=MARGIN),
        out_shape=jax.ShapeDtypeStruct((B, T, Chid, S), jnp.float32),
        grid=(B, T),
        in_specs=[
            pl.BlockSpec((None, None, Chid4, S), lambda b, t: (b, t, 0, 0)),
            pl.BlockSpec((9, Chid4, Chid), lambda b, t: (0, 0, 0)),
            pl.BlockSpec((2, S), lambda b, t: (0, 0)),
        ],
        out_specs=pl.BlockSpec((None, None, Chid, S), lambda b, t: (b, t, 0, 0)),
        scratch_shapes=[
            pltpu.VMEM((Chid, S + 2 * MARGIN), compute_dtype),   # h (halo layout)
            pltpu.VMEM((Chid, S), jnp.float32),                  # c (f32 state)
        ],
        compiler_params=pltpu.CompilerParams(
            dimension_semantics=("parallel", "arbitrary"),
            vmem_limit_bytes=_VMEM_LIMIT),
    )(gxr, wh_taps, masks)

    return hseq.reshape(B, T, Chid, H2, W2)


# ---------------------------------------------------------------------------
# Pure-JAX reference (mirrors the PyTorch module).
# ---------------------------------------------------------------------------
def up_reference(x1, x2, w_up, b_up, w_lstm):
    B, T, Cin1, H1, W1 = x1.shape
    _, _, C2, H2, W2 = x2.shape
    C1u = w_up.shape[1]
    Chid = w_lstm.shape[0] // 4
    x1a = x1.reshape(B * T, Cin1, H1, W1)
    x2a = x2.reshape(B * T, C2, H2, W2)

    # ConvTranspose2d(k=2, s=2, p=0)
    y = jnp.einsum('nchw,cokl->noklhw', x1a, w_up,
                   precision=jax.lax.Precision.HIGHEST)
    y = jnp.transpose(y, (0, 1, 4, 2, 5, 3)).reshape(B * T, C1u, 2 * H1, 2 * W1)
    y = y + b_up[None, :, None, None]
    dY = H2 - 2 * H1
    dX = W2 - 2 * W1
    y = jnp.pad(y, ((0, 0), (0, 0),
                    (dY // 2, dY - dY // 2), (dX // 2, dX - dX // 2)))
    x = jnp.concatenate([x2a, y], axis=1).reshape(B, T, C2 + C1u, H2, W2)

    h = jnp.zeros((B, Chid, H2, W2), jnp.float32)
    c = jnp.zeros((B, Chid, H2, W2), jnp.float32)
    outs = []
    for t in range(T):
        comb = jnp.concatenate([x[:, t], h], axis=1)
        gates = jax.lax.conv_general_dilated(
            comb, w_lstm, window_strides=(1, 1), padding=((1, 1), (1, 1)),
            dimension_numbers=('NCHW', 'OIHW', 'NCHW'),
            precision=jax.lax.Precision.HIGHEST)
        cc_i, cc_f, cc_o, cc_g = jnp.split(gates, 4, axis=1)
        i_g = jax.nn.sigmoid(cc_i)
        f_g = jax.nn.sigmoid(cc_f)
        o_g = jax.nn.sigmoid(cc_o)
        g_g = jax.nn.sigmoid(cc_g)   # sigmoid (as in the reference code)
        c = f_g * c + i_g * g_g
        h = o_g * jnp.tanh(c)
        outs.append(h)
    return jnp.stack(outs, axis=1)


if __name__ == "__main__":
    # Up(inc=4, outc=4): x1 low-res branch, x2 skip connection.
    B, T = 2, 4
    inc, outc = 4, 4
    H1 = W1 = 8
    H2 = W2 = 16
    C1u = inc // 2
    C2 = inc // 2

    key = jax.random.PRNGKey(0)
    k1, k2, k3, k4, k5 = jax.random.split(key, 5)
    x1 = jax.random.normal(k1, (B, T, inc, H1, W1), dtype=jnp.float32)
    x2 = jax.random.normal(k2, (B, T, C2, H2, W2), dtype=jnp.float32)
    # ConvTranspose2d(inc, inc//2, 2, 2): weight (inc, inc//2, 2, 2), bias (inc//2,)
    w_up = jax.random.normal(k3, (inc, C1u, 2, 2), dtype=jnp.float32) * 0.3
    b_up = jax.random.normal(k4, (C1u,), dtype=jnp.float32) * 0.1
    # ConvLSTM cell conv: (4*hidden, inc + hidden, 3, 3), bias=False
    w_lstm = jax.random.normal(k5, (4 * outc, inc + outc, 3, 3),
                               dtype=jnp.float32) * 0.15

    out = jax.jit(up_forward)(x1, x2, w_up, b_up, w_lstm)
    out = jax.block_until_ready(out)
    assert out.shape == (B, T, outc, H2, W2)

    ref = up_reference(x1, x2, w_up, b_up, w_lstm)
    ref = jax.block_until_ready(ref)
    max_err = float(jnp.max(jnp.abs(out - ref)))
    # bf16 MXU operands and bf16 gx/h intermediates -> relaxed tolerance.
    assert max_err < 5e-2, max_err

    print("KERNEL_OK")
</pallas_src>

<mosaic_0001>
module attributes {stable_mosaic.version = 11 : i64} {
  func.func @_upconv_kernel(%arg0: i32, %arg1: memref<8x4x64xf32, #tpu.memory_space<vmem>>, %arg2: memref<8x4xf32, #tpu.memory_space<vmem>>, %arg3: memref<8x1xf32, #tpu.memory_space<vmem>>, %arg4: memref<8x8x64xbf16, #tpu.memory_space<vmem>>) attributes {dimension_semantics = [#tpu.dimension_semantics<parallel>], iteration_bounds = array<i64: 1>, scalar_prefetch = 0 : i64, scratch_operands = 0 : i64, tpu.core_type = #tpu.core_type<tc>, window_params = [{transform_indices = @transform_0, window_bounds = array<i64: 8, 4, 64>}, {pipeline_mode = #tpu.pipeline_mode<synchronous>, transform_indices = @transform_1, window_bounds = array<i64: 8, 4>}, {pipeline_mode = #tpu.pipeline_mode<synchronous>, transform_indices = @transform_2, window_bounds = array<i64: 8, 1>}, {transform_indices = @transform_3, window_bounds = array<i64: 8, 8, 64>}]} {
    %c0 = arith.constant 0 : index
    %c0_0 = arith.constant 0 : index
    %0 = vector.load %arg2[%c0, %c0_0] : memref<8x4xf32, #tpu.memory_space<vmem>>, vector<8x4xf32>
    %c0_1 = arith.constant 0 : index
    %c0_2 = arith.constant 0 : index
    %c0_3 = arith.constant 0 : index
    %1 = vector.load %arg1[%c0_1, %c0_2, %c0_3] : memref<8x4x64xf32, #tpu.memory_space<vmem>>, vector<1x4x64xf32>
    %2 = vector.shape_cast %1 : vector<1x4x64xf32> to vector<4x64xf32>
    %cst = arith.constant dense<0.000000e+00> : vector<8x64xf32>
    %3 = tpu.matmul %0, %2, %cst {dimension_numbers = #tpu.dot_dimension_numbers<[1], [0], [0], [1], [0, 0, 1, 1], [], []>} : vector<8x4xf32>, vector<4x64xf32>, vector<8x64xf32> -> vector<8x64xf32>
    %c0_4 = arith.constant 0 : index
    %c0_5 = arith.constant 0 : index
    %4 = vector.load %arg3[%c0_4, %c0_5] : memref<8x1xf32, #tpu.memory_space<vmem>>, vector<8x1xf32>
    %5 = vector.broadcast %4 : vector<8x1xf32> to vector<8x64xf32>
    %6 = arith.addf %3, %5 : vector<8x64xf32>
    %7 = arith.truncf %6 : vector<8x64xf32> to vector<8x64xbf16>
    %c0_6 = arith.constant 0 : index
    %c0_7 = arith.constant 0 : index
    %c0_8 = arith.constant 0 : index
    %8 = vector.load %arg4[%c0_6, %c0_7, %c0_8] : memref<8x8x64xbf16, #tpu.memory_space<vmem>>, vector<1x8x64xbf16>
    %9 = vector.shape_cast %8 : vector<1x8x64xbf16> to vector<8x64xbf16>
    %10 = vector.shape_cast %7 : vector<8x64xbf16> to vector<1x8x64xbf16>
    tpu.vector_store %arg4[%c0_6, %c0_7, %c0_8], %10 {strides = array<i32>} : memref<8x8x64xbf16, #tpu.memory_space<vmem>>, vector<1x8x64xbf16>,
    %c0_9 = arith.constant 0 : index
    %c0_10 = arith.constant 0 : index
    %11 = vector.load %arg2[%c0_9, %c0_10] : memref<8x4xf32, #tpu.memory_space<vmem>>, vector<8x4xf32>
    %c1 = arith.constant 1 : index
    %c0_11 = arith.constant 0 : index
    %c0_12 = arith.constant 0 : index
    %12 = vector.load %arg1[%c1, %c0_11, %c0_12] : memref<8x4x64xf32, #tpu.memory_space<vmem>>, vector<1x4x64xf32>
    %13 = vector.shape_cast %12 : vector<1x4x64xf32> to vector<4x64xf32>
    %cst_13 = arith.constant dense<0.000000e+00> : vector<8x64xf32>
    %14 = tpu.matmul %11, %13, %cst_13 {dimension_numbers = #tpu.dot_dimension_numbers<[1], [0], [0], [1], [0, 0, 1, 1], [], []>} : vector<8x4xf32>, vector<4x64xf32>, vector<8x64xf32> -> vector<8x64xf32>
    %c0_14 = arith.constant 0 : index
    %c0_15 = arith.constant 0 : index
    %15 = vector.load %arg3[%c0_14, %c0_15] : memref<8x1xf32, #tpu.memory_space<vmem>>, vector<8x1xf32>
    %16 = vector.broadcast %15 : vector<8x1xf32> to vector<8x64xf32>
    %17 = arith.addf %14, %16 : vector<8x64xf32>
    %18 = arith.truncf %17 : vector<8x64xf32> to vector<8x64xbf16>
    %c1_16 = arith.constant 1 : index
    %c0_17 = arith.constant 0 : index
    %c0_18 = arith.constant 0 : index
    %19 = vector.load %arg4[%c1_16, %c0_17, %c0_18] : memref<8x8x64xbf16, #tpu.memory_space<vmem>>, vector<1x8x64xbf16>
    %20 = vector.shape_cast %19 : vector<1x8x64xbf16> to vector<8x64xbf16>
    %21 = vector.shape_cast %18 : vector<8x64xbf16> to vector<1x8x64xbf16>
    tpu.vector_store %arg4[%c1_16, %c0_17, %c0_18], %21 {strides = array<i32>} : memref<8x8x64xbf16, #tpu.memory_space<vmem>>, vector<1x8x64xbf16>,
    %c0_19 = arith.constant 0 : index
    %c0_20 = arith.constant 0 : index
    %22 = vector.load %arg2[%c0_19, %c0_20] : memref<8x4xf32, #tpu.memory_space<vmem>>, vector<8x4xf32>
    %c2 = arith.constant 2 : index
    %c0_21 = arith.constant 0 : index
    %c0_22 = arith.constant 0 : index
    %23 = vector.load %arg1[%c2, %c0_21, %c0_22] : memref<8x4x64xf32, #tpu.memory_space<vmem>>, vector<1x4x64xf32>
    %24 = vector.shape_cast %23 : vector<1x4x64xf32> to vector<4x64xf32>
    %cst_23 = arith.constant dense<0.000000e+00> : vector<8x64xf32>
    %25 = tpu.matmul %22, %24, %cst_23 {dimension_numbers = #tpu.dot_dimension_numbers<[1], [0], [0], [1], [0, 0, 1, 1], [], []>} : vector<8x4xf32>, vector<4x64xf32>, vector<8x64xf32> -> vector<8x64xf32>
    %c0_24 = arith.constant 0 : index
    %c0_25 = arith.constant 0 : index
    %26 = vector.load %arg3[%c0_24, %c0_25] : memref<8x1xf32, #tpu.memory_space<vmem>>, vector<8x1xf32>
    %27 = vector.broadcast %26 : vector<8x1xf32> to vector<8x64xf32>
    %28 = arith.addf %25, %27 : vector<8x64xf32>
    %29 = arith.truncf %28 : vector<8x64xf32> to vector<8x64xbf16>
    %c2_26 = arith.constant 2 : index
    %c0_27 = arith.constant 0 : index
    %c0_28 = arith.constant 0 : index
    %30 = vector.load %arg4[%c2_26, %c0_27, %c0_28] : memref<8x8x64xbf16, #tpu.memory_space<vmem>>, vector<1x8x64xbf16>
    %31 = vector.shape_cast %30 : vector<1x8x64xbf16> to vector<8x64xbf16>
    %32 = vector.shape_cast %29 : vector<8x64xbf16> to vector<1x8x64xbf16>
    tpu.vector_store %arg4[%c2_26, %c0_27, %c0_28], %32 {strides = array<i32>} : memref<8x8x64xbf16, #tpu.memory_space<vmem>>, vector<1x8x64xbf16>,
    %c0_29 = arith.constant 0 : index
    %c0_30 = arith.constant 0 : index
    %33 = vector.load %arg2[%c0_29, %c0_30] : memref<8x4xf32, #tpu.memory_space<vmem>>, vector<8x4xf32>
    %c3 = arith.constant 3 : index
    %c0_31 = arith.constant 0 : index
    %c0_32 = arith.constant 0 : index
    %34 = vector.load %arg1[%c3, %c0_31, %c0_32] : memref<8x4x64xf32, #tpu.memory_space<vmem>>, vector<1x4x64xf32>
    %35 = vector.shape_cast %34 : vector<1x4x64xf32> to vector<4x64xf32>
    %cst_33 = arith.constant dense<0.000000e+00> : vector<8x64xf32>
    %36 = tpu.matmul %33, %35, %cst_33 {dimension_numbers = #tpu.dot_dimension_numbers<[1], [0], [0], [1], [0, 0, 1, 1], [], []>} : vector<8x4xf32>, vector<4x64xf32>, vector<8x64xf32> -> vector<8x64xf32>
    %c0_34 = arith.constant 0 : index
    %c0_35 = arith.constant 0 : index
    %37 = vector.load %arg3[%c0_34, %c0_35] : memref<8x1xf32, #tpu.memory_space<vmem>>, vector<8x1xf32>
    %38 = vector.broadcast %37 : vector<8x1xf32> to vector<8x64xf32>
    %39 = arith.addf %36, %38 : vector<8x64xf32>
    %40 = arith.truncf %39 : vector<8x64xf32> to vector<8x64xbf16>
    %c3_36 = arith.constant 3 : index
    %c0_37 = arith.constant 0 : index
    %c0_38 = arith.constant 0 : index
    %41 = vector.load %arg4[%c3_36, %c0_37, %c0_38] : memref<8x8x64xbf16, #tpu.memory_space<vmem>>, vector<1x8x64xbf16>
    %42 = vector.shape_cast %41 : vector<1x8x64xbf16> to vector<8x64xbf16>
    %43 = vector.shape_cast %40 : vector<8x64xbf16> to vector<1x8x64xbf16>
    tpu.vector_store %arg4[%c3_36, %c0_37, %c0_38], %43 {strides = array<i32>} : memref<8x8x64xbf16, #tpu.memory_space<vmem>>, vector<1x8x64xbf16>,
    %c0_39 = arith.constant 0 : index
    %c0_40 = arith.constant 0 : index
    %44 = vector.load %arg2[%c0_39, %c0_40] : memref<8x4xf32, #tpu.memory_space<vmem>>, vector<8x4xf32>
    %c4 = arith.constant 4 : index
    %c0_41 = arith.constant 0 : index
    %c0_42 = arith.constant 0 : index
    %45 = vector.load %arg1[%c4, %c0_41, %c0_42] : memref<8x4x64xf32, #tpu.memory_space<vmem>>, vector<1x4x64xf32>
    %46 = vector.shape_cast %45 : vector<1x4x64xf32> to vector<4x64xf32>
    %cst_43 = arith.constant dense<0.000000e+00> : vector<8x64xf32>
    %47 = tpu.matmul %44, %46, %cst_43 {dimension_numbers = #tpu.dot_dimension_numbers<[1], [0], [0], [1], [0, 0, 1, 1], [], []>} : vector<8x4xf32>, vector<4x64xf32>, vector<8x64xf32> -> vector<8x64xf32>
    %c0_44 = arith.constant 0 : index
    %c0_45 = arith.constant 0 : index
    %48 = vector.load %arg3[%c0_44, %c0_45] : memref<8x1xf32, #tpu.memory_space<vmem>>, vector<8x1xf32>
    %49 = vector.broadcast %48 : vector<8x1xf32> to vector<8x64xf32>
    %50 = arith.addf %47, %49 : vector<8x64xf32>
    %51 = arith.truncf %50 : vector<8x64xf32> to vector<8x64xbf16>
    %c4_46 = arith.constant 4 : index
    %c0_47 = arith.constant 0 : index
    %c0_48 = arith.constant 0 : index
    %52 = vector.load %arg4[%c4_46, %c0_47, %c0_48] : memref<8x8x64xbf16, #tpu.memory_space<vmem>>, vector<1x8x64xbf16>
    %53 = vector.shape_cast %52 : vector<1x8x64xbf16> to vector<8x64xbf16>
    %54 = vector.shape_cast %51 : vector<8x64xbf16> to vector<1x8x64xbf16>
    tpu.vector_store %arg4[%c4_46, %c0_47, %c0_48], %54 {strides = array<i32>} : memref<8x8x64xbf16, #tpu.memory_space<vmem>>, vector<1x8x64xbf16>,
    %c0_49 = arith.constant 0 : index
    %c0_50 = arith.constant 0 : index
    %55 = vector.load %arg2[%c0_49, %c0_50] : memref<8x4xf32, #tpu.memory_space<vmem>>, vector<8x4xf32>
    %c5 = arith.constant 5 : index
    %c0_51 = arith.constant 0 : index
    %c0_52 = arith.constant 0 : index
    %56 = vector.load %arg1[%c5, %c0_51, %c0_52] : memref<8x4x64xf32, #tpu.memory_space<vmem>>, vector<1x4x64xf32>
    %57 = vector.shape_cast %56 : vector<1x4x64xf32> to vector<4x64xf32>
    %cst_53 = arith.constant dense<0.000000e+00> : vector<8x64xf32>
    %58 = tpu.matmul %55, %57, %cst_53 {dimension_numbers = #tpu.dot_dimension_numbers<[1], [0], [0], [1], [0, 0, 1, 1], [], []>} : vector<8x4xf32>, vector<4x64xf32>, vector<8x64xf32> -> vector<8x64xf32>
    %c0_54 = arith.constant 0 : index
    %c0_55 = arith.constant 0 : index
    %59 = vector.load %arg3[%c0_54, %c0_55] : memref<8x1xf32, #tpu.memory_space<vmem>>, vector<8x1xf32>
    %60 = vector.broadcast %59 : vector<8x1xf32> to vector<8x64xf32>
    %61 = arith.addf %58, %60 : vector<8x64xf32>
    %62 = arith.truncf %61 : vector<8x64xf32> to vector<8x64xbf16>
    %c5_56 = arith.constant 5 : index
    %c0_57 = arith.constant 0 : index
    %c0_58 = arith.constant 0 : index
    %63 = vector.load %arg4[%c5_56, %c0_57, %c0_58] : memref<8x8x64xbf16, #tpu.memory_space<vmem>>, vector<1x8x64xbf16>
    %64 = vector.shape_cast %63 : vector<1x8x64xbf16> to vector<8x64xbf16>
    %65 = vector.shape_cast %62 : vector<8x64xbf16> to vector<1x8x64xbf16>
    tpu.vector_store %arg4[%c5_56, %c0_57, %c0_58], %65 {strides = array<i32>} : memref<8x8x64xbf16, #tpu.memory_space<vmem>>, vector<1x8x64xbf16>,
    %c0_59 = arith.constant 0 : index
    %c0_60 = arith.constant 0 : index
    %66 = vector.load %arg2[%c0_59, %c0_60] : memref<8x4xf32, #tpu.memory_space<vmem>>, vector<8x4xf32>
    %c6 = arith.constant 6 : index
    %c0_61 = arith.constant 0 : index
    %c0_62 = arith.constant 0 : index
    %67 = vector.load %arg1[%c6, %c0_61, %c0_62] : memref<8x4x64xf32, #tpu.memory_space<vmem>>, vector<1x4x64xf32>
    %68 = vector.shape_cast %67 : vector<1x4x64xf32> to vector<4x64xf32>
    %cst_63 = arith.constant dense<0.000000e+00> : vector<8x64xf32>
    %69 = tpu.matmul %66, %68, %cst_63 {dimension_numbers = #tpu.dot_dimension_numbers<[1], [0], [0], [1], [0, 0, 1, 1], [], []>} : vector<8x4xf32>, vector<4x64xf32>, vector<8x64xf32> -> vector<8x64xf32>
    %c0_64 = arith.constant 0 : index
    %c0_65 = arith.constant 0 : index
    %70 = vector.load %arg3[%c0_64, %c0_65] : memref<8x1xf32, #tpu.memory_space<vmem>>, vector<8x1xf32>
    %71 = vector.broadcast %70 : vector<8x1xf32> to vector<8x64xf32>
    %72 = arith.addf %69, %71 : vector<8x64xf32>
    %73 = arith.truncf %72 : vector<8x64xf32> to vector<8x64xbf16>
    %c6_66 = arith.constant 6 : index
    %c0_67 = arith.constant 0 : index
    %c0_68 = arith.constant 0 : index
    %74 = vector.load %arg4[%c6_66, %c0_67, %c0_68] : memref<8x8x64xbf16, #tpu.memory_space<vmem>>, vector<1x8x64xbf16>
    %75 = vector.shape_cast %74 : vector<1x8x64xbf16> to vector<8x64xbf16>
    %76 = vector.shape_cast %73 : vector<8x64xbf16> to vector<1x8x64xbf16>
    tpu.vector_store %arg4[%c6_66, %c0_67, %c0_68], %76 {strides = array<i32>} : memref<8x8x64xbf16, #tpu.memory_space<vmem>>, vector<1x8x64xbf16>,
    %c0_69 = arith.constant 0 : index
    %c0_70 = arith.constant 0 : index
    %77 = vector.load %arg2[%c0_69, %c0_70] : memref<8x4xf32, #tpu.memory_space<vmem>>, vector<8x4xf32>
    %c7 = arith.constant 7 : index
    %c0_71 = arith.constant 0 : index
    %c0_72 = arith.constant 0 : index
    %78 = vector.load %arg1[%c7, %c0_71, %c0_72] : memref<8x4x64xf32, #tpu.memory_space<vmem>>, vector<1x4x64xf32>
    %79 = vector.shape_cast %78 : vector<1x4x64xf32> to vector<4x64xf32>
    %cst_73 = arith.constant dense<0.000000e+00> : vector<8x64xf32>
    %80 = tpu.matmul %77, %79, %cst_73 {dimension_numbers = #tpu.dot_dimension_numbers<[1], [0], [0], [1], [0, 0, 1, 1], [], []>} : vector<8x4xf32>, vector<4x64xf32>, vector<8x64xf32> -> vector<8x64xf32>
    %c0_74 = arith.constant 0 : index
    %c0_75 = arith.constant 0 : index
    %81 = vector.load %arg3[%c0_74, %c0_75] : memref<8x1xf32, #tpu.memory_space<vmem>>, vector<8x1xf32>
    %82 = vector.broadcast %81 : vector<8x1xf32> to vector<8x64xf32>
    %83 = arith.addf %80, %82 : vector<8x64xf32>
    %84 = arith.truncf %83 : vector<8x64xf32> to vector<8x64xbf16>
    %c7_76 = arith.constant 7 : index
    %c0_77 = arith.constant 0 : index
    %c0_78 = arith.constant 0 : index
    %85 = vector.load %arg4[%c7_76, %c0_77, %c0_78] : memref<8x8x64xbf16, #tpu.memory_space<vmem>>, vector<1x8x64xbf16>
    %86 = vector.shape_cast %85 : vector<1x8x64xbf16> to vector<8x64xbf16>
    %87 = vector.shape_cast %84 : vector<8x64xbf16> to vector<1x8x64xbf16>
    tpu.vector_store %arg4[%c7_76, %c0_77, %c0_78], %87 {strides = array<i32>} : memref<8x8x64xbf16, #tpu.memory_space<vmem>>, vector<1x8x64xbf16>,
    return
  }
  func.func @transform_0(%arg0: i32) -> (i32, i32, i32) {
    %c0_i32 = arith.constant 0 : i32
    %c0_i32_0 = arith.constant 0 : i32
    %c0_i32_1 = arith.constant 0 : i32
    return %arg0, %c0_i32, %c0_i32_0 : i32, i32, i32
  }
  func.func @transform_1(%arg0: i32) -> (i32, i32) {
    %c0_i32 = arith.constant 0 : i32
    %c0_i32_0 = arith.constant 0 : i32
    %c0_i32_1 = arith.constant 0 : i32
    return %c0_i32, %c0_i32_0 : i32, i32
  }
  func.func @transform_2(%arg0: i32) -> (i32, i32) {
    %c0_i32 = arith.constant 0 : i32
    %c0_i32_0 = arith.constant 0 : i32
    %c0_i32_1 = arith.constant 0 : i32
    return %c0_i32, %c0_i32_0 : i32, i32
  }
  func.func @transform_3(%arg0: i32) -> (i32, i32, i32) {
    %c0_i32 = arith.constant 0 : i32
    %c0_i32_0 = arith.constant 0 : i32
    %c0_i32_1 = arith.constant 0 : i32
    return %arg0, %c0_i32, %c0_i32_0 : i32, i32, i32
  }
}

module attributes {stable_mosaic.version = 11 : i64} {
  func.func @_gx_kernel(%arg0: i32, %arg1: memref<1x2x256xf32, #tpu.memory_space<vmem>>, %arg2: memref<1x2x256xbf16, #tpu.memory_space<vmem>>, %arg3: memref<9x16x4xbf16, #tpu.memory_space<vmem>>, %arg4: memref<2x256xbf16, #tpu.memory_space<vmem>>, %arg5: memref<1x16x256xbf16, #tpu.memory_space<vmem>>, %arg6: memref<4x290xbf16, #tpu.memory_space<vmem>>) attributes {dimension_semantics = [#tpu.dimension_semantics<parallel>], iteration_bounds = array<i64: 8>, scalar_prefetch = 0 : i64, scratch_operands = 1 : i64, tpu.core_type = #tpu.core_type<tc>, window_params = [{transform_indices = @transform_0, window_bounds = array<i64: 1, 2, 256>}, {transform_indices = @transform_1, window_bounds = array<i64: 1, 2, 256>}, {pipeline_mode = #tpu.pipeline_mode<synchronous>, transform_indices = @transform_2, window_bounds = array<i64: 9, 16, 4>}, {pipeline_mode = #tpu.pipeline_mode<synchronous>, transform_indices = @transform_3, window_bounds = array<i64: 2, 256>}, {transform_indices = @transform_4, window_bounds = array<i64: 1, 16, 256>}]} {
    %cst = arith.constant 0.000000e+00 : bf16
    %0 = vector.broadcast %cst : bf16 to vector<4x17xbf16>
    %c0 = arith.constant 0 : index
    %c0_0 = arith.constant 0 : index
    %1 = vector.load %arg6[%c0, %c0_0] : memref<4x290xbf16, #tpu.memory_space<vmem>>, vector<4x17xbf16>
    tpu.vector_store %arg6[%c0, %c0_0], %0 {strides = array<i32>} : memref<4x290xbf16, #tpu.memory_space<vmem>>, vector<4x17xbf16>,
    %cst_1 = arith.constant 0.000000e+00 : bf16
    %2 = vector.broadcast %cst_1 : bf16 to vector<4x17xbf16>
    %c0_2 = arith.constant 0 : index
    %c273 = arith.constant 273 : index
    %3 = vector.load %arg6[%c0_2, %c273] : memref<4x290xbf16, #tpu.memory_space<vmem>>, vector<4x17xbf16>
    tpu.vector_store %arg6[%c0_2, %c273], %2 {strides = array<i32>} : memref<4x290xbf16, #tpu.memory_space<vmem>>, vector<4x17xbf16>,
    %c0_3 = arith.constant 0 : index
    %c0_4 = arith.constant 0 : index
    %c0_5 = arith.constant 0 : index
    %4 = vector.load %arg1[%c0_3, %c0_4, %c0_5] : memref<1x2x256xf32, #tpu.memory_space<vmem>>, vector<1x2x256xf32>
    %5 = vector.shape_cast %4 : vector<1x2x256xf32> to vector<2x256xf32>
    %6 = arith.truncf %5 : vector<2x256xf32> to vector<2x256xbf16>
    %c0_6 = arith.constant 0 : index
    %c17 = arith.constant 17 : index
    %7 = vector.load %arg6[%c0_6, %c17] : memref<4x290xbf16, #tpu.memory_space<vmem>>, vector<2x256xbf16>
    tpu.vector_store %arg6[%c0_6, %c17], %6 {strides = array<i32>} : memref<4x290xbf16, #tpu.memory_space<vmem>>, vector<2x256xbf16>,
    %c0_7 = arith.constant 0 : index
    %c0_8 = arith.constant 0 : index
    %c0_9 = arith.constant 0 : index
    %8 = vector.load %arg2[%c0_7, %c0_8, %c0_9] : memref<1x2x256xbf16, #tpu.memory_space<vmem>>, vector<1x2x256xbf16>
    %9 = vector.shape_cast %8 : vector<1x2x256xbf16> to vector<2x256xbf16>
    %c2 = arith.constant 2 : index
    %c17_10 = arith.constant 17 : index
    %10 = vector.load %arg6[%c2, %c17_10] : memref<4x290xbf16, #tpu.memory_space<vmem>>, vector<2x256xbf16>
    tpu.vector_store %arg6[%c2, %c17_10], %9 {strides = array<i32>} : memref<4x290xbf16, #tpu.memory_space<vmem>>, vector<2x256xbf16>,
    %cst_11 = arith.constant 0.000000e+00 : f32
    %11 = vector.broadcast %cst_11 : f32 to vector<16x256xf32>
    %c0_12 = arith.constant 0 : index
    %c0_13 = arith.constant 0 : index
    %12 = vector.load %arg6[%c0_12, %c0_13] : memref<4x290xbf16, #tpu.memory_space<vmem>>, vector<4x256xbf16>
    %c0_14 = arith.constant 0 : index
    %c0_15 = arith.constant 0 : index
    %13 = vector.load %arg4[%c0_14, %c0_15] : memref<2x256xbf16, #tpu.memory_space<vmem>>, vector<1x256xbf16>
    %14 = vector.broadcast %13 : vector<1x256xbf16> to vector<4x256xbf16>
    %15 = arith.mulf %12, %14 : vector<4x256xbf16>
    %c0_16 = arith.constant 0 : index
    %c0_17 = arith.constant 0 : index
    %c0_18 = arith.constant 0 : index
    %16 = vector.load %arg3[%c0_16, %c0_17, %c0_18] : memref<9x16x4xbf16, #tpu.memory_space<vmem>>, vector<1x16x4xbf16>
    %17 = vector.shape_cast %16 : vector<1x16x4xbf16> to vector<16x4xbf16>
    %cst_19 = arith.constant dense<0.000000e+00> : vector<16x256xf32>
    %18 = tpu.matmul %17, %15, %cst_19 {dimension_numbers = #tpu.dot_dimension_numbers<[1], [0], [0], [1], [0, 0, 1, 1], [], []>} : vector<16x4xbf16>, vector<4x256xbf16>, vector<16x256xf32> -> vector<16x256xf32>
    %19 = arith.addf %11, %18 : vector<16x256xf32>
    %c0_20 = arith.constant 0 : index
    %c1 = arith.constant 1 : index
    %20 = vector.load %arg6[%c0_20, %c1] : memref<4x290xbf16, #tpu.memory_space<vmem>>, vector<4x256xbf16>
    %c1_21 = arith.constant 1 : index
    %c0_22 = arith.constant 0 : index
    %c0_23 = arith.constant 0 : index
    %21 = vector.load %arg3[%c1_21, %c0_22, %c0_23] : memref<9x16x4xbf16, #tpu.memory_space<vmem>>, vector<1x16x4xbf16>
    %22 = vector.shape_cast %21 : vector<1x16x4xbf16> to vector<16x4xbf16>
    %cst_24 = arith.constant dense<0.000000e+00> : vector<16x256xf32>
    %23 = tpu.matmul %22, %20, %cst_24 {dimension_numbers = #tpu.dot_dimension_numbers<[1], [0], [0], [1], [0, 0, 1, 1], [], []>} : vector<16x4xbf16>, vector<4x256xbf16>, vector<16x256xf32> -> vector<16x256xf32>
    %24 = arith.addf %19, %23 : vector<16x256xf32>
    %c0_25 = arith.constant 0 : index
    %c2_26 = arith.constant 2 : index
    %25 = vector.load %arg6[%c0_25, %c2_26] : memref<4x290xbf16, #tpu.memory_space<vmem>>, vector<4x256xbf16>
    %c1_27 = arith.constant 1 : index
    %c0_28 = arith.constant 0 : index
    %26 = vector.load %arg4[%c1_27, %c0_28] : memref<2x256xbf16, #tpu.memory_space<vmem>>, vector<1x256xbf16>
    %27 = vector.broadcast %26 : vector<1x256xbf16> to vector<4x256xbf16>
    %28 = arith.mulf %25, %27 : vector<4x256xbf16>
    %c2_29 = arith.constant 2 : index
    %c0_30 = arith.constant 0 : index
    %c0_31 = arith.constant 0 : index
    %29 = vector.load %arg3[%c2_29, %c0_30, %c0_31] : memref<9x16x4xbf16, #tpu.memory_space<vmem>>, vector<1x16x4xbf16>
    %30 = vector.shape_cast %29 : vector<1x16x4xbf16> to vector<16x4xbf16>
    %cst_32 = arith.constant dense<0.000000e+00> : vector<16x256xf32>
    %31 = tpu.matmul %30, %28, %cst_32 {dimension_numbers = #tpu.dot_dimension_numbers<[1], [0], [0], [1], [0, 0, 1, 1], [], []>} : vector<16x4xbf16>, vector<4x256xbf16>, vector<16x256xf32> -> vector<16x256xf32>
    %32 = arith.addf %24, %31 : vector<16x256xf32>
    %c0_33 = arith.constant 0 : index
    %c16 = arith.constant 16 : index
    %33 = vector.load %arg6[%c0_33, %c16] : memref<4x290xbf16, #tpu.memory_space<vmem>>, vector<4x256xbf16>
    %c0_34 = arith.constant 0 : index
    %c0_35 = arith.constant 0 : index
    %34 = vector.load %arg4[%c0_34, %c0_35] : memref<2x256xbf16, #tpu.memory_space<vmem>>, vector<1x256xbf16>
    %35 = vector.broadcast %34 : vector<1x256xbf16> to vector<4x256xbf16>
    %36 = arith.mulf %33, %35 : vector<4x256xbf16>
    %c3 = arith.constant 3 : index
    %c0_36 = arith.constant 0 : index
    %c0_37 = arith.constant 0 : index
    %37 = vector.load %arg3[%c3, %c0_36, %c0_37] : memref<9x16x4xbf16, #tpu.memory_space<vmem>>, vector<1x16x4xbf16>
    %38 = vector.shape_cast %37 : vector<1x16x4xbf16> to vector<16x4xbf16>
    %cst_38 = arith.constant dense<0.000000e+00> : vector<16x256xf32>
    %39 = tpu.matmul %38, %36, %cst_38 {dimension_numbers = #tpu.dot_dimension_numbers<[1], [0], [0], [1], [0, 0, 1, 1], [], []>} : vector<16x4xbf16>, vector<4x256xbf16>, vector<16x256xf32> -> vector<16x256xf32>
    %40 = arith.addf %32, %39 : vector<16x256xf32>
    %c0_39 = arith.constant 0 : index
    %c17_40 = arith.constant 17 : index
    %41 = vector.load %arg6[%c0_39, %c17_40] : memref<4x290xbf16, #tpu.memory_space<vmem>>, vector<4x256xbf16>
    %c4 = arith.constant 4 : index
    %c0_41 = arith.constant 0 : index
    %c0_42 = arith.constant 0 : index
    %42 = vector.load %arg3[%c4, %c0_41, %c0_42] : memref<9x16x4xbf16, #tpu.memory_space<vmem>>, vector<1x16x4xbf16>
    %43 = vector.shape_cast %42 : vector<1x16x4xbf16> to vector<16x4xbf16>
    %cst_43 = arith.constant dense<0.000000e+00> : vector<16x256xf32>
    %44 = tpu.matmul %43, %41, %cst_43 {dimension_numbers = #tpu.dot_dimension_numbers<[1], [0], [0], [1], [0, 0, 1, 1], [], []>} : vector<16x4xbf16>, vector<4x256xbf16>, vector<16x256xf32> -> vector<16x256xf32>
    %45 = arith.addf %40, %44 : vector<16x256xf32>
    %c0_44 = arith.constant 0 : index
    %c18 = arith.constant 18 : index
    %46 = vector.load %arg6[%c0_44, %c18] : memref<4x290xbf16, #tpu.memory_space<vmem>>, vector<4x256xbf16>
    %c1_45 = arith.constant 1 : index
    %c0_46 = arith.constant 0 : index
    %47 = vector.load %arg4[%c1_45, %c0_46] : memref<2x256xbf16, #tpu.memory_space<vmem>>, vector<1x256xbf16>
    %48 = vector.broadcast %47 : vector<1x256xbf16> to vector<4x256xbf16>
    %49 = arith.mulf %46, %48 : vector<4x256xbf16>
    %c5 = arith.constant 5 : index
    %c0_47 = arith.constant 0 : index
    %c0_48 = arith.constant 0 : index
    %50 = vector.load %arg3[%c5, %c0_47, %c0_48] : memref<9x16x4xbf16, #tpu.memory_space<vmem>>, vector<1x16x4xbf16>
    %51 = vector.shape_cast %50 : vector<1x16x4xbf16> to vector<16x4xbf16>
    %cst_49 = arith.constant dense<0.000000e+00> : vector<16x256xf32>
    %52 = tpu.matmul %51, %49, %cst_49 {dimension_numbers = #tpu.dot_dimension_numbers<[1], [0], [0], [1], [0, 0, 1, 1], [], []>} : vector<16x4xbf16>, vector<4x256xbf16>, vector<16x256xf32> -> vector<16x256xf32>
    %53 = arith.addf %45, %52 : vector<16x256xf32>
    %c0_50 = arith.constant 0 : index
    %c32 = arith.constant 32 : index
    %54 = vector.load %arg6[%c0_50, %c32] : memref<4x290xbf16, #tpu.memory_space<vmem>>, vector<4x256xbf16>
    %c0_51 = arith.constant 0 : index
    %c0_52 = arith.constant 0 : index
    %55 = vector.load %arg4[%c0_51, %c0_52] : memref<2x256xbf16, #tpu.memory_space<vmem>>, vector<1x256xbf16>
    %56 = vector.broadcast %55 : vector<1x256xbf16> to vector<4x256xbf16>
    %57 = arith.mulf %54, %56 : vector<4x256xbf16>
    %c6 = arith.constant 6 : index
    %c0_53 = arith.constant 0 : index
    %c0_54 = arith.constant 0 : index
    %58 = vector.load %arg3[%c6, %c0_53, %c0_54] : memref<9x16x4xbf16, #tpu.memory_space<vmem>>, vector<1x16x4xbf16>
    %59 = vector.shape_cast %58 : vector<1x16x4xbf16> to vector<16x4xbf16>
    %cst_55 = arith.constant dense<0.000000e+00> : vector<16x256xf32>
    %60 = tpu.matmul %59, %57, %cst_55 {dimension_numbers = #tpu.dot_dimension_numbers<[1], [0], [0], [1], [0, 0, 1, 1], [], []>} : vector<16x4xbf16>, vector<4x256xbf16>, vector<16x256xf32> -> vector<16x256xf32>
    %61 = arith.addf %53, %60 : vector<16x256xf32>
    %c0_56 = arith.constant 0 : index
    %c33 = arith.constant 33 : index
    %62 = vector.load %arg6[%c0_56, %c33] : memref<4x290xbf16, #tpu.memory_space<vmem>>, vector<4x256xbf16>
    %c7 = arith.constant 7 : index
    %c0_57 = arith.constant 0 : index
    %c0_58 = arith.constant 0 : index
    %63 = vector.load %arg3[%c7, %c0_57, %c0_58] : memref<9x16x4xbf16, #tpu.memory_space<vmem>>, vector<1x16x4xbf16>
    %64 = vector.shape_cast %63 : vector<1x16x4xbf16> to vector<16x4xbf16>
    %cst_59 = arith.constant dense<0.000000e+00> : vector<16x256xf32>
    %65 = tpu.matmul %64, %62, %cst_59 {dimension_numbers = #tpu.dot_dimension_numbers<[1], [0], [0], [1], [0, 0, 1, 1], [], []>} : vector<16x4xbf16>, vector<4x256xbf16>, vector<16x256xf32> -> vector<16x256xf32>
    %66 = arith.addf %61, %65 : vector<16x256xf32>
    %c0_60 = arith.constant 0 : index
    %c34 = arith.constant 34 : index
    %67 = vector.load %arg6[%c0_60, %c34] : memref<4x290xbf16, #tpu.memory_space<vmem>>, vector<4x256xbf16>
    %c1_61 = arith.constant 1 : index
    %c0_62 = arith.constant 0 : index
    %68 = vector.load %arg4[%c1_61, %c0_62] : memref<2x256xbf16, #tpu.memory_space<vmem>>, vector<1x256xbf16>
    %69 = vector.broadcast %68 : vector<1x256xbf16> to vector<4x256xbf16>
    %70 = arith.mulf %67, %69 : vector<4x256xbf16>
    %c8 = arith.constant 8 : index
    %c0_63 = arith.constant 0 : index
    %c0_64 = arith.constant 0 : index
    %71 = vector.load %arg3[%c8, %c0_63, %c0_64] : memref<9x16x4xbf16, #tpu.memory_space<vmem>>, vector<1x16x4xbf16>
    %72 = vector.shape_cast %71 : vector<1x16x4xbf16> to vector<16x4xbf16>
    %cst_65 = arith.constant dense<0.000000e+00> : vector<16x256xf32>
    %73 = tpu.matmul %72, %70, %cst_65 {dimension_numbers = #tpu.dot_dimension_numbers<[1], [0], [0], [1], [0, 0, 1, 1], [], []>} : vector<16x4xbf16>, vector<4x256xbf16>, vector<16x256xf32> -> vector<16x256xf32>
    %74 = arith.addf %66, %73 : vector<16x256xf32>
    %75 = arith.truncf %74 : vector<16x256xf32> to vector<16x256xbf16>
    %c0_66 = arith.constant 0 : index
    %c0_67 = arith.constant 0 : index
    %c0_68 = arith.constant 0 : index
    %76 = vector.load %arg5[%c0_66, %c0_67, %c0_68] : memref<1x16x256xbf16, #tpu.memory_space<vmem>>, vector<1x16x256xbf16>
    %77 = vector.shape_cast %76 : vector<1x16x256xbf16> to vector<16x256xbf16>
    %78 = vector.shape_cast %75 : vector<16x256xbf16> to vector<1x16x256xbf16>
    tpu.vector_store %arg5[%c0_66, %c0_67, %c0_68], %78 {strides = array<i32>} : memref<1x16x256xbf16, #tpu.memory_space<vmem>>, vector<1x16x256xbf16>,
    return
  }
  func.func @transform_0(%arg0: i32) -> (i32, i32, i32) {
    %c0_i32 = arith.constant 0 : i32
    %c0_i32_0 = arith.constant 0 : i32
    %c0_i32_1 = arith.constant 0 : i32
    return %arg0, %c0_i32, %c0_i32_0 : i32, i32, i32
  }
  func.func @transform_1(%arg0: i32) -> (i32, i32, i32) {
    %c0_i32 = arith.constant 0 : i32
    %c0_i32_0 = arith.constant 0 : i32
    %c0_i32_1 = arith.constant 0 : i32
    return %arg0, %c0_i32, %c0_i32_0 : i32, i32, i32
  }
  func.func @transform_2(%arg0: i32) -> (i32, i32, i32) {
    %c0_i32 = arith.constant 0 : i32
    %c0_i32_0 = arith.constant 0 : i32
    %c0_i32_1 = arith.constant 0 : i32
    %c0_i32_2 = arith.constant 0 : i32
    return %c0_i32, %c0_i32_0, %c0_i32_1 : i32, i32, i32
  }
  func.func @transform_3(%arg0: i32) -> (i32, i32) {
    %c0_i32 = arith.constant 0 : i32
    %c0_i32_0 = arith.constant 0 : i32
    %c0_i32_1 = arith.constant 0 : i32
    return %c0_i32, %c0_i32_0 : i32, i32
  }
  func.func @transform_4(%arg0: i32) -> (i32, i32, i32) {
    %c0_i32 = arith.constant 0 : i32
    %c0_i32_0 = arith.constant 0 : i32
    %c0_i32_1 = arith.constant 0 : i32
    return %arg0, %c0_i32, %c0_i32_0 : i32, i32, i32
  }
}

module attributes {stable_mosaic.version = 11 : i64} {
  func.func @_convlstm_step_kernel(%arg0: i32, %arg1: i32, %arg2: memref<1x1x16x256xbf16, #tpu.memory_space<vmem>>, %arg3: memref<9x16x4xbf16, #tpu.memory_space<vmem>>, %arg4: memref<2x256xbf16, #tpu.memory_space<vmem>>, %arg5: memref<1x1x4x256xf32, #tpu.memory_space<vmem>>, %arg6: memref<4x290xbf16, #tpu.memory_space<vmem>>, %arg7: memref<4x256xf32, #tpu.memory_space<vmem>>) attributes {dimension_semantics = [#tpu.dimension_semantics<parallel>, #tpu.dimension_semantics<arbitrary>], iteration_bounds = array<i64: 2, 4>, scalar_prefetch = 0 : i64, scratch_operands = 2 : i64, tpu.core_type = #tpu.core_type<tc>, window_params = [{transform_indices = @transform_0, window_bounds = array<i64: 1, 1, 16, 256>}, {pipeline_mode = #tpu.pipeline_mode<synchronous>, transform_indices = @transform_1, window_bounds = array<i64: 9, 16, 4>}, {pipeline_mode = #tpu.pipeline_mode<synchronous>, transform_indices = @transform_2, window_bounds = array<i64: 2, 256>}, {transform_indices = @transform_3, window_bounds = array<i64: 1, 1, 4, 256>}]} {
    %c0_i32 = arith.constant 0 : i32
    %0 = arith.cmpi eq, %arg1, %c0_i32 : i32
    %1 = arith.extui %0 : i1 to i32
    %c0_i32_0 = arith.constant 0 : i32
    %2 = arith.cmpi ne, %1, %c0_i32_0 : i32
    scf.if %2 {
      %cst_77 = arith.constant 0.000000e+00 : bf16
      %113 = vector.broadcast %cst_77 : bf16 to vector<4x290xbf16>
      %c0_78 = arith.constant 0 : index
      %c0_79 = arith.constant 0 : index
      %114 = vector.load %arg6[%c0_78, %c0_79] : memref<4x290xbf16, #tpu.memory_space<vmem>>, vector<4x290xbf16>
      tpu.vector_store %arg6[%c0_78, %c0_79], %113 {strides = array<i32>} : memref<4x290xbf16, #tpu.memory_space<vmem>>, vector<4x290xbf16>,
      %cst_80 = arith.constant 0.000000e+00 : f32
      %115 = vector.broadcast %cst_80 : f32 to vector<4x256xf32>
      %c0_81 = arith.constant 0 : index
      %c0_82 = arith.constant 0 : index
      %116 = vector.load %arg7[%c0_81, %c0_82] : memref<4x256xf32, #tpu.memory_space<vmem>>, vector<4x256xf32>
      tpu.vector_store %arg7[%c0_81, %c0_82], %115 {strides = array<i32>} : memref<4x256xf32, #tpu.memory_space<vmem>>, vector<4x256xf32>,
    } else {
    }
    %c0 = arith.constant 0 : index
    %c0_1 = arith.constant 0 : index
    %c0_2 = arith.constant 0 : index
    %c0_3 = arith.constant 0 : index
    %3 = vector.load %arg2[%c0, %c0_1, %c0_2, %c0_3] : memref<1x1x16x256xbf16, #tpu.memory_space<vmem>>, vector<1x1x16x256xbf16>
    %4 = vector.shape_cast %3 : vector<1x1x16x256xbf16> to vector<16x256xbf16>
    %5 = arith.extf %4 : vector<16x256xbf16> to vector<16x256xf32>
    %c0_4 = arith.constant 0 : index
    %c0_5 = arith.constant 0 : index
    %6 = vector.load %arg6[%c0_4, %c0_5] : memref<4x290xbf16, #tpu.memory_space<vmem>>, vector<4x256xbf16>
    %c0_6 = arith.constant 0 : index
    %c0_7 = arith.constant 0 : index
    %7 = vector.load %arg4[%c0_6, %c0_7] : memref<2x256xbf16, #tpu.memory_space<vmem>>, vector<1x256xbf16>
    %8 = vector.broadcast %7 : vector<1x256xbf16> to vector<4x256xbf16>
    %9 = arith.mulf %6, %8 : vector<4x256xbf16>
    %c0_8 = arith.constant 0 : index
    %c0_9 = arith.constant 0 : index
    %c0_10 = arith.constant 0 : index
    %10 = vector.load %arg3[%c0_8, %c0_9, %c0_10] : memref<9x16x4xbf16, #tpu.memory_space<vmem>>, vector<1x16x4xbf16>
    %11 = vector.shape_cast %10 : vector<1x16x4xbf16> to vector<16x4xbf16>
    %cst = arith.constant dense<0.000000e+00> : vector<16x256xf32>
    %12 = tpu.matmul %11, %9, %cst {dimension_numbers = #tpu.dot_dimension_numbers<[1], [0], [0], [1], [0, 0, 1, 1], [], []>} : vector<16x4xbf16>, vector<4x256xbf16>, vector<16x256xf32> -> vector<16x256xf32>
    %13 = arith.addf %5, %12 : vector<16x256xf32>
    %c0_11 = arith.constant 0 : index
    %c1 = arith.constant 1 : index
    %14 = vector.load %arg6[%c0_11, %c1] : memref<4x290xbf16, #tpu.memory_space<vmem>>, vector<4x256xbf16>
    %c1_12 = arith.constant 1 : index
    %c0_13 = arith.constant 0 : index
    %c0_14 = arith.constant 0 : index
    %15 = vector.load %arg3[%c1_12, %c0_13, %c0_14] : memref<9x16x4xbf16, #tpu.memory_space<vmem>>, vector<1x16x4xbf16>
    %16 = vector.shape_cast %15 : vector<1x16x4xbf16> to vector<16x4xbf16>
    %cst_15 = arith.constant dense<0.000000e+00> : vector<16x256xf32>
    %17 = tpu.matmul %16, %14, %cst_15 {dimension_numbers = #tpu.dot_dimension_numbers<[1], [0], [0], [1], [0, 0, 1, 1], [], []>} : vector<16x4xbf16>, vector<4x256xbf16>, vector<16x256xf32> -> vector<16x256xf32>
    %18 = arith.addf %13, %17 : vector<16x256xf32>
    %c0_16 = arith.constant 0 : index
    %c2 = arith.constant 2 : index
    %19 = vector.load %arg6[%c0_16, %c2] : memref<4x290xbf16, #tpu.memory_space<vmem>>, vector<4x256xbf16>
    %c1_17 = arith.constant 1 : index
    %c0_18 = arith.constant 0 : index
    %20 = vector.load %arg4[%c1_17, %c0_18] : memref<2x256xbf16, #tpu.memory_space<vmem>>, vector<1x256xbf16>
    %21 = vector.broadcast %20 : vector<1x256xbf16> to vector<4x256xbf16>
    %22 = arith.mulf %19, %21 : vector<4x256xbf16>
    %c2_19 = arith.constant 2 : index
    %c0_20 = arith.constant 0 : index
    %c0_21 = arith.constant 0 : index
    %23 = vector.load %arg3[%c2_19, %c0_20, %c0_21] : memref<9x16x4xbf16, #tpu.memory_space<vmem>>, vector<1x16x4xbf16>
    %24 = vector.shape_cast %23 : vector<1x16x4xbf16> to vector<16x4xbf16>
    %cst_22 = arith.constant dense<0.000000e+00> : vector<16x256xf32>
    %25 = tpu.matmul %24, %22, %cst_22 {dimension_numbers = #tpu.dot_dimension_numbers<[1], [0], [0], [1], [0, 0, 1, 1], [], []>} : vector<16x4xbf16>, vector<4x256xbf16>, vector<16x256xf32> -> vector<16x256xf32>
    %26 = arith.addf %18, %25 : vector<16x256xf32>
    %c0_23 = arith.constant 0 : index
    %c16 = arith.constant 16 : index
    %27 = vector.load %arg6[%c0_23, %c16] : memref<4x290xbf16, #tpu.memory_space<vmem>>, vector<4x256xbf16>
    %c0_24 = arith.constant 0 : index
    %c0_25 = arith.constant 0 : index
    %28 = vector.load %arg4[%c0_24, %c0_25] : memref<2x256xbf16, #tpu.memory_space<vmem>>, vector<1x256xbf16>
    %29 = vector.broadcast %28 : vector<1x256xbf16> to vector<4x256xbf16>
    %30 = arith.mulf %27, %29 : vector<4x256xbf16>
    %c3 = arith.constant 3 : index
    %c0_26 = arith.constant 0 : index
    %c0_27 = arith.constant 0 : index
    %31 = vector.load %arg3[%c3, %c0_26, %c0_27] : memref<9x16x4xbf16, #tpu.memory_space<vmem>>, vector<1x16x4xbf16>
    %32 = vector.shape_cast %31 : vector<1x16x4xbf16> to vector<16x4xbf16>
    %cst_28 = arith.constant dense<0.000000e+00> : vector<16x256xf32>
    %33 = tpu.matmul %32, %30, %cst_28 {dimension_numbers = #tpu.dot_dimension_numbers<[1], [0], [0], [1], [0, 0, 1, 1], [], []>} : vector<16x4xbf16>, vector<4x256xbf16>, vector<16x256xf32> -> vector<16x256xf32>
    %34 = arith.addf %26, %33 : vector<16x256xf32>
    %c0_29 = arith.constant 0 : index
    %c17 = arith.constant 17 : index
    %35 = vector.load %arg6[%c0_29, %c17] : memref<4x290xbf16, #tpu.memory_space<vmem>>, vector<4x256xbf16>
    %c4 = arith.constant 4 : index
    %c0_30 = arith.constant 0 : index
    %c0_31 = arith.constant 0 : index
    %36 = vector.load %arg3[%c4, %c0_30, %c0_31] : memref<9x16x4xbf16, #tpu.memory_space<vmem>>, vector<1x16x4xbf16>
    %37 = vector.shape_cast %36 : vector<1x16x4xbf16> to vector<16x4xbf16>
    %cst_32 = arith.constant dense<0.000000e+00> : vector<16x256xf32>
    %38 = tpu.matmul %37, %35, %cst_32 {dimension_numbers = #tpu.dot_dimension_numbers<[1], [0], [0], [1], [0, 0, 1, 1], [], []>} : vector<16x4xbf16>, vector<4x256xbf16>, vector<16x256xf32> -> vector<16x256xf32>
    %39 = arith.addf %34, %38 : vector<16x256xf32>
    %c0_33 = arith.constant 0 : index
    %c18 = arith.constant 18 : index
    %40 = vector.load %arg6[%c0_33, %c18] : memref<4x290xbf16, #tpu.memory_space<vmem>>, vector<4x256xbf16>
    %c1_34 = arith.constant 1 : index
    %c0_35 = arith.constant 0 : index
    %41 = vector.load %arg4[%c1_34, %c0_35] : memref<2x256xbf16, #tpu.memory_space<vmem>>, vector<1x256xbf16>
    %42 = vector.broadcast %41 : vector<1x256xbf16> to vector<4x256xbf16>
    %43 = arith.mulf %40, %42 : vector<4x256xbf16>
    %c5 = arith.constant 5 : index
    %c0_36 = arith.constant 0 : index
    %c0_37 = arith.constant 0 : index
    %44 = vector.load %arg3[%c5, %c0_36, %c0_37] : memref<9x16x4xbf16, #tpu.memory_space<vmem>>, vector<1x16x4xbf16>
    %45 = vector.shape_cast %44 : vector<1x16x4xbf16> to vector<16x4xbf16>
    %cst_38 = arith.constant dense<0.000000e+00> : vector<16x256xf32>
    %46 = tpu.matmul %45, %43, %cst_38 {dimension_numbers = #tpu.dot_dimension_numbers<[1], [0], [0], [1], [0, 0, 1, 1], [], []>} : vector<16x4xbf16>, vector<4x256xbf16>, vector<16x256xf32> -> vector<16x256xf32>
    %47 = arith.addf %39, %46 : vector<16x256xf32>
    %c0_39 = arith.constant 0 : index
    %c32 = arith.constant 32 : index
    %48 = vector.load %arg6[%c0_39, %c32] : memref<4x290xbf16, #tpu.memory_space<vmem>>, vector<4x256xbf16>
    %c0_40 = arith.constant 0 : index
    %c0_41 = arith.constant 0 : index
    %49 = vector.load %arg4[%c0_40, %c0_41] : memref<2x256xbf16, #tpu.memory_space<vmem>>, vector<1x256xbf16>
    %50 = vector.broadcast %49 : vector<1x256xbf16> to vector<4x256xbf16>
    %51 = arith.mulf %48, %50 : vector<4x256xbf16>
    %c6 = arith.constant 6 : index
    %c0_42 = arith.constant 0 : index
    %c0_43 = arith.constant 0 : index
    %52 = vector.load %arg3[%c6, %c0_42, %c0_43] : memref<9x16x4xbf16, #tpu.memory_space<vmem>>, vector<1x16x4xbf16>
    %53 = vector.shape_cast %52 : vector<1x16x4xbf16> to vector<16x4xbf16>
    %cst_44 = arith.constant dense<0.000000e+00> : vector<16x256xf32>
    %54 = tpu.matmul %53, %51, %cst_44 {dimension_numbers = #tpu.dot_dimension_numbers<[1], [0], [0], [1], [0, 0, 1, 1], [], []>} : vector<16x4xbf16>, vector<4x256xbf16>, vector<16x256xf32> -> vector<16x256xf32>
    %55 = arith.addf %47, %54 : vector<16x256xf32>
    %c0_45 = arith.constant 0 : index
    %c33 = arith.constant 33 : index
    %56 = vector.load %arg6[%c0_45, %c33] : memref<4x290xbf16, #tpu.memory_space<vmem>>, vector<4x256xbf16>
    %c7 = arith.constant 7 : index
    %c0_46 = arith.constant 0 : index
    %c0_47 = arith.constant 0 : index
    %57 = vector.load %arg3[%c7, %c0_46, %c0_47] : memref<9x16x4xbf16, #tpu.memory_space<vmem>>, vector<1x16x4xbf16>
    %58 = vector.shape_cast %57 : vector<1x16x4xbf16> to vector<16x4xbf16>
    %cst_48 = arith.constant dense<0.000000e+00> : vector<16x256xf32>
    %59 = tpu.matmul %58, %56, %cst_48 {dimension_numbers = #tpu.dot_dimension_numbers<[1], [0], [0], [1], [0, 0, 1, 1], [], []>} : vector<16x4xbf16>, vector<4x256xbf16>, vector<16x256xf32> -> vector<16x256xf32>
    %60 = arith.addf %55, %59 : vector<16x256xf32>
    %c0_49 = arith.constant 0 : index
    %c34 = arith.constant 34 : index
    %61 = vector.load %arg6[%c0_49, %c34] : memref<4x290xbf16, #tpu.memory_space<vmem>>, vector<4x256xbf16>
    %c1_50 = arith.constant 1 : index
    %c0_51 = arith.constant 0 : index
    %62 = vector.load %arg4[%c1_50, %c0_51] : memref<2x256xbf16, #tpu.memory_space<vmem>>, vector<1x256xbf16>
    %63 = vector.broadcast %62 : vector<1x256xbf16> to vector<4x256xbf16>
    %64 = arith.mulf %61, %63 : vector<4x256xbf16>
    %c8 = arith.constant 8 : index
    %c0_52 = arith.constant 0 : index
    %c0_53 = arith.constant 0 : index
    %65 = vector.load %arg3[%c8, %c0_52, %c0_53] : memref<9x16x4xbf16, #tpu.memory_space<vmem>>, vector<1x16x4xbf16>
    %66 = vector.shape_cast %65 : vector<1x16x4xbf16> to vector<16x4xbf16>
    %cst_54 = arith.constant dense<0.000000e+00> : vector<16x256xf32>
    %67 = tpu.matmul %66, %64, %cst_54 {dimension_numbers = #tpu.dot_dimension_numbers<[1], [0], [0], [1], [0, 0, 1, 1], [], []>} : vector<16x4xbf16>, vector<4x256xbf16>, vector<16x256xf32> -> vector<16x256xf32>
    %68 = arith.addf %60, %67 : vector<16x256xf32>
    %69 = vector.extract_strided_slice %68 {offsets = [0, 0], sizes = [4, 256], strides = [1, 1]} : vector<16x256xf32> to vector<4x256xf32>
    %cst_55 = arith.constant 5.000000e-01 : f32
    %70 = vector.broadcast %cst_55 : f32 to vector<4x256xf32>
    %71 = arith.mulf %70, %69 : vector<4x256xf32>
    %72 = math.tanh %71 : vector<4x256xf32>
    %cst_56 = arith.constant 5.000000e-01 : f32
    %73 = vector.broadcast %cst_56 : f32 to vector<4x256xf32>
    %74 = arith.mulf %73, %72 : vector<4x256xf32>
    %cst_57 = arith.constant 5.000000e-01 : f32
    %75 = vector.broadcast %cst_57 : f32 to vector<4x256xf32>
    %76 = arith.addf %74, %75 : vector<4x256xf32>
    %77 = vector.extract_strided_slice %68 {offsets = [4, 0], sizes = [4, 256], strides = [1, 1]} : vector<16x256xf32> to vector<4x256xf32>
    %cst_58 = arith.constant 5.000000e-01 : f32
    %78 = vector.broadcast %cst_58 : f32 to vector<4x256xf32>
    %79 = arith.mulf %78, %77 : vector<4x256xf32>
    %80 = math.tanh %79 : vector<4x256xf32>
    %cst_59 = arith.constant 5.000000e-01 : f32
    %81 = vector.broadcast %cst_59 : f32 to vector<4x256xf32>
    %82 = arith.mulf %81, %80 : vector<4x256xf32>
    %cst_60 = arith.constant 5.000000e-01 : f32
    %83 = vector.broadcast %cst_60 : f32 to vector<4x256xf32>
    %84 = arith.addf %82, %83 : vector<4x256xf32>
    %85 = vector.extract_strided_slice %68 {offsets = [8, 0], sizes = [4, 256], strides = [1, 1]} : vector<16x256xf32> to vector<4x256xf32>
    %cst_61 = arith.constant 5.000000e-01 : f32
    %86 = vector.broadcast %cst_61 : f32 to vector<4x256xf32>
    %87 = arith.mulf %86, %85 : vector<4x256xf32>
    %88 = math.tanh %87 : vector<4x256xf32>
    %cst_62 = arith.constant 5.000000e-01 : f32
    %89 = vector.broadcast %cst_62 : f32 to vector<4x256xf32>
    %90 = arith.mulf %89, %88 : vector<4x256xf32>
    %cst_63 = arith.constant 5.000000e-01 : f32
    %91 = vector.broadcast %cst_63 : f32 to vector<4x256xf32>
    %92 = arith.addf %90, %91 : vector<4x256xf32>
    %93 = vector.extract_strided_slice %68 {offsets = [12, 0], sizes = [4, 256], strides = [1, 1]} : vector<16x256xf32> to vector<4x256xf32>
    %cst_64 = arith.constant 5.000000e-01 : f32
    %94 = vector.broadcast %cst_64 : f32 to vector<4x256xf32>
    %95 = arith.mulf %94, %93 : vector<4x256xf32>
    %96 = math.tanh %95 : vector<4x256xf32>
    %cst_65 = arith.constant 5.000000e-01 : f32
    %97 = vector.broadcast %cst_65 : f32 to vector<4x256xf32>
    %98 = arith.mulf %97, %96 : vector<4x256xf32>
    %cst_66 = arith.constant 5.000000e-01 : f32
    %99 = vector.broadcast %cst_66 : f32 to vector<4x256xf32>
    %100 = arith.addf %98, %99 : vector<4x256xf32>
    %c0_67 = arith.constant 0 : index
    %c0_68 = arith.constant 0 : index
    %101 = vector.load %arg7[%c0_67, %c0_68] : memref<4x256xf32, #tpu.memory_space<vmem>>, vector<4x256xf32>
    %102 = arith.mulf %84, %101 : vector<4x256xf32>
    %103 = arith.mulf %76, %100 : vector<4x256xf32>
    %104 = arith.addf %102, %103 : vector<4x256xf32>
    %105 = math.tanh %104 : vector<4x256xf32>
    %106 = arith.mulf %92, %105 : vector<4x256xf32>
    %c0_69 = arith.constant 0 : index
    %c0_70 = arith.constant 0 : index
    %107 = vector.load %arg7[%c0_69, %c0_70] : memref<4x256xf32, #tpu.memory_space<vmem>>, vector<4x256xf32>
    tpu.vector_store %arg7[%c0_69, %c0_70], %104 {strides = array<i32>} : memref<4x256xf32, #tpu.memory_space<vmem>>, vector<4x256xf32>,
    %108 = arith.truncf %106 : vector<4x256xf32> to vector<4x256xbf16>
    %c0_71 = arith.constant 0 : index
    %c17_72 = arith.constant 17 : index
    %109 = vector.load %arg6[%c0_71, %c17_72] : memref<4x290xbf16, #tpu.memory_space<vmem>>, vector<4x256xbf16>
    tpu.vector_store %arg6[%c0_71, %c17_72], %108 {strides = array<i32>} : memref<4x290xbf16, #tpu.memory_space<vmem>>, vector<4x256xbf16>,
    %c0_73 = arith.constant 0 : index
    %c0_74 = arith.constant 0 : index
    %c0_75 = arith.constant 0 : index
    %c0_76 = arith.constant 0 : index
    %110 = vector.load %arg5[%c0_73, %c0_74, %c0_75, %c0_76] : memref<1x1x4x256xf32, #tpu.memory_space<vmem>>, vector<1x1x4x256xf32>
    %111 = vector.shape_cast %110 : vector<1x1x4x256xf32> to vector<4x256xf32>
    %112 = vector.shape_cast %106 : vector<4x256xf32> to vector<1x1x4x256xf32>
    tpu.vector_store %arg5[%c0_73, %c0_74, %c0_75, %c0_76], %112 {strides = array<i32>} : memref<1x1x4x256xf32, #tpu.memory_space<vmem>>, vector<1x1x4x256xf32>,
    return
  }
  func.func @transform_0(%arg0: i32, %arg1: i32) -> (i32, i32, i32, i32) {
    %c0_i32 = arith.constant 0 : i32
    %c0_i32_0 = arith.constant 0 : i32
    %c0_i32_1 = arith.constant 0 : i32
    return %arg0, %arg1, %c0_i32, %c0_i32_0 : i32, i32, i32, i32
  }
  func.func @transform_1(%arg0: i32, %arg1: i32) -> (i32, i32, i32) {
    %c0_i32 = arith.constant 0 : i32
    %c0_i32_0 = arith.constant 0 : i32
    %c0_i32_1 = arith.constant 0 : i32
    %c0_i32_2 = arith.constant 0 : i32
    return %c0_i32, %c0_i32_0, %c0_i32_1 : i32, i32, i32
  }
  func.func @transform_2(%arg0: i32, %arg1: i32) -> (i32, i32) {
    %c0_i32 = arith.constant 0 : i32
    %c0_i32_0 = arith.constant 0 : i32
    %c0_i32_1 = arith.constant 0 : i32
    return %c0_i32, %c0_i32_0 : i32, i32
  }
  func.func @transform_3(%arg0: i32, %arg1: i32) -> (i32, i32, i32, i32) {
    %c0_i32 = arith.constant 0 : i32
    %c0_i32_0 = arith.constant 0 : i32
    %c0_i32_1 = arith.constant 0 : i32
    return %arg0, %arg1, %c0_i32, %c0_i32_0 : i32, i32, i32, i32
  }
}

</mosaic_0001>

<llo_original>
// kernel: up_forward.3
$region0: #{up_forward.3}
  #allocation0 [shape = 'u32[]', space=smem, size = 0x4, offset = 0x4, fixed_abs, tag = 'smem constant byte address 0x4 - core index']
  #allocation1 [shape = 'u32[144,128]{1,0:T(1,128)}', space=vmem, size = 0x12000, scoped, tag = 'internal scratch']
  %s0 = inlined_call_operand.vmem [shape: f32[8,4,64], index: 0, kind: input, shape index: {}]
  %s1 = inlined_call_operand.vmem [shape: f32[8,4], index: 1, kind: input, shape index: {}]
  %s2 = inlined_call_operand.vmem [shape: f32[8,1], index: 2, kind: input, shape index: {}]
  %s3 = inlined_call_operand.vmem [shape: bf16[8,8,64], index: 3, kind: output, shape index: {}]
  %s4 = sld [smem:[#allocation0]]
  $region22: #{up_forward.3} parent=0
    _
  %s6 = ssub.s32 1, %s4
  %s7 = scalar_select 0, %s6, %s4
  // Predicated region
  $region2: #{up_forward.3} parent=0 // pred_check
    _
  $region3: #{up_forward.3} parent=0 // pred_check_branch
    %9 = sbr.rel (0) target = $region5
  $region4: #{up_forward.3} parent=0 // pred_region
    _
  $region5: #{up_forward.3} parent=0 // pred_fallthru
    _
  // Predicated region
  $region6: #{up_forward.3} parent=0 // pred_check
    _
  $region7: #{up_forward.3} parent=0 // pred_check_branch
    %11 = sbr.rel (0) target = $region9
  $region8: #{up_forward.3} parent=0 // pred_region
    _
  $region9: #{up_forward.3} parent=0 // pred_fallthru
    _
  // Predicated region
  $region10: #{up_forward.3} parent=0 // pred_check
    _
  $region11: #{up_forward.3} parent=0 // pred_check_branch
    %13 = sbr.rel (0) target = $region13
  $region12: #{up_forward.3} parent=0 // pred_region
    _
  $region13: #{up_forward.3} parent=0 // pred_fallthru
    _
  %v14 = vld [vmem:[%s1] sm:$0xff]
  %v15 = vld [vmem:[%s0] sm:$0xf]
  %v16 = vld [vmem:[%s2] sm:$0xff]
  %18 = vset.pattern.permute.xlu0 0
  %19 = vperm.xlu0 %18, %v16
  %v20 = vpop.permute.xlu0 %19
  %vm22 = vcmask 31744
  %v24 = vsel %vm22, %v14, 0
  %vm26 = vcmask 1043456
  %v28 = vsel %vm26, %v15, 0
  %30 = vmatprep.subr.mxu0 0.0
  %31 = vmatpush1.msra.mxu0 %v28
  %32 = vmatprep.subr.mxu0 0.0
  %33 = vmatpush1.msra.mxu0 0.0
  %34 = vmatprep.subr.mxu0 0.0
  %35 = vmatpush1.msra.mxu0 0.0
  %36 = vmatprep.subr.mxu0 0.0
  %37 = vmatpush1.msra.mxu0 0.0
  %38 = vmatprep.subr.mxu0 0.0
  %39 = vmatpush1.msra.mxu0 0.0
  %40 = vmatprep.subr.mxu0 0.0
  %41 = vmatpush1.msra.mxu0 0.0
  %42 = vmatprep.subr.mxu0 0.0
  %43 = vmatpush1.msra.mxu0 0.0
  %44 = vmatprep.subr.mxu0 0.0
  %45 = vmatpush1.msra.mxu0 0.0
  %46 = vmatprep.subr.mxu0 0.0
  %47 = vmatpush1.msra.mxu0 0.0
  %48 = vmatprep.subr.mxu0 0.0
  %49 = vmatpush1.msra.mxu0 0.0
  %50 = vmatprep.subr.mxu0 0.0
  %51 = vmatpush1.msra.mxu0 0.0
  %52 = vmatprep.subr.mxu0 0.0
  %53 = vmatpush1.msra.mxu0 0.0
  %54 = vmatprep.subr.mxu0 0.0
  %55 = vmatpush1.msra.mxu0 0.0
  %56 = vmatprep.subr.mxu0 0.0
  %57 = vmatpush1.msra.mxu0 0.0
  %58 = vmatprep.subr.mxu0 0.0
  %59 = vmatpush1.msra.mxu0 0.0
  %60 = vmatprep.subr.mxu0 0.0
  %61 = vmatpush1.msra.mxu0 0.0
  %62 = vmatprep.subr.mxu0 0.0
  %63 = vmatpush1.msra.mxu0 0.0
  %64 = vmatprep.subr.mxu0 0.0
  %65 = vmatpush1.msra.mxu0 0.0
  %66 = vmatprep.subr.mxu0 0.0
  %67 = vmatpush1.msra.mxu0 0.0
  %68 = vmatprep.subr.mxu0 0.0
  %69 = vmatpush1.msra.mxu0 0.0
  %70 = vmatprep.subr.mxu0 0.0
  %71 = vmatpush1.msra.mxu0 0.0
  %72 = vmatprep.subr.mxu0 0.0
  %73 = vmatpush1.msra.mxu0 0.0
  %74 = vmatprep.subr.mxu0 0.0
  %75 = vmatpush1.msra.mxu0 0.0
  %76 = vmatprep.subr.mxu0 0.0
  %77 = vmatpush1.msra.mxu0 0.0
  %78 = vmatprep.subr.mxu0 0.0
  %79 = vmatpush1.msra.mxu0 0.0
  %80 = vmatprep.subr.mxu0 0.0
  %81 = vmatpush1.msra.mxu0 0.0
  %82 = vmatprep.subr.mxu0 0.0
  %83 = vmatpush1.msra.mxu0 0.0
  %84 = vmatprep.subr.mxu0 0.0
  %85 = vmatpush1.msra.mxu0 0.0
  %86 = vmatprep.subr.mxu0 0.0
  %87 = vmatpush1.msra.mxu0 0.0
  %88 = vmatprep.subr.mxu0 0.0
  %89 = vmatpush1.msra.mxu0 0.0
  %90 = vmatprep.subr.mxu0 0.0
  %91 = vmatpush1.msra.mxu0 0.0
  %92 = vmatprep.subr.mxu0 0.0
  %93 = vmatpush1.msra.mxu0 0.0
  %94 = vmatprep.mubr.f32.mxu0 0.0
  %95 = vmatmul.mubr.f32.gmra.mrb[0].mxu0 %v24
  %v96 = vpop.f32.mrb[0].mxu0
  %v97 = vadd.f32 %v20, %v96
  %v98 = vpop.f32.mrb[0].mxu0
  %99 = vdwg.mxu0
  %v100 = vpack.c.bf16 %v97, %v97
  %vm101 = vcmask 519168
  %102 = vst.msk [vmem:[%s3] sm:$0xf] %vm101, %v100
  %v103 = vld [vmem:[%s1] sm:$0xff]
  %s104 = scalar_lea.vmem %s0, 4
  %v105 = vld [vmem:[%s104] sm:$0xf]
  %v106 = vld [vmem:[%s2] sm:$0xff]
  %108 = vset.pattern.permute.xlu0 0
  %109 = vperm.xlu0 %108, %v106
  %v110 = vpop.permute.xlu0 %109
  %v113 = vsel %vm22, %v103, 0
  %v116 = vsel %vm26, %v105, 0
  %118 = vmatprep.subr.mxu0 0.0
  %119 = vmatpush1.msra.mxu0 %v116
  %120 = vmatprep.subr.mxu0 0.0
  %121 = vmatpush1.msra.mxu0 0.0
  %122 = vmatprep.subr.mxu0 0.0
  %123 = vmatpush1.msra.mxu0 0.0
  %124 = vmatprep.subr.mxu0 0.0
  %125 = vmatpush1.msra.mxu0 0.0
  %126 = vmatprep.subr.mxu0 0.0
  %127 = vmatpush1.msra.mxu0 0.0
  %128 = vmatprep.subr.mxu0 0.0
  %129 = vmatpush1.msra.mxu0 0.0
  %130 = vmatprep.subr.mxu0 0.0
  %131 = vmatpush1.msra.mxu0 0.0
  %132 = vmatprep.subr.mxu0 0.0
  %133 = vmatpush1.msra.mxu0 0.0
  %134 = vmatprep.subr.mxu0 0.0
  %135 = vmatpush1.msra.mxu0 0.0
  %136 = vmatprep.subr.mxu0 0.0
  %137 = vmatpush1.msra.mxu0 0.0
  %138 = vmatprep.subr.mxu0 0.0
  %139 = vmatpush1.msra.mxu0 0.0
  %140 = vmatprep.subr.mxu0 0.0
  %141 = vmatpush1.msra.mxu0 0.0
  %142 = vmatprep.subr.mxu0 0.0
  %143 = vmatpush1.msra.mxu0 0.0
  %144 = vmatprep.subr.mxu0 0.0
  %145 = vmatpush1.msra.mxu0 0.0
  %146 = vmatprep.subr.mxu0 0.0
  %147 = vmatpush1.msra.mxu0 0.0
  %148 = vmatprep.subr.mxu0 0.0
  %149 = vmatpush1.msra.mxu0 0.0
  %150 = vmatprep.subr.mxu0 0.0
  %151 = vmatpush1.msra.mxu0 0.0
  %152 = vmatprep.subr.mxu0 0.0
  %153 = vmatpush1.msra.mxu0 0.0
  %154 = vmatprep.subr.mxu0 0.0
  %155 = vmatpush1.msra.mxu0 0.0
  %156 = vmatprep.subr.mxu0 0.0
  %157 = vmatpush1.msra.mxu0 0.0
  %158 = vmatprep.subr.mxu0 0.0
  %159 = vmatpush1.msra.mxu0 0.0
  %160 = vmatprep.subr.mxu0 0.0
  %161 = vmatpush1.msra.mxu0 0.0
  %162 = vmatprep.subr.mxu0 0.0
  %163 = vmatpush1.msra.mxu0 0.0
  %164 = vmatprep.subr.mxu0 0.0
  %165 = vmatpush1.msra.mxu0 0.0
  %166 = vmatprep.subr.mxu0 0.0
  %167 = vmatpush1.msra.mxu0 0.0
  %168 = vmatprep.subr.mxu0 0.0
  %169 = vmatpush1.msra.mxu0 0.0
  %170 = vmatprep.subr.mxu0 0.0
  %171 = vmatpush1.msra.mxu0 0.0
  %172 = vmatprep.subr.mxu0 0.0
  %173 = vmatpush1.msra.mxu0 0.0
  %174 = vmatprep.subr.mxu0 0.0
  %175 = vmatpush1.msra.mxu0 0.0
  %176 = vmatprep.subr.mxu0 0.0
  %177 = vmatpush1.msra.mxu0 0.0
  %178 = vmatprep.subr.mxu0 0.0
  %179 = vmatpush1.msra.mxu0 0.0
  %180 = vmatprep.subr.mxu0 0.0
  %181 = vmatpush1.msra.mxu0 0.0
  %182 = vmatprep.mubr.f32.mxu0 0.0
  %183 = vmatmul.mubr.f32.gmra.mrb[0].mxu0 %v113
  %v184 = vpop.f32.mrb[0].mxu0
  %v185 = vadd.f32 %v110, %v184
  %v186 = vpop.f32.mrb[0].mxu0
  %187 = vdwg.mxu0
  %v188 = vpack.c.bf16 %v185, %v185
  %s189 = scalar_lea.vmem %s3, 4
  %190 = vst.msk [vmem:[%s189] sm:$0xf] %vm101, %v188
  %v191 = vld [vmem:[%s1] sm:$0xff]
  %s192 = scalar_lea.vmem %s0, 8
  %v193 = vld [vmem:[%s192] sm:$0xf]
  %v194 = vld [vmem:[%s2] sm:$0xff]
  %196 = vset.pattern.permute.xlu0 0
  %197 = vperm.xlu0 %196, %v194
  %v198 = vpop.permute.xlu0 %197
  %v201 = vsel %vm22, %v191, 0
  %v204 = vsel %vm26, %v193, 0
  %206 = vmatprep.subr.mxu0 0.0
  %207 = vmatpush1.msra.mxu0 %v204
  %208 = vmatprep.subr.mxu0 0.0
  %209 = vmatpush1.msra.mxu0 0.0
  %210 = vmatprep.subr.mxu0 0.0
  %211 = vmatpush1.msra.mxu0 0.0
  %212 = vmatprep.subr.mxu0 0.0
  %213 = vmatpush1.msra.mxu0 0.0
  %214 = vmatprep.subr.mxu0 0.0
  %215 = vmatpush1.msra.mxu0 0.0
  %216 = vmatprep.subr.mxu0 0.0
  %217 = vmatpush1.msra.mxu0 0.0
  %218 = vmatprep.subr.mxu0 0.0
  %219 = vmatpush1.msra.mxu0 0.0
  %220 = vmatprep.subr.mxu0 0.0
  %221 = vmatpush1.msra.mxu0 0.0
  %222 = vmatprep.subr.mxu0 0.0
  %223 = vmatpush1.msra.mxu0 0.0
  %224 = vmatprep.subr.mxu0 0.0
  %225 = vmatpush1.msra.mxu0 0.0
  %226 = vmatprep.subr.mxu0 0.0
  %227 = vmatpush1.msra.mxu0 0.0
  %228 = vmatprep.subr.mxu0 0.0
  %229 = vmatpush1.msra.mxu0 0.0
  %230 = vmatprep.subr.mxu0 0.0
  %231 = vmatpush1.msra.mxu0 0.0
  %232 = vmatprep.subr.mxu0 0.0
  %233 = vmatpush1.msra.mxu0 0.0
  %234 = vmatprep.subr.mxu0 0.0
  %235 = vmatpush1.msra.mxu0 0.0
  %236 = vmatprep.subr.mxu0 0.0
  %237 = vmatpush1.msra.mxu0 0.0
  %238 = vmatprep.subr.mxu0 0.0
  %239 = vmatpush1.msra.mxu0 0.0
  %240 = vmatprep.subr.mxu0 0.0
  %241 = vmatpush1.msra.mxu0 0.0
  %242 = vmatprep.subr.mxu0 0.0
  %243 = vmatpush1.msra.mxu0 0.0
  %244 = vmatprep.subr.mxu0 0.0
  %245 = vmatpush1.msra.mxu0 0.0
  %246 = vmatprep.subr.mxu0 0.0
  %247 = vmatpush1.msra.mxu0 0.0
  %248 = vmatprep.subr.mxu0 0.0
  %249 = vmatpush1.msra.mxu0 0.0
  %250 = vmatprep.subr.mxu0 0.0
  %251 = vmatpush1.msra.mxu0 0.0
  %252 = vmatprep.subr.mxu0 0.0
  %253 = vmatpush1.msra.mxu0 0.0
  %254 = vmatprep.subr.mxu0 0.0
  %255 = vmatpush1.msra.mxu0 0.0
  %256 = vmatprep.subr.mxu0 0.0
  %257 = vmatpush1.msra.mxu0 0.0
  %258 = vmatprep.subr.mxu0 0.0
  %259 = vmatpush1.msra.mxu0 0.0
  %260 = vmatprep.subr.mxu0 0.0
  %261 = vmatpush1.msra.mxu0 0.0
  %262 = vmatprep.subr.mxu0 0.0
  %263 = vmatpush1.msra.mxu0 0.0
  %264 = vmatprep.subr.mxu0 0.0
  %265 = vmatpush1.msra.mxu0 0.0
  %266 = vmatprep.subr.mxu0 0.0
  %267 = vmatpush1.msra.mxu0 0.0
  %268 = vmatprep.subr.mxu0 0.0
  %269 = vmatpush1.msra.mxu0 0.0
  %270 = vmatprep.mubr.f32.mxu0 0.0
  %271 = vmatmul.mubr.f32.gmra.mrb[0].mxu0 %v201
  %v272 = vpop.f32.mrb[0].mxu0
  %v273 = vadd.f32 %v198, %v272
  %v274 = vpop.f32.mrb[0].mxu0
  %275 = vdwg.mxu0
  %v276 = vpack.c.bf16 %v273, %v273
  %s277 = scalar_lea.vmem %s3, 8
  %278 = vst.msk [vmem:[%s277] sm:$0xf] %vm101, %v276
  %v279 = vld [vmem:[%s1] sm:$0xff]
  %s280 = scalar_lea.vmem %s0, 12
  %v281 = vld [vmem:[%s280] sm:$0xf]
  %v282 = vld [vmem:[%s2] sm:$0xff]
  %284 = vset.pattern.permute.xlu0 0
  %285 = vperm.xlu0 %284, %v282
  %v286 = vpop.permute.xlu0 %285
  %v289 = vsel %vm22, %v279, 0
  %v292 = vsel %vm26, %v281, 0
  %294 = vmatprep.subr.mxu0 0.0
  %295 = vmatpush1.msra.mxu0 %v292
  %296 = vmatprep.subr.mxu0 0.0
  %297 = vmatpush1.msra.mxu0 0.0
  %298 = vmatprep.subr.mxu0 0.0
  %299 = vmatpush1.msra.mxu0 0.0
  %300 = vmatprep.subr.mxu0 0.0
  %301 = vmatpush1.msra.mxu0 0.0
  %302 = vmatprep.subr.mxu0 0.0
  %303 = vmatpush1.msra.mxu0 0.0
  %304 = vmatprep.subr.mxu0 0.0
  %305 = vmatpush1.msra.mxu0 0.0
  %306 = vmatprep.subr.mxu0 0.0
  %307 = vmatpush1.msra.mxu0 0.0
  %308 = vmatprep.subr.mxu0 0.0
  %309 = vmatpush1.msra.mxu0 0.0
  %310 = vmatprep.subr.mxu0 0.0
  %311 = vmatpush1.msra.mxu0 0.0
  %312 = vmatprep.subr.mxu0 0.0
  %313 = vmatpush1.msra.mxu0 0.0
  %314 = vmatprep.subr.mxu0 0.0
  %315 = vmatpush1.msra.mxu0 0.0
  %316 = vmatprep.subr.mxu0 0.0
  %317 = vmatpush1.msra.mxu0 0.0
  %318 = vmatprep.subr.mxu0 0.0
  %319 = vmatpush1.msra.mxu0 0.0
  %320 = vmatprep.subr.mxu0 0.0
  %321 = vmatpush1.msra.mxu0 0.0
  %322 = vmatprep.subr.mxu0 0.0
  %323 = vmatpush1.msra.mxu0 0.0
  %324 = vmatprep.subr.mxu0 0.0
  %325 = vmatpush1.msra.mxu0 0.0
  %326 = vmatprep.subr.mxu0 0.0
  %327 = vmatpush1.msra.mxu0 0.0
  %328 = vmatprep.subr.mxu0 0.0
  %329 = vmatpush1.msra.mxu0 0.0
  %330 = vmatprep.subr.mxu0 0.0
  %331 = vmatpush1.msra.mxu0 0.0
  %332 = vmatprep.subr.mxu0 0.0
  %333 = vmatpush1.msra.mxu0 0.0
  %334 = vmatprep.subr.mxu0 0.0
  %335 = vmatpush1.msra.mxu0 0.0
  %336 = vmatprep.subr.mxu0 0.0
  %337 = vmatpush1.msra.mxu0 0.0
  %338 = vmatprep.subr.mxu0 0.0
  %339 = vmatpush1.msra.mxu0 0.0
  %340 = vmatprep.subr.mxu0 0.0
  %341 = vmatpush1.msra.mxu0 0.0
  %342 = vmatprep.subr.mxu0 0.0
  %343 = vmatpush1.msra.mxu0 0.0
  %344 = vmatprep.subr.mxu0 0.0
  %345 = vmatpush1.msra.mxu0 0.0
  %346 = vmatprep.subr.mxu0 0.0
  %347 = vmatpush1.msra.mxu0 0.0
  %348 = vmatprep.subr.mxu0 0.0
  %349 = vmatpush1.msra.mxu0 0.0
  %350 = vmatprep.subr.mxu0 0.0
  %351 = vmatpush1.msra.mxu0 0.0
  %352 = vmatprep.subr.mxu0 0.0
  %353 = vmatpush1.msra.mxu0 0.0
  %354 = vmatprep.subr.mxu0 0.0
  %355 = vmatpush1.msra.mxu0 0.0
  %356 = vmatprep.subr.mxu0 0.0
  %357 = vmatpush1.msra.mxu0 0.0
  %358 = vmatprep.mubr.f32.mxu0 0.0
  %359 = vmatmul.mubr.f32.gmra.mrb[0].mxu0 %v289
  %v360 = vpop.f32.mrb[0].mxu0
  %v361 = vadd.f32 %v286, %v360
  %v362 = vpop.f32.mrb[0].mxu0
  %363 = vdwg.mxu0
  %v364 = vpack.c.bf16 %v361, %v361
  %s365 = scalar_lea.vmem %s3, 12
  %366 = vst.msk [vmem:[%s365] sm:$0xf] %vm101, %v364
  %v367 = vld [vmem:[%s1] sm:$0xff]
  %s368 = scalar_lea.vmem %s0, 16
  %v369 = vld [vmem:[%s368] sm:$0xf]
  %v370 = vld [vmem:[%s2] sm:$0xff]
  %372 = vset.pattern.permute.xlu0 0
  %373 = vperm.xlu0 %372, %v370
  %v374 = vpop.permute.xlu0 %373
  %v377 = vsel %vm22, %v367, 0
  %v380 = vsel %vm26, %v369, 0
  %382 = vmatprep.subr.mxu0 0.0
  %383 = vmatpush1.msra.mxu0 %v380
  %384 = vmatprep.subr.mxu0 0.0
  %385 = vmatpush1.msra.mxu0 0.0
  %386 = vmatprep.subr.mxu0 0.0
  %387 = vmatpush1.msra.mxu0 0.0
  %388 = vmatprep.subr.mxu0 0.0
  %389 = vmatpush1.msra.mxu0 0.0
  %390 = vmatprep.subr.mxu0 0.0
  %391 = vmatpush1.msra.mxu0 0.0
  %392 = vmatprep.subr.mxu0 0.0
  %393 = vmatpush1.msra.mxu0 0.0
  %394 = vmatprep.subr.mxu0 0.0
  %395 = vmatpush1.msra.mxu0 0.0
  %396 = vmatprep.subr.mxu0 0.0
  %397 = vmatpush1.msra.mxu0 0.0
  %398 = vmatprep.subr.mxu0 0.0
  %399 = vmatpush1.msra.mxu0 0.0
  %400 = vmatprep.subr.mxu0 0.0
  %401 = vmatpush1.msra.mxu0 0.0
  %402 = vmatprep.subr.mxu0 0.0
  %403 = vmatpush1.msra.mxu0 0.0
  %404 = vmatprep.subr.mxu0 0.0
  %405 = vmatpush1.msra.mxu0 0.0
  %406 = vmatprep.subr.mxu0 0.0
  %407 = vmatpush1.msra.mxu0 0.0
  %408 = vmatprep.subr.mxu0 0.0
  %409 = vmatpush1.msra.mxu0 0.0
  %410 = vmatprep.subr.mxu0 0.0
  %411 = vmatpush1.msra.mxu0 0.0
  %412 = vmatprep.subr.mxu0 0.0
  %413 = vmatpush1.msra.mxu0 0.0
  %414 = vmatprep.subr.mxu0 0.0
  %415 = vmatpush1.msra.mxu0 0.0
  %416 = vmatprep.subr.mxu0 0.0
  %417 = vmatpush1.msra.mxu0 0.0
  %418 = vmatprep.subr.mxu0 0.0
  %419 = vmatpush1.msra.mxu0 0.0
  %420 = vmatprep.subr.mxu0 0.0
  %421 = vmatpush1.msra.mxu0 0.0
  %422 = vmatprep.subr.mxu0 0.0
  %423 = vmatpush1.msra.mxu0 0.0
  %424 = vmatprep.subr.mxu0 0.0
  %425 = vmatpush1.msra.mxu0 0.0
  %426 = vmatprep.subr.mxu0 0.0
  %427 = vmatpush1.msra.mxu0 0.0
  %428 = vmatprep.subr.mxu0 0.0
  %429 = vmatpush1.msra.mxu0 0.0
  %430 = vmatprep.subr.mxu0 0.0
  %431 = vmatpush1.msra.mxu0 0.0
  %432 = vmatprep.subr.mxu0 0.0
  %433 = vmatpush1.msra.mxu0 0.0
  %434 = vmatprep.subr.mxu0 0.0
  %435 = vmatpush1.msra.mxu0 0.0
  %436 = vmatprep.subr.mxu0 0.0
  %437 = vmatpush1.msra.mxu0 0.0
  %438 = vmatprep.subr.mxu0 0.0
  %439 = vmatpush1.msra.mxu0 0.0
  %440 = vmatprep.subr.mxu0 0.0
  %441 = vmatpush1.msra.mxu0 0.0
  %442 = vmatprep.subr.mxu0 0.0
  %443 = vmatpush1.msra.mxu0 0.0
  %444 = vmatprep.subr.mxu0 0.0
  %445 = vmatpush1.msra.mxu0 0.0
  %446 = vmatprep.mubr.f32.mxu0 0.0
  %447 = vmatmul.mubr.f32.gmra.mrb[0].mxu0 %v377
  %v448 = vpop.f32.mrb[0].mxu0
  %v449 = vadd.f32 %v374, %v448
  %v450 = vpop.f32.mrb[0].mxu0
  %451 = vdwg.mxu0
  %v452 = vpack.c.bf16 %v449, %v449
  %s453 = scalar_lea.vmem %s3, 16
  %454 = vst.msk [vmem:[%s453] sm:$0xf] %vm101, %v452
  %v455 = vld [vmem:[%s1] sm:$0xff]
  %s456 = scalar_lea.vmem %s0, 20
  %v457 = vld [vmem:[%s456] sm:$0xf]
  %v458 = vld [vmem:[%s2] sm:$0xff]
  %460 = vset.pattern.permute.xlu0 0
  %461 = vperm.xlu0 %460, %v458
  %v462 = vpop.permute.xlu0 %461
  %v465 = vsel %vm22, %v455, 0
  %v468 = vsel %vm26, %v457, 0
  %470 = vmatprep.subr.mxu0 0.0
  %471 = vmatpush1.msra.mxu0 %v468
  %472 = vmatprep.subr.mxu0 0.0
  %473 = vmatpush1.msra.mxu0 0.0
  %474 = vmatprep.subr.mxu0 0.0
  %475 = vmatpush1.msra.mxu0 0.0
  %476 = vmatprep.subr.mxu0 0.0
  %477 = vmatpush1.msra.mxu0 0.0
  %478 = vmatprep.subr.mxu0 0.0
  %479 = vmatpush1.msra.mxu0 0.0
  %480 = vmatprep.subr.mxu0 0.0
  %481 = vmatpush1.msra.mxu0 0.0
  %482 = vmatprep.subr.mxu0 0.0
  %483 = vmatpush1.msra.mxu0 0.0
  %484 = vmatprep.subr.mxu0 0.0
  %485 = vmatpush1.msra.mxu0 0.0
  %486 = vmatprep.subr.mxu0 0.0
  %487 = vmatpush1.msra.mxu0 0.0
  %488 = vmatprep.subr.mxu0 0.0
  %489 = vmatpush1.msra.mxu0 0.0
  %490 = vmatprep.subr.mxu0 0.0
  %491 = vmatpush1.msra.mxu0 0.0
  %492 = vmatprep.subr.mxu0 0.0
  %493 = vmatpush1.msra.mxu0 0.0
  %494 = vmatprep.subr.mxu0 0.0
  %495 = vmatpush1.msra.mxu0 0.0
  %496 = vmatprep.subr.mxu0 0.0
  %497 = vmatpush1.msra.mxu0 0.0
  %498 = vmatprep.subr.mxu0 0.0
  %499 = vmatpush1.msra.mxu0 0.0
  %500 = vmatprep.subr.mxu0 0.0
  %501 = vmatpush1.msra.mxu0 0.0
  %502 = vmatprep.subr.mxu0 0.0
  %503 = vmatpush1.msra.mxu0 0.0
  %504 = vmatprep.subr.mxu0 0.0
  %505 = vmatpush1.msra.mxu0 0.0
  %506 = vmatprep.subr.mxu0 0.0
  %507 = vmatpush1.msra.mxu0 0.0
  %508 = vmatprep.subr.mxu0 0.0
  %509 = vmatpush1.msra.mxu0 0.0
  %510 = vmatprep.subr.mxu0 0.0
  %511 = vmatpush1.msra.mxu0 0.0
  %512 = vmatprep.subr.mxu0 0.0
  %513 = vmatpush1.msra.mxu0 0.0
  %514 = vmatprep.subr.mxu0 0.0
  %515 = vmatpush1.msra.mxu0 0.0
  %516 = vmatprep.subr.mxu0 0.0
  %517 = vmatpush1.msra.mxu0 0.0
  %518 = vmatprep.subr.mxu0 0.0
  %519 = vmatpush1.msra.mxu0 0.0
  %520 = vmatprep.subr.mxu0 0.0
  %521 = vmatpush1.msra.mxu0 0.0
  %522 = vmatprep.subr.mxu0 0.0
  %523 = vmatpush1.msra.mxu0 0.0
  %524 = vmatprep.subr.mxu0 0.0
  %525 = vmatpush1.msra.mxu0 0.0
  %526 = vmatprep.subr.mxu0 0.0
  %527 = vmatpush1.msra.mxu0 0.0
  %528 = vmatprep.subr.mxu0 0.0
  %529 = vmatpush1.msra.mxu0 0.0
  %530 = vmatprep.subr.mxu0 0.0
  %531 = vmatpush1.msra.mxu0 0.0
  %532 = vmatprep.subr.mxu0 0.0
  %533 = vmatpush1.msra.mxu0 0.0
  %534 = vmatprep.mubr.f32.mxu0 0.0
  %535 = vmatmul.mubr.f32.gmra.mrb[0].mxu0 %v465
  %v536 = vpop.f32.mrb[0].mxu0
  %v537 = vadd.f32 %v462, %v536
  %v538 = vpop.f32.mrb[0].mxu0
  %539 = vdwg.mxu0
  %v540 = vpack.c.bf16 %v537, %v537
  %s541 = scalar_lea.vmem %s3, 20
  %542 = vst.msk [vmem:[%s541] sm:$0xf] %vm101, %v540
  %v543 = vld [vmem:[%s1] sm:$0xff]
  %s544 = scalar_lea.vmem %s0, 24
  %v545 = vld [vmem:[%s544] sm:$0xf]
  %v546 = vld [vmem:[%s2] sm:$0xff]
  %548 = vset.pattern.permute.xlu0 0
  %549 = vperm.xlu0 %548, %v546
  %v550 = vpop.permute.xlu0 %549
  %v553 = vsel %vm22, %v543, 0
  %v556 = vsel %vm26, %v545, 0
  %558 = vmatprep.subr.mxu0 0.0
  %559 = vmatpush1.msra.mxu0 %v556
  %560 = vmatprep.subr.mxu0 0.0
  %561 = vmatpush1.msra.mxu0 0.0
  %562 = vmatprep.subr.mxu0 0.0
  %563 = vmatpush1.msra.mxu0 0.0
  %564 = vmatprep.subr.mxu0 0.0
  %565 = vmatpush1.msra.mxu0 0.0
  %566 = vmatprep.subr.mxu0 0.0
  %567 = vmatpush1.msra.mxu0 0.0
  %568 = vmatprep.subr.mxu0 0.0
  %569 = vmatpush1.msra.mxu0 0.0
  %570 = vmatprep.subr.mxu0 0.0
  %571 = vmatpush1.msra.mxu0 0.0
  %572 = vmatprep.subr.mxu0 0.0
  %573 = vmatpush1.msra.mxu0 0.0
  %574 = vmatprep.subr.mxu0 0.0
  %575 = vmatpush1.msra.mxu0 0.0
  %576 = vmatprep.subr.mxu0 0.0
  %577 = vmatpush1.msra.mxu0 0.0
  %578 = vmatprep.subr.mxu0 0.0
  %579 = vmatpush1.msra.mxu0 0.0
  %580 = vmatprep.subr.mxu0 0.0
  %581 = vmatpush1.msra.mxu0 0.0
  %582 = vmatprep.subr.mxu0 0.0
  %583 = vmatpush1.msra.mxu0 0.0
  %584 = vmatprep.subr.mxu0 0.0
  %585 = vmatpush1.msra.mxu0 0.0
  %586 = vmatprep.subr.mxu0 0.0
  %587 = vmatpush1.msra.mxu0 0.0
  %588 = vmatprep.subr.mxu0 0.0
  %589 = vmatpush1.msra.mxu0 0.0
  %590 = vmatprep.subr.mxu0 0.0
  %591 = vmatpush1.msra.mxu0 0.0
  %592 = vmatprep.subr.mxu0 0.0
  %593 = vmatpush1.msra.mxu0 0.0
  %594 = vmatprep.subr.mxu0 0.0
  %595 = vmatpush1.msra.mxu0 0.0
  %596 = vmatprep.subr.mxu0 0.0
  %597 = vmatpush1.msra.mxu0 0.0
  %598 = vmatprep.subr.mxu0 0.0
  %599 = vmatpush1.msra.mxu0 0.0
  %600 = vmatprep.subr.mxu0 0.0
  %601 = vmatpush1.msra.mxu0 0.0
  %602 = vmatprep.subr.mxu0 0.0
  %603 = vmatpush1.msra.mxu0 0.0
  %604 = vmatprep.subr.mxu0 0.0
  %605 = vmatpush1.msra.mxu0 0.0
  %606 = vmatprep.subr.mxu0 0.0
  %607 = vmatpush1.msra.mxu0 0.0
  %608 = vmatprep.subr.mxu0 0.0
  %609 = vmatpush1.msra.mxu0 0.0
  %610 = vmatprep.subr.mxu0 0.0
  %611 = vmatpush1.msra.mxu0 0.0
  %612 = vmatprep.subr.mxu0 0.0
  %613 = vmatpush1.msra.mxu0 0.0
  %614 = vmatprep.subr.mxu0 0.0
  %615 = vmatpush1.msra.mxu0 0.0
  %616 = vmatprep.subr.mxu0 0.0
  %617 = vmatpush1.msra.mxu0 0.0
  %618 = vmatprep.subr.mxu0 0.0
  %619 = vmatpush1.msra.mxu0 0.0
  %620 = vmatprep.subr.mxu0 0.0
  %621 = vmatpush1.msra.mxu0 0.0
  %622 = vmatprep.mubr.f32.mxu0 0.0
  %623 = vmatmul.mubr.f32.gmra.mrb[0].mxu0 %v553
  %v624 = vpop.f32.mrb[0].mxu0
  %v625 = vadd.f32 %v550, %v624
  %v626 = vpop.f32.mrb[0].mxu0
  %627 = vdwg.mxu0
  %v628 = vpack.c.bf16 %v625, %v625
  %s629 = scalar_lea.vmem %s3, 24
  %630 = vst.msk [vmem:[%s629] sm:$0xf] %vm101, %v628
  %v631 = vld [vmem:[%s1] sm:$0xff]
  %s632 = scalar_lea.vmem %s0, 28
  %v633 = vld [vmem:[%s632] sm:$0xf]
  %v634 = vld [vmem:[%s2] sm:$0xff]
  %636 = vset.pattern.permute.xlu0 0
  %637 = vperm.xlu0 %636, %v634
  %v638 = vpop.permute.xlu0 %637
  %v641 = vsel %vm22, %v631, 0
  %v644 = vsel %vm26, %v633, 0
  %646 = vmatprep.subr.mxu0 0.0
  %647 = vmatpush1.msra.mxu0 %v644
  %648 = vmatprep.subr.mxu0 0.0
  %649 = vmatpush1.msra.mxu0 0.0
  %650 = vmatprep.subr.mxu0 0.0
  %651 = vmatpush1.msra.mxu0 0.0
  %652 = vmatprep.subr.mxu0 0.0
  %653 = vmatpush1.msra.mxu0 0.0
  %654 = vmatprep.subr.mxu0 0.0
  %655 = vmatpush1.msra.mxu0 0.0
  %656 = vmatprep.subr.mxu0 0.0
  %657 = vmatpush1.msra.mxu0 0.0
  %658 = vmatprep.subr.mxu0 0.0
  %659 = vmatpush1.msra.mxu0 0.0
  %660 = vmatprep.subr.mxu0 0.0
  %661 = vmatpush1.msra.mxu0 0.0
  %662 = vmatprep.subr.mxu0 0.0
  %663 = vmatpush1.msra.mxu0 0.0
  %664 = vmatprep.subr.mxu0 0.0
  %665 = vmatpush1.msra.mxu0 0.0
  %666 = vmatprep.subr.mxu0 0.0
  %667 = vmatpush1.msra.mxu0 0.0
  %668 = vmatprep.subr.mxu0 0.0
  %669 = vmatpush1.msra.mxu0 0.0
  %670 = vmatprep.subr.mxu0 0.0
  %671 = vmatpush1.msra.mxu0 0.0
  %672 = vmatprep.subr.mxu0 0.0
  %673 = vmatpush1.msra.mxu0 0.0
  %674 = vmatprep.subr.mxu0 0.0
  %675 = vmatpush1.msra.mxu0 0.0
  %676 = vmatprep.subr.mxu0 0.0
  %677 = vmatpush1.msra.mxu0 0.0
  %678 = vmatprep.subr.mxu0 0.0
  %679 = vmatpush1.msra.mxu0 0.0
  %680 = vmatprep.subr.mxu0 0.0
  %681 = vmatpush1.msra.mxu0 0.0
  %682 = vmatprep.subr.mxu0 0.0
  %683 = vmatpush1.msra.mxu0 0.0
  %684 = vmatprep.subr.mxu0 0.0
  %685 = vmatpush1.msra.mxu0 0.0
  %686 = vmatprep.subr.mxu0 0.0
  %687 = vmatpush1.msra.mxu0 0.0
  %688 = vmatprep.subr.mxu0 0.0
  %689 = vmatpush1.msra.mxu0 0.0
  %690 = vmatprep.subr.mxu0 0.0
  %691 = vmatpush1.msra.mxu0 0.0
  %692 = vmatprep.subr.mxu0 0.0
  %693 = vmatpush1.msra.mxu0 0.0
  %694 = vmatprep.subr.mxu0 0.0
  %695 = vmatpush1.msra.mxu0 0.0
  %696 = vmatprep.subr.mxu0 0.0
  %697 = vmatpush1.msra.mxu0 0.0
  %698 = vmatprep.subr.mxu0 0.0
  %699 = vmatpush1.msra.mxu0 0.0
  %700 = vmatprep.subr.mxu0 0.0
  %701 = vmatpush1.msra.mxu0 0.0
  %702 = vmatprep.subr.mxu0 0.0
  %703 = vmatpush1.msra.mxu0 0.0
  %704 = vmatprep.subr.mxu0 0.0
  %705 = vmatpush1.msra.mxu0 0.0
  %706 = vmatprep.subr.mxu0 0.0
  %707 = vmatpush1.msra.mxu0 0.0
  %708 = vmatprep.subr.mxu0 0.0
  %709 = vmatpush1.msra.mxu0 0.0
  %710 = vmatprep.mubr.f32.mxu0 0.0
  %711 = vmatmul.mubr.f32.gmra.mrb[0].mxu0 %v641
  %v712 = vpop.f32.mrb[0].mxu0
  %v713 = vadd.f32 %v638, %v712
  %v714 = vpop.f32.mrb[0].mxu0
  %715 = vdwg.mxu0
  %v716 = vpack.c.bf16 %v713, %v713
  %s717 = scalar_lea.vmem %s3, 28
  %718 = vst.msk [vmem:[%s717] sm:$0xf] %vm101, %v716
  // Predicated region
  $region14: #{up_forward.3} parent=0 // pred_check
    _
  $region15: #{up_forward.3} parent=0 // pred_check_branch
    %720 = sbr.rel (0) target = $region17
  $region16: #{up_forward.3} parent=0 // pred_region
    _
  $region17: #{up_forward.3} parent=0 // pred_fallthru
    _
  // Predicated region
  $region18: #{up_forward.3} parent=0 // pred_check
    _
  $region19: #{up_forward.3} parent=0 // pred_check_branch
    %722 = sbr.rel (0) target = $region21
  $region20: #{up_forward.3} parent=0 // pred_region
    _
  $region21: #{up_forward.3} parent=0 // pred_fallthru
    _

// kernel: up_forward.4
$region0: #{up_forward.4}
  #allocation0 [shape = 'u32[]', space=smem, size = 0x4, offset = 0x4, fixed_abs, tag = 'smem constant byte address 0x4 - core index']
  #allocation1 [shape = 'u32[144,128]{1,0:T(1,128)}', space=vmem, size = 0x12000, scoped, tag = 'internal scratch']
  #allocation2 [shape = 'bf16[4,290]{1,0:T(4,128)(2,1)}', space=vmem, size = 0xc00, scoped, tag = 'scratch operand']
  %s0 = inlined_call_operand.vmem [shape: f32[8,2,256], index: 0, kind: input, shape index: {}]
  %s1 = inlined_call_operand.vmem [shape: bf16[8,2,256], index: 1, kind: input, shape index: {}]
  %s2 = inlined_call_operand.vmem [shape: bf16[9,16,4], index: 2, kind: input, shape index: {}]
  %s3 = inlined_call_operand.vmem [shape: bf16[2,256], index: 3, kind: input, shape index: {}]
  %s4 = inlined_call_operand.vmem [shape: bf16[8,16,256], index: 4, kind: output, shape index: {}]
  %s5 = sld [smem:[#allocation0]]
  $region49: #{up_forward.4} parent=0
    _
  %s7 = ssub.s32 1, %s5
  %s8 = scalar_select 0, %s7, %s5
  loop: start=0, step=1, limit=10
  $region2: #{up_forward.4} parent=0 // loop_pre_header
    _
  $region3: #{up_forward.4} parent=0 // loop_header
    %s10 = sphi 0, %s14
    %p11 = scmp.ge.s32.totalorder %s10, 10
    %s20 = sphi 0, %s22
    %s23 = sphi 0, %s20
    %s24 = sphi 0, %s23
    %s40 = sphi 0, %s24
    %s46 = sphi 0, %s48
    %s49 = sphi 0, %s46
    %s50 = sphi 0, %s49
    %s66 = sphi 0, %s50
    %s70 = sphi 0, %s70
    %s72 = sphi 0, %s70
    %s73 = sphi 0, %s72
    %s87 = sphi 0, %s73
    %s91 = sphi 0, %s91
    %s93 = sphi 0, %s91
    %s94 = sphi 0, %s93
    %s108 = sphi 0, %s94
    %s114 = sphi 0, %s116
    %s117 = sphi 0, %s114
    %s118 = sphi 0, %s117
    %s134 = sphi 0, %s118
  $region4: #{up_forward.4} parent=0 // loop_header_branch
    %13 = sbr.rel (%p11) target = $region8
  $region5: #{up_forward.4} parent=0 // loop_body
    %s15 = ssub.s32 %s10, 1
    %s16 = ssub.s32 %s10, 2
    %s17 = sadd.s32 %s10, 1
    %s18 = ssub.s32 %s10, %s17
    %p19 = scmp.eq.s32.totalorder %s18, 0
    %s21 = sadd.s32 %s20, 1
    %s22 = scalar_select %p19, %s20, %s21
    %p25 = pneg %p19
    %p26 = scmp.eq.s32.totalorder %s10, 7
    %p27 = por %p25, %p26
    %p28 = scmp.ne.s32.totalorder %s20, %s23
    %p29 = scmp.eq.s32.totalorder %s10, 0
    %p30 = por %p28, %p29
    %p31 = scmp.ne.s32.totalorder %s20, %s23
    %p32 = scmp.eq.s32.totalorder %s15, 7
    %p33 = por %p31, %p32
    %p34 = scmp.ne.s32.totalorder %s23, %s24
    %p35 = scmp.eq.s32.totalorder %s15, 0
    %p36 = por %p34, %p35
    %p37 = scmp.ne.s32.totalorder %s23, %s24
    %p38 = scmp.eq.s32.totalorder %s16, 7
    %p39 = por %p37, %p38
    %p41 = scmp.ne.s32.totalorder %s24, %s40
    %p42 = scmp.eq.s32.totalorder %s16, 0
    %p43 = por %p41, %p42
    %s44 = ssub.s32 %s10, %s17
    %p45 = scmp.eq.s32.totalorder %s44, 0
    %s47 = sadd.s32 %s46, 1
    %s48 = scalar_select %p45, %s46, %s47
    %p51 = pneg %p45
    %p52 = scmp.eq.s32.totalorder %s10, 7
    %p53 = por %p51, %p52
    %p54 = scmp.ne.s32.totalorder %s46, %s49
    %p55 = scmp.eq.s32.totalorder %s10, 0
    %p56 = por %p54, %p55
    %p57 = scmp.ne.s32.totalorder %s46, %s49
    %p58 = scmp.eq.s32.totalorder %s15, 7
    %p59 = por %p57, %p58
    %p60 = scmp.ne.s32.totalorder %s49, %s50
    %p61 = scmp.eq.s32.totalorder %s15, 0
    %p62 = por %p60, %p61
    %p63 = scmp.ne.s32.totalorder %s49, %s50
    %p64 = scmp.eq.s32.totalorder %s16, 7
    %p65 = por %p63, %p64
    %p67 = scmp.ne.s32.totalorder %s50, %s66
    %p68 = scmp.eq.s32.totalorder %s16, 0
    %p69 = por %p67, %p68
    %s71 = sadd.s32 %s70, 1
    %p74 = scmp.eq.s32.totalorder %s10, 7
    %p75 = scmp.ne.s32.totalorder %s70, %s72
    %p76 = scmp.eq.s32.totalorder %s10, 0
    %p77 = por %p75, %p76
    %p78 = scmp.ne.s32.totalorder %s70, %s72
    %p79 = scmp.eq.s32.totalorder %s15, 7
    %p80 = por %p78, %p79
    %p81 = scmp.ne.s32.totalorder %s72, %s73
    %p82 = scmp.eq.s32.totalorder %s15, 0
    %p83 = por %p81, %p82
    %p84 = scmp.ne.s32.totalorder %s72, %s73
    %p85 = scmp.eq.s32.totalorder %s16, 7
    %p86 = por %p84, %p85
    %p88 = scmp.ne.s32.totalorder %s73, %s87
    %p89 = scmp.eq.s32.totalorder %s16, 0
    %p90 = por %p88, %p89
    %s92 = sadd.s32 %s91, 1
    %p95 = scmp.eq.s32.totalorder %s10, 7
    %p96 = scmp.ne.s32.totalorder %s91, %s93
    %p97 = scmp.eq.s32.totalorder %s10, 0
    %p98 = por %p96, %p97
    %p99 = scmp.ne.s32.totalorder %s91, %s93
    %p100 = scmp.eq.s32.totalorder %s15, 7
    %p101 = por %p99, %p100
    %p102 = scmp.ne.s32.totalorder %s93, %s94
    %p103 = scmp.eq.s32.totalorder %s15, 0
    %p104 = por %p102, %p103
    %p105 = scmp.ne.s32.totalorder %s93, %s94
    %p106 = scmp.eq.s32.totalorder %s16, 7
    %p107 = por %p105, %p106
    %p109 = scmp.ne.s32.totalorder %s94, %s108
    %p110 = scmp.eq.s32.totalorder %s16, 0
    %p111 = por %p109, %p110
    %s112 = ssub.s32 %s10, %s17
    %p113 = scmp.eq.s32.totalorder %s112, 0
    %s115 = sadd.s32 %s114, 1
    %s116 = scalar_select %p113, %s114, %s115
    %p119 = pneg %p113
    %p120 = scmp.eq.s32.totalorder %s10, 7
    %p121 = por %p119, %p120
    %p122 = scmp.ne.s32.totalorder %s114, %s117
    %p123 = scmp.eq.s32.totalorder %s10, 0
    %p124 = por %p122, %p123
    %p125 = scmp.ne.s32.totalorder %s114, %s117
    %p126 = scmp.eq.s32.totalorder %s15, 7
    %p127 = por %p125, %p126
    %p128 = scmp.ne.s32.totalorder %s117, %s118
    %p129 = scmp.eq.s32.totalorder %s15, 0
    %p130 = por %p128, %p129
    %p131 = scmp.ne.s32.totalorder %s117, %s118
    %p132 = scmp.eq.s32.totalorder %s16, 7
    %p133 = por %p131, %p132
    %p135 = scmp.ne.s32.totalorder %s118, %s134
    %p136 = scmp.eq.s32.totalorder %s16, 0
    %p137 = por %p135, %p136
    %p138 = scmp.le.s32.totalorder 1, %s10
    %p139 = scmp.lt.s32.totalorder %s10, 9
    %p140 = pnand %p138, %p139
    %p141 = pneg %p140
    // Predicated region
    $region9: #{up_forward.4} parent=5 // pred_check
      _
    $region10: #{up_forward.4} parent=5 // pred_check_branch
      %143 = sbr.rel (%p140) target = $region12
    $region11: #{up_forward.4} parent=5 // pred_region
      %s144 = ssub.s32 %s10, 1
      // Predicated region
      $region13: #{up_forward.4} parent=11 // pred_check
        %p145 = pneg %p83
      $region14: #{up_forward.4} parent=11 // pred_check_branch
        %147 = sbr.rel (%p145) target = $region16
      $region15: #{up_forward.4} parent=11 // pred_region
        _
      $region16: #{up_forward.4} parent=11 // pred_fallthru
        _
      // Predicated region
      $region17: #{up_forward.4} parent=11 // pred_check
        %p148 = pneg %p104
      $region18: #{up_forward.4} parent=11 // pred_check_branch
        %150 = sbr.rel (%p148) target = $region20
      $region19: #{up_forward.4} parent=11 // pred_region
        _
      $region20: #{up_forward.4} parent=11 // pred_fallthru
        _
    $region12: #{up_forward.4} parent=5 // pred_fallthru
      _
    %p151 = scmp.lt.s32.totalorder %s10, 8
    // Predicated region
    $region21: #{up_forward.4} parent=5 // pred_check
      %p152 = pneg %p151
    $region22: #{up_forward.4} parent=5 // pred_check_branch
      %154 = sbr.rel (%p152) target = $region24
    $region23: #{up_forward.4} parent=5 // pred_region
      // Predicated region
      $region25: #{up_forward.4} parent=23 // pred_check
        %p155 = pneg %p30
      $region26: #{up_forward.4} parent=23 // pred_check_branch
        %157 = sbr.rel (%p155) target = $region28
      $region27: #{up_forward.4} parent=23 // pred_region
        %p158 = scmp.lt.s32.totalorder %s10, 7
        %s159 = scalar_select %p158, %s10, 7
        %s160 = smul.addr %s159, 2
        %s161 = smul.addr %s160, 2
        %s162 = scalar_lea.vmem %s0, %s161
      $region28: #{up_forward.4} parent=23 // pred_fallthru
        _
      // Predicated region
      $region29: #{up_forward.4} parent=23 // pred_check
        %p163 = pneg %p56
      $region30: #{up_forward.4} parent=23 // pred_check_branch
        %165 = sbr.rel (%p163) target = $region32
      $region31: #{up_forward.4} parent=23 // pred_region
        %p166 = scmp.lt.s32.totalorder %s10, 7
        %s167 = scalar_select %p166, %s10, 7
        %s168 = smul.addr %s167, 2
        %s169 = scalar_lea.vmem %s1, %s168
      $region32: #{up_forward.4} parent=23 // pred_fallthru
        _
    $region24: #{up_forward.4} parent=5 // pred_fallthru
      _
    %p170 = scmp.le.s32.totalorder 1, %s10
    %p171 = scmp.lt.s32.totalorder %s10, 9
    %p172 = pnand %p170, %p171
    %p173 = pneg %p172
    // Predicated region
    $region33: #{up_forward.4} parent=5 // pred_check
      _
    $region34: #{up_forward.4} parent=5 // pred_check_branch
      %175 = sbr.rel (%p172) target = $region36
    $region35: #{up_forward.4} parent=5 // pred_region
      %s176 = ssub.s32 %s10, 1
      %p177 = scmp.lt.s32.totalorder %s15, 7
      %s178 = scalar_select %p177, %s15, 7
      %s179 = smul.addr %s178, 2
      %s180 = smul.addr %s179, 2
      %s181 = scalar_lea.vmem %s0, %s180
      %p182 = pneg %p36
      %p183 = pneg %p33
      %p184 = scmp.lt.s32.totalorder %s15, 7
      %s185 = scalar_select %p184, %s15, 7
      %s186 = smul.addr %s185, 2
      %s187 = scalar_lea.vmem %s1, %s186
      %p188 = pneg %p62
      %p189 = pneg %p59
      %p190 = pneg %p83
      %p191 = pneg %p80
      %p192 = pneg %p104
      %p193 = pneg %p101
      %p194 = pneg %p130
      %p195 = pneg %p127
      %p196 = scmp.lt.s32.totalorder %s15, 7
      %s197 = scalar_select %p196, %s15, 7
      %s198 = smul.addr %s197, 4
      %s199 = smul.addr %s198, 4
      %s200 = scalar_lea.vmem %s4, %s199
      %p201 = scmp.lt.s32.totalorder %s15, 7
      %s202 = scalar_select %p201, %s15, 7
      %s203 = smul.addr %s202, 2
      %s204 = smul.addr %s203, 2
      %s205 = scalar_lea.vmem %s0, %s204
      %p206 = scmp.lt.s32.totalorder %s15, 7
      %s207 = scalar_select %p206, %s15, 7
      %s208 = smul.addr %s207, 2
      %s209 = scalar_lea.vmem %s1, %s208
      %p210 = scmp.lt.s32.totalorder %s15, 7
      %s211 = scalar_select %p210, %s15, 7
      %s212 = smul.addr %s211, 4
      %s213 = smul.addr %s212, 4
      %s214 = scalar_lea.vmem %s4, %s213
      %vm216 = vcmask 132096
      %217 = vst.msk [vmem:[#allocation2] sm:$0x3] %vm216, 0
      %vm218 = vcmask 271496
      %219 = vst.msk [vmem:[#allocation2 + $0x4] sm:$0x3] %vm218, 0
      %v220 = vld [vmem:[%s205] sm:$0xf]
      %v223 = vunpack.c.l.s4 1983009808
      %v224 = vunpack.c.0.s8 %v223
      %v225 = vlaneseq
      %v226 = vshrl.u32 %v225, 7
      %v227 = vsub.s32 %v224, %v226
      %v228 = vrot.slane %v220, %v227
      %v229 = vcombine.high %v228, %v228
      %v232 = vpack.c.bf16 %v228, %v228
      %v233 = vpack.c.bf16 %v229, %v229
      %v236 = vcombine.low %v232, %v233
      %v238 = vunpack.c.l.s4 1983009808
      %v239 = vunpack.c.0.s8 %v238
      %v240 = vlaneseq
      %v241 = vshrl.u32 %v240, 7
      %v242 = vsub.s32 %v239, %v241
      %v243 = vrot.slane %v236, %v242
      %244 = vrot.lane.b32.xlu0 %v243, 17
      %v245 = vpop.permute.xlu0 %244
      %v246 = vrot.slane %v245, 6
      %vm247 = vcmask 138240
      %v248 = vsel %vm247, %v246, %v245
      %vm250 = vcmask 1040520
      %vm251 = vcmask 1042434
      %vm252 = vmor %vm251, %vm250
      %vm253 = vcmask 135172
      %vm254 = vmor %vm253, %vm252
      %255 = vst.msk [vmem:[#allocation2] sm:$0x15] %vm254, %v248
      %v256 = vld [vmem:[%s209] sm:$0x3]
      %v258 = vcombine.low %v256, %v256
      %v260 = vunpack.c.l.s4 1935823168
      %v261 = vunpack.c.0.s8 %v260
      %v262 = vlaneseq
      %v263 = vshrl.u32 %v262, 7
      %v264 = vsub.s32 %v261, %v263
      %v265 = vrot.slane %v258, %v264
      %266 = vrot.lane.b32.xlu0 %v265, 17
      %v267 = vpop.permute.xlu0 %266
      %v268 = vrot.slane %v267, 6
      %v269 = vsel %vm247, %v268, %v267
      %vm271 = vcmask 1041545
      %vm272 = vcmask 1043459
      %vm273 = vmor %vm272, %vm271
      %vm274 = vcmask 136197
      %vm275 = vmor %vm274, %vm273
      %276 = vst.msk [vmem:[#allocation2] sm:$0x2a] %vm275, %v269
      %v277 = vld [vmem:[#allocation2] sm:$0xf]
      %v278 = vld [vmem:[%s3] sm:$0x3]
      %v281 = vunpack.c.l.s4 1966171168
      %v282 = vunpack.c.0.s8 %v281
      %v283 = vlaneseq
      %v284 = vshrl.u32 %v283, 7
      %v285 = vsub.s32 %v282, %v284
      %v286 = vrot.slane %v278, %v285
      %v287 = vcombine.high %v286, %v286
      %v289 = vunpack.c.l.s4 1966171168
      %v290 = vunpack.c.0.s8 %v289
      %v291 = vlaneseq
      %v292 = vshrl.u32 %v291, 7
      %v293 = vsub.s32 %v290, %v292
      %v294 = vrot.slane %v286, %v293
      %v296 = vunpack.c.l.s4 1966171168
      %v297 = vunpack.c.0.s8 %v296
      %v298 = vlaneseq
      %v299 = vshrl.u32 %v298, 7
      %v300 = vsub.s32 %v297, %v299
      %v301 = vrot.slane %v287, %v300
      %v303 = vpack.i.b16 %v294, %v294
      %v305 = vlaneseq
      %v306 = vshrl.u32 %v305, 7
      %v307 = vsub.s32 0, %v306
      %v308 = vrot.slane %v303, %v307
      %v310 = vpack.i.b16 %v301, %v301
      %v312 = vlaneseq
      %v313 = vshrl.u32 %v312, 7
      %v314 = vsub.s32 0, %v313
      %v315 = vrot.slane %v310, %v314
      %v318 = vcombine.low %v308, %v315
      %v320 = vunpack.c.l.s4 1983009808
      %v321 = vunpack.c.0.s8 %v320
      %v322 = vlaneseq
      %v323 = vshrl.u32 %v322, 7
      %v324 = vsub.s32 %v321, %v323
      %v325 = vrot.slane %v318, %v324
      %v327 = vmul.bf16 %v277, %v325
      %v328 = vld [vmem:[%s2] sm:$0xf]
      %v329 = vld [vmem:[%s2 + $0x4] sm:$0xf]
      %v330 = vld [vmem:[#allocation2] sm:$0x3f]
      %s331 = scalar_lea.vmem %s2, 8
      %v332 = vld [vmem:[%s331] sm:$0xf]
      %v333 = vld [vmem:[%s331 + $0x4] sm:$0xf]
      %v336 = vunpack.c.l.b16 %v332
      %v337 = vunpack.c.l.b16 %v333
      %v338 = vpack.c.b16 %v337, %v336
      %v340 = vcombine.high %v330, %v330
      %v342 = vunpack.c.l.s4 1983009808
      %v343 = vunpack.c.0.s8 %v342
      %v344 = vlaneseq
      %v345 = vshrl.u32 %v344, 7
      %v346 = vsub.s32 %v343, %v345
      %v347 = vrot.slane %v330, %v346
      %v349 = vunpack.c.l.s4 1983009808
      %v350 = vunpack.c.0.s8 %v349
      %v351 = vlaneseq
      %v352 = vshrl.u32 %v351, 7
      %v353 = vsub.s32 %v350, %v352
      %v354 = vrot.slane %v340, %v353
      %v355 = vcombine.high %v347, %v347
      %356 = vrot.lane.b32.xlu0 %v347, 127
      %v357 = vpop.permute.xlu0 %356
      %358 = vrot.lane.b32.xlu0 %v355, 127
      %v359 = vpop.permute.xlu0 %358
      %360 = vrot.lane.b32.xlu0 %v354, 127
      %v361 = vpop.permute.xlu0 %360
      %vm362 = vcmask 1039360
      %v363 = vsel %vm362, %v357, %v359
      %v364 = vsel %vm362, %v359, %v361
      %vm365 = vcmask 31744
      %v367 = vsel %vm365, %v338, 0
      %vm369 = vcmask 1041408
      %v371 = vsel %vm369, %v363, 0
      %v374 = vsel %vm369, %v364, 0
      %376 = vmatprep.subr.bf16.mxu0 %v374
      %377 = vmatpush1.bf16.msra.mxu0 %v371
      %378 = vmatprep.subr.bf16.mxu0 0
      %379 = vmatpush1.bf16.msra.mxu0 0
      %380 = vmatprep.subr.bf16.mxu0 0
      %381 = vmatpush1.bf16.msra.mxu0 0
      %382 = vmatprep.subr.bf16.mxu0 0
      %383 = vmatpush1.bf16.msra.mxu0 0
      %384 = vmatprep.subr.bf16.mxu0 0
      %385 = vmatpush1.bf16.msra.mxu0 0
      %386 = vmatprep.subr.bf16.mxu0 0
      %387 = vmatpush1.bf16.msra.mxu0 0
      %388 = vmatprep.subr.bf16.mxu0 0
      %389 = vmatpush1.bf16.msra.mxu0 0
      %390 = vmatprep.subr.bf16.mxu0 0
      %391 = vmatpush1.bf16.msra.mxu0 0
      %392 = vmatprep.subr.bf16.mxu0 0
      %393 = vmatpush1.bf16.msra.mxu0 0
      %394 = vmatprep.subr.bf16.mxu0 0
      %395 = vmatpush1.bf16.msra.mxu0 0
      %396 = vmatprep.subr.bf16.mxu0 0
      %397 = vmatpush1.bf16.msra.mxu0 0
      %398 = vmatprep.subr.bf16.mxu0 0
      %399 = vmatpush1.bf16.msra.mxu0 0
      %400 = vmatprep.subr.bf16.mxu0 0
      %401 = vmatpush1.bf16.msra.mxu0 0
      %402 = vmatprep.subr.bf16.mxu0 0
      %403 = vmatpush1.bf16.msra.mxu0 0
      %404 = vmatprep.subr.bf16.mxu0 0
      %405 = vmatpush1.bf16.msra.mxu0 0
      %406 = vmatprep.subr.bf16.mxu0 0
      %407 = vmatpush1.bf16.msra.mxu0 0
      %408 = vmatprep.mubr.bf16.mxu0 0
      %409 = vmatmul.mubr.bf16.gmra.mrb[0].mxu0 %v367
      %v410 = vpop.f32.mrb[0].mxu0
      %v411 = vadd.f32 0.0, %v410
      %v412 = vpop.f32.mrb[0].mxu0
      %v413 = vadd.f32 0.0, %v412
      %v414 = vpop.f32.mrb[0].mxu0
      %v415 = vadd.f32 0.0, %v414
      %v416 = vpop.f32.mrb[0].mxu0
      %v417 = vadd.f32 0.0, %v416
      %418 = vdwg.mxu0
      %v421 = vunpack.c.l.b16 %v328
      %v422 = vunpack.c.l.b16 %v329
      %v423 = vpack.c.b16 %v422, %v421
      %v426 = vunpack.c.l.s4 1983009808
      %v427 = vunpack.c.0.s8 %v426
      %v428 = vlaneseq
      %v429 = vshrl.u32 %v428, 7
      %v430 = vsub.s32 %v427, %v429
      %v431 = vrot.slane %v327, %v430
      %v432 = vcombine.high %v431, %v431
      %v434 = vsel %vm365, %v423, 0
      %v437 = vsel %vm369, %v431, 0
      %v440 = vsel %vm369, %v432, 0
      %442 = vmatprep.subr.bf16.mxu0 %v440
      %443 = vmatpush1.bf16.msra.mxu0 %v437
      %444 = vmatprep.subr.bf16.mxu0 0
      %445 = vmatpush1.bf16.msra.mxu0 0
      %446 = vmatprep.subr.bf16.mxu0 0
      %447 = vmatpush1.bf16.msra.mxu0 0
      %448 = vmatprep.subr.bf16.mxu0 0
      %449 = vmatpush1.bf16.msra.mxu0 0
      %450 = vmatprep.subr.bf16.mxu0 0
      %451 = vmatpush1.bf16.msra.mxu0 0
      %452 = vmatprep.subr.bf16.mxu0 0
      %453 = vmatpush1.bf16.msra.mxu0 0
      %454 = vmatprep.subr.bf16.mxu0 0
      %455 = vmatpush1.bf16.msra.mxu0 0
      %456 = vmatprep.subr.bf16.mxu0 0
      %457 = vmatpush1.bf16.msra.mxu0 0
      %458 = vmatprep.subr.bf16.mxu0 0
      %459 = vmatpush1.bf16.msra.mxu0 0
      %460 = vmatprep.subr.bf16.mxu0 0
      %461 = vmatpush1.bf16.msra.mxu0 0
      %462 = vmatprep.subr.bf16.mxu0 0
      %463 = vmatpush1.bf16.msra.mxu0 0
      %464 = vmatprep.subr.bf16.mxu0 0
      %465 = vmatpush1.bf16.msra.mxu0 0
      %466 = vmatprep.subr.bf16.mxu0 0
      %467 = vmatpush1.bf16.msra.mxu0 0
      %468 = vmatprep.subr.bf16.mxu0 0
      %469 = vmatpush1.bf16.msra.mxu0 0
      %470 = vmatprep.subr.bf16.mxu0 0
      %471 = vmatpush1.bf16.msra.mxu0 0
      %472 = vmatprep.subr.bf16.mxu0 0
      %473 = vmatpush1.bf16.msra.mxu0 0
      %474 = vmatprep.mubr.bf16.mxu0 0
      %475 = vmatmul.mubr.bf16.gmra.mrb[0].mxu0 %v434
      %v476 = vpop.f32.mrb[0].mxu0
      %v477 = vadd.f32 %v411, %v476
      %v478 = vpop.f32.mrb[0].mxu0
      %v479 = vadd.f32 %v413, %v478
      %v480 = vpop.f32.mrb[0].mxu0
      %v481 = vadd.f32 %v415, %v480
      %v482 = vpop.f32.mrb[0].mxu0
      %v483 = vadd.f32 %v417, %v482
      %484 = vdwg.mxu0
      %v485 = vld [vmem:[#allocation2] sm:$0x3f]
      %v486 = vld [vmem:[%s3] sm:$0x3]
      %v489 = vunpack.c.l.s4 1966171168
      %v490 = vunpack.c.0.s8 %v489
      %v491 = vlaneseq
      %v492 = vshrl.u32 %v491, 7
      %v493 = vsub.s32 %v490, %v492
      %v494 = vrot.slane %v486, %v493
      %v495 = vcombine.high %v494, %v494
      %v497 = vunpack.c.l.s4 1966171168
      %v498 = vunpack.c.0.s8 %v497
      %v499 = vlaneseq
      %v500 = vshrl.u32 %v499, 7
      %v501 = vsub.s32 %v498, %v500
      %v502 = vrot.slane %v494, %v501
      %v504 = vunpack.c.l.s4 1966171168
      %v505 = vunpack.c.0.s8 %v504
      %v506 = vlaneseq
      %v507 = vshrl.u32 %v506, 7
      %v508 = vsub.s32 %v505, %v507
      %v509 = vrot.slane %v495, %v508
      %v511 = vshrl.u32 %v502, 16
      %v512 = vpack.i.b16 %v511, %v511
      %v514 = vlaneseq
      %v515 = vshrl.u32 %v514, 7
      %v516 = vsub.s32 0, %v515
      %v517 = vrot.slane %v512, %v516
      %v519 = vshrl.u32 %v509, 16
      %v520 = vpack.i.b16 %v519, %v519
      %v522 = vlaneseq
      %v523 = vshrl.u32 %v522, 7
      %v524 = vsub.s32 0, %v523
      %v525 = vrot.slane %v520, %v524
      %v528 = vcombine.low %v517, %v525
      %v530 = vunpack.c.l.s4 1983009808
      %v531 = vunpack.c.0.s8 %v530
      %v532 = vlaneseq
      %v533 = vshrl.u32 %v532, 7
      %v534 = vsub.s32 %v531, %v533
      %v535 = vrot.slane %v528, %v534
      %536 = vrot.lane.b32.xlu0 %v535, 2
      %v537 = vpop.permute.xlu0 %536
      %v538 = vrot.slane %v537, 6
      %vm539 = vcmask 15360
      %v540 = vsel %vm539, %v538, %v537
      %v542 = vmul.bf16 %v485, %v540
      %s543 = scalar_lea.vmem %s2, 16
      %v544 = vld [vmem:[%s543] sm:$0xf]
      %v545 = vld [vmem:[%s543 + $0x4] sm:$0xf]
      %v548 = vunpack.c.l.b16 %v544
      %v549 = vunpack.c.l.b16 %v545
      %v550 = vpack.c.b16 %v549, %v548
      %v552 = vcombine.high %v542, %v542
      %v554 = vunpack.c.l.s4 1983009808
      %v555 = vunpack.c.0.s8 %v554
      %v556 = vlaneseq
      %v557 = vshrl.u32 %v556, 7
      %v558 = vsub.s32 %v555, %v557
      %v559 = vrot.slane %v542, %v558
      %v561 = vunpack.c.l.s4 1983009808
      %v562 = vunpack.c.0.s8 %v561
      %v563 = vlaneseq
      %v564 = vshrl.u32 %v563, 7
      %v565 = vsub.s32 %v562, %v564
      %v566 = vrot.slane %v552, %v565
      %v567 = vcombine.high %v559, %v559
      %568 = vrot.lane.b32.xlu0 %v559, 126
      %v569 = vpop.permute.xlu0 %568
      %570 = vrot.lane.b32.xlu0 %v567, 126
      %v571 = vpop.permute.xlu0 %570
      %572 = vrot.lane.b32.xlu0 %v566, 126
      %v573 = vpop.permute.xlu0 %572
      %vm574 = vcmask 1031168
      %v575 = vsel %vm574, %v569, %v571
      %v576 = vsel %vm574, %v571, %v573
      %v578 = vsel %vm365, %v550, 0
      %v581 = vsel %vm369, %v575, 0
      %v584 = vsel %vm369, %v576, 0
      %586 = vmatprep.subr.bf16.mxu0 %v584
      %587 = vmatpush1.bf16.msra.mxu0 %v581
      %588 = vmatprep.subr.bf16.mxu0 0
      %589 = vmatpush1.bf16.msra.mxu0 0
      %590 = vmatprep.subr.bf16.mxu0 0
      %591 = vmatpush1.bf16.msra.mxu0 0
      %592 = vmatprep.subr.bf16.mxu0 0
      %593 = vmatpush1.bf16.msra.mxu0 0
      %594 = vmatprep.subr.bf16.mxu0 0
      %595 = vmatpush1.bf16.msra.mxu0 0
      %596 = vmatprep.subr.bf16.mxu0 0
      %597 = vmatpush1.bf16.msra.mxu0 0
      %598 = vmatprep.subr.bf16.mxu0 0
      %599 = vmatpush1.bf16.msra.mxu0 0
      %600 = vmatprep.subr.bf16.mxu0 0
      %601 = vmatpush1.bf16.msra.mxu0 0
      %602 = vmatprep.subr.bf16.mxu0 0
      %603 = vmatpush1.bf16.msra.mxu0 0
      %604 = vmatprep.subr.bf16.mxu0 0
      %605 = vmatpush1.bf16.msra.mxu0 0
      %606 = vmatprep.subr.bf16.mxu0 0
      %607 = vmatpush1.bf16.msra.mxu0 0
      %608 = vmatprep.subr.bf16.mxu0 0
      %609 = vmatpush1.bf16.msra.mxu0 0
      %610 = vmatprep.subr.bf16.mxu0 0
      %611 = vmatpush1.bf16.msra.mxu0 0
      %612 = vmatprep.subr.bf16.mxu0 0
      %613 = vmatpush1.bf16.msra.mxu0 0
      %614 = vmatprep.subr.bf16.mxu0 0
      %615 = vmatpush1.bf16.msra.mxu0 0
      %616 = vmatprep.subr.bf16.mxu0 0
      %617 = vmatpush1.bf16.msra.mxu0 0
      %618 = vmatprep.mubr.bf16.mxu0 0
      %619 = vmatmul.mubr.bf16.gmra.mrb[0].mxu0 %v578
      %v620 = vpop.f32.mrb[0].mxu0
      %v621 = vadd.f32 0.0, %v620
      %v622 = vpop.f32.mrb[0].mxu0
      %v623 = vadd.f32 0.0, %v622
      %v624 = vpop.f32.mrb[0].mxu0
      %v625 = vadd.f32 0.0, %v624
      %v626 = vpop.f32.mrb[0].mxu0
      %v627 = vadd.f32 0.0, %v626
      %628 = vdwg.mxu0
      %v629 = vadd.f32 %v477, %v621
      %v630 = vadd.f32 %v479, %v623
      %v631 = vadd.f32 %v481, %v625
      %v632 = vadd.f32 %v483, %v627
      %v633 = vld [vmem:[#allocation2] sm:$0x3f]
      %634 = vrot.lane.b32.xlu0 %v325, 16
      %v635 = vpop.permute.xlu0 %634
      %v636 = vrot.slane %v635, 6
      %vm637 = vcmask 130048
      %v638 = vsel %vm637, %v636, %v635
      %v640 = vmul.bf16 %v633, %v638
      %s641 = scalar_lea.vmem %s2, 24
      %v642 = vld [vmem:[%s641] sm:$0xf]
      %v643 = vld [vmem:[%s641 + $0x4] sm:$0xf]
      %v646 = vunpack.c.l.b16 %v642
      %v647 = vunpack.c.l.b16 %v643
      %v648 = vpack.c.b16 %v647, %v646
      %v650 = vcombine.high %v640, %v640
      %v652 = vunpack.c.l.s4 1983009808
      %v653 = vunpack.c.0.s8 %v652
      %v654 = vlaneseq
      %v655 = vshrl.u32 %v654, 7
      %v656 = vsub.s32 %v653, %v655
      %v657 = vrot.slane %v640, %v656
      %v659 = vunpack.c.l.s4 1983009808
      %v660 = vunpack.c.0.s8 %v659
      %v661 = vlaneseq
      %v662 = vshrl.u32 %v661, 7
      %v663 = vsub.s32 %v660, %v662
      %v664 = vrot.slane %v650, %v663
      %v665 = vcombine.high %v657, %v657
      %666 = vrot.lane.b32.xlu0 %v657, 112
      %v667 = vpop.permute.xlu0 %666
      %668 = vrot.lane.b32.xlu0 %v665, 112
      %v669 = vpop.permute.xlu0 %668
      %670 = vrot.lane.b32.xlu0 %v664, 112
      %v671 = vpop.permute.xlu0 %670
      %vm672 = vcmask 916480
      %v673 = vsel %vm672, %v667, %v669
      %v674 = vsel %vm672, %v669, %v671
      %v676 = vsel %vm365, %v648, 0
      %v679 = vsel %vm369, %v673, 0
      %v682 = vsel %vm369, %v674, 0
      %684 = vmatprep.subr.bf16.mxu0 %v682
      %685 = vmatpush1.bf16.msra.mxu0 %v679
      %686 = vmatprep.subr.bf16.mxu0 0
      %687 = vmatpush1.bf16.msra.mxu0 0
      %688 = vmatprep.subr.bf16.mxu0 0
      %689 = vmatpush1.bf16.msra.mxu0 0
      %690 = vmatprep.subr.bf16.mxu0 0
      %691 = vmatpush1.bf16.msra.mxu0 0
      %692 = vmatprep.subr.bf16.mxu0 0
      %693 = vmatpush1.bf16.msra.mxu0 0
      %694 = vmatprep.subr.bf16.mxu0 0
      %695 = vmatpush1.bf16.msra.mxu0 0
      %696 = vmatprep.subr.bf16.mxu0 0
      %697 = vmatpush1.bf16.msra.mxu0 0
      %698 = vmatprep.subr.bf16.mxu0 0
      %699 = vmatpush1.bf16.msra.mxu0 0
      %700 = vmatprep.subr.bf16.mxu0 0
      %701 = vmatpush1.bf16.msra.mxu0 0
      %702 = vmatprep.subr.bf16.mxu0 0
      %703 = vmatpush1.bf16.msra.mxu0 0
      %704 = vmatprep.subr.bf16.mxu0 0
      %705 = vmatpush1.bf16.msra.mxu0 0
      %706 = vmatprep.subr.bf16.mxu0 0
      %707 = vmatpush1.bf16.msra.mxu0 0
      %708 = vmatprep.subr.bf16.mxu0 0
      %709 = vmatpush1.bf16.msra.mxu0 0
      %710 = vmatprep.subr.bf16.mxu0 0
      %711 = vmatpush1.bf16.msra.mxu0 0
      %712 = vmatprep.subr.bf16.mxu0 0
      %713 = vmatpush1.bf16.msra.mxu0 0
      %714 = vmatprep.subr.bf16.mxu0 0
      %715 = vmatpush1.bf16.msra.mxu0 0
      %716 = vmatprep.mubr.bf16.mxu0 0
      %717 = vmatmul.mubr.bf16.gmra.mrb[0].mxu0 %v676
      %v718 = vpop.f32.mrb[0].mxu0
      %v719 = vadd.f32 0.0, %v718
      %v720 = vpop.f32.mrb[0].mxu0
      %v721 = vadd.f32 0.0, %v720
      %v722 = vpop.f32.mrb[0].mxu0
      %v723 = vadd.f32 0.0, %v722
      %v724 = vpop.f32.mrb[0].mxu0
      %v725 = vadd.f32 0.0, %v724
      %726 = vdwg.mxu0
      %v727 = vadd.f32 %v629, %v719
      %v728 = vadd.f32 %v630, %v721
      %v729 = vadd.f32 %v631, %v723
      %v730 = vadd.f32 %v632, %v725
      %v731 = vld [vmem:[#allocation2] sm:$0x3f]
      %s732 = scalar_lea.vmem %s2, 32
      %v733 = vld [vmem:[%s732] sm:$0xf]
      %v734 = vld [vmem:[%s732 + $0x4] sm:$0xf]
      %v737 = vunpack.c.l.b16 %v733
      %v738 = vunpack.c.l.b16 %v734
      %v739 = vpack.c.b16 %v738, %v737
      %v741 = vcombine.high %v731, %v731
      %v743 = vunpack.c.l.s4 1983009808
      %v744 = vunpack.c.0.s8 %v743
      %v745 = vlaneseq
      %v746 = vshrl.u32 %v745, 7
      %v747 = vsub.s32 %v744, %v746
      %v748 = vrot.slane %v731, %v747
      %v750 = vunpack.c.l.s4 1983009808
      %v751 = vunpack.c.0.s8 %v750
      %v752 = vlaneseq
      %v753 = vshrl.u32 %v752, 7
      %v754 = vsub.s32 %v751, %v753
      %v755 = vrot.slane %v741, %v754
      %v756 = vcombine.high %v748, %v748
      %757 = vrot.lane.b32.xlu0 %v748, 111
      %v758 = vpop.permute.xlu0 %757
      %759 = vrot.lane.b32.xlu0 %v756, 111
      %v760 = vpop.permute.xlu0 %759
      %761 = vrot.lane.b32.xlu0 %v755, 111
      %v762 = vpop.permute.xlu0 %761
      %vm763 = vcmask 908288
      %v764 = vsel %vm763, %v758, %v760
      %v765 = vsel %vm763, %v760, %v762
      %v767 = vsel %vm365, %v739, 0
      %v770 = vsel %vm369, %v764, 0
      %v773 = vsel %vm369, %v765, 0
      %775 = vmatprep.subr.bf16.mxu0 %v773
      %776 = vmatpush1.bf16.msra.mxu0 %v770
      %777 = vmatprep.subr.bf16.mxu0 0
      %778 = vmatpush1.bf16.msra.mxu0 0
      %779 = vmatprep.subr.bf16.mxu0 0
      %780 = vmatpush1.bf16.msra.mxu0 0
      %781 = vmatprep.subr.bf16.mxu0 0
      %782 = vmatpush1.bf16.msra.mxu0 0
      %783 = vmatprep.subr.bf16.mxu0 0
      %784 = vmatpush1.bf16.msra.mxu0 0
      %785 = vmatprep.subr.bf16.mxu0 0
      %786 = vmatpush1.bf16.msra.mxu0 0
      %787 = vmatprep.subr.bf16.mxu0 0
      %788 = vmatpush1.bf16.msra.mxu0 0
      %789 = vmatprep.subr.bf16.mxu0 0
      %790 = vmatpush1.bf16.msra.mxu0 0
      %791 = vmatprep.subr.bf16.mxu0 0
      %792 = vmatpush1.bf16.msra.mxu0 0
      %793 = vmatprep.subr.bf16.mxu0 0
      %794 = vmatpush1.bf16.msra.mxu0 0
      %795 = vmatprep.subr.bf16.mxu0 0
      %796 = vmatpush1.bf16.msra.mxu0 0
      %797 = vmatprep.subr.bf16.mxu0 0
      %798 = vmatpush1.bf16.msra.mxu0 0
      %799 = vmatprep.subr.bf16.mxu0 0
      %800 = vmatpush1.bf16.msra.mxu0 0
      %801 = vmatprep.subr.bf16.mxu0 0
      %802 = vmatpush1.bf16.msra.mxu0 0
      %803 = vmatprep.subr.bf16.mxu0 0
      %804 = vmatpush1.bf16.msra.mxu0 0
      %805 = vmatprep.subr.bf16.mxu0 0
      %806 = vmatpush1.bf16.msra.mxu0 0
      %807 = vmatprep.mubr.bf16.mxu0 0
      %808 = vmatmul.mubr.bf16.gmra.mrb[0].mxu0 %v767
      %v809 = vpop.f32.mrb[0].mxu0
      %v810 = vadd.f32 0.0, %v809
      %v811 = vpop.f32.mrb[0].mxu0
      %v812 = vadd.f32 0.0, %v811
      %v813 = vpop.f32.mrb[0].mxu0
      %v814 = vadd.f32 0.0, %v813
      %v815 = vpop.f32.mrb[0].mxu0
      %v816 = vadd.f32 0.0, %v815
      %817 = vdwg.mxu0
      %v818 = vadd.f32 %v727, %v810
      %v819 = vadd.f32 %v728, %v812
      %v820 = vadd.f32 %v729, %v814
      %v821 = vadd.f32 %v730, %v816
      %v822 = vld [vmem:[#allocation2] sm:$0x3f]
      %823 = vrot.lane.b32.xlu0 %v535, 18
      %v824 = vpop.permute.xlu0 %823
      %v825 = vrot.slane %v824, 6
      %vm826 = vcmask 146432
      %v827 = vsel %vm826, %v825, %v824
      %v829 = vmul.bf16 %v822, %v827
      %s830 = scalar_lea.vmem %s2, 40
      %v831 = vld [vmem:[%s830] sm:$0xf]
      %v832 = vld [vmem:[%s830 + $0x4] sm:$0xf]
      %v835 = vunpack.c.l.b16 %v831
      %v836 = vunpack.c.l.b16 %v832
      %v837 = vpack.c.b16 %v836, %v835
      %v839 = vcombine.high %v829, %v829
      %v841 = vunpack.c.l.s4 1983009808
      %v842 = vunpack.c.0.s8 %v841
      %v843 = vlaneseq
      %v844 = vshrl.u32 %v843, 7
      %v845 = vsub.s32 %v842, %v844
      %v846 = vrot.slane %v829, %v845
      %v848 = vunpack.c.l.s4 1983009808
      %v849 = vunpack.c.0.s8 %v848
      %v850 = vlaneseq
      %v851 = vshrl.u32 %v850, 7
      %v852 = vsub.s32 %v849, %v851
      %v853 = vrot.slane %v839, %v852
      %v854 = vcombine.high %v846, %v846
      %855 = vrot.lane.b32.xlu0 %v846, 110
      %v856 = vpop.permute.xlu0 %855
      %857 = vrot.lane.b32.xlu0 %v854, 110
      %v858 = vpop.permute.xlu0 %857
      %859 = vrot.lane.b32.xlu0 %v853, 110
      %v860 = vpop.permute.xlu0 %859
      %vm861 = vcmask 900096
      %v862 = vsel %vm861, %v856, %v858
      %v863 = vsel %vm861, %v858, %v860
      %v865 = vsel %vm365, %v837, 0
      %v868 = vsel %vm369, %v862, 0
      %v871 = vsel %vm369, %v863, 0
      %873 = vmatprep.subr.bf16.mxu0 %v871
      %874 = vmatpush1.bf16.msra.mxu0 %v868
      %875 = vmatprep.subr.bf16.mxu0 0
      %876 = vmatpush1.bf16.msra.mxu0 0
      %877 = vmatprep.subr.bf16.mxu0 0
      %878 = vmatpush1.bf16.msra.mxu0 0
      %879 = vmatprep.subr.bf16.mxu0 0
      %880 = vmatpush1.bf16.msra.mxu0 0
      %881 = vmatprep.subr.bf16.mxu0 0
      %882 = vmatpush1.bf16.msra.mxu0 0
      %883 = vmatprep.subr.bf16.mxu0 0
      %884 = vmatpush1.bf16.msra.mxu0 0
      %885 = vmatprep.subr.bf16.mxu0 0
      %886 = vmatpush1.bf16.msra.mxu0 0
      %887 = vmatprep.subr.bf16.mxu0 0
      %888 = vmatpush1.bf16.msra.mxu0 0
      %889 = vmatprep.subr.bf16.mxu0 0
      %890 = vmatpush1.bf16.msra.mxu0 0
      %891 = vmatprep.subr.bf16.mxu0 0
      %892 = vmatpush1.bf16.msra.mxu0 0
      %893 = vmatprep.subr.bf16.mxu0 0
      %894 = vmatpush1.bf16.msra.mxu0 0
      %895 = vmatprep.subr.bf16.mxu0 0
      %896 = vmatpush1.bf16.msra.mxu0 0
      %897 = vmatprep.subr.bf16.mxu0 0
      %898 = vmatpush1.bf16.msra.mxu0 0
      %899 = vmatprep.subr.bf16.mxu0 0
      %900 = vmatpush1.bf16.msra.mxu0 0
      %901 = vmatprep.subr.bf16.mxu0 0
      %902 = vmatpush1.bf16.msra.mxu0 0
      %903 = vmatprep.subr.bf16.mxu0 0
      %904 = vmatpush1.bf16.msra.mxu0 0
      %905 = vmatprep.mubr.bf16.mxu0 0
      %906 = vmatmul.mubr.bf16.gmra.mrb[0].mxu0 %v865
      %v907 = vpop.f32.mrb[0].mxu0
      %v908 = vadd.f32 0.0, %v907
      %v909 = vpop.f32.mrb[0].mxu0
      %v910 = vadd.f32 0.0, %v909
      %v911 = vpop.f32.mrb[0].mxu0
      %v912 = vadd.f32 0.0, %v911
      %v913 = vpop.f32.mrb[0].mxu0
      %v914 = vadd.f32 0.0, %v913
      %915 = vdwg.mxu0
      %v916 = vadd.f32 %v818, %v908
      %v917 = vadd.f32 %v819, %v910
      %v918 = vadd.f32 %v820, %v912
      %v919 = vadd.f32 %v821, %v914
      %v920 = vld [vmem:[#allocation2] sm:$0x3f]
      %921 = vrot.lane.b32.xlu0 %v325, 32
      %v922 = vpop.permute.xlu0 %921
      %v923 = vrot.slane %v922, 6
      %vm924 = vcmask 261120
      %v925 = vsel %vm924, %v923, %v922
      %v927 = vmul.bf16 %v920, %v925
      %s928 = scalar_lea.vmem %s2, 48
      %v929 = vld [vmem:[%s928] sm:$0xf]
      %v930 = vld [vmem:[%s928 + $0x4] sm:$0xf]
      %v933 = vunpack.c.l.b16 %v929
      %v934 = vunpack.c.l.b16 %v930
      %v935 = vpack.c.b16 %v934, %v933
      %v937 = vcombine.high %v927, %v927
      %v939 = vunpack.c.l.s4 1983009808
      %v940 = vunpack.c.0.s8 %v939
      %v941 = vlaneseq
      %v942 = vshrl.u32 %v941, 7
      %v943 = vsub.s32 %v940, %v942
      %v944 = vrot.slane %v927, %v943
      %v946 = vunpack.c.l.s4 1983009808
      %v947 = vunpack.c.0.s8 %v946
      %v948 = vlaneseq
      %v949 = vshrl.u32 %v948, 7
      %v950 = vsub.s32 %v947, %v949
      %v951 = vrot.slane %v937, %v950
      %v952 = vcombine.high %v944, %v944
      %953 = vrot.lane.b32.xlu0 %v944, 96
      %v954 = vpop.permute.xlu0 %953
      %955 = vrot.lane.b32.xlu0 %v952, 96
      %v956 = vpop.permute.xlu0 %955
      %957 = vrot.lane.b32.xlu0 %v951, 96
      %v958 = vpop.permute.xlu0 %957
      %vm959 = vcmask 785408
      %v960 = vsel %vm959, %v954, %v956
      %v961 = vsel %vm959, %v956, %v958
      %v963 = vsel %vm365, %v935, 0
      %v966 = vsel %vm369, %v960, 0
      %v969 = vsel %vm369, %v961, 0
      %971 = vmatprep.subr.bf16.mxu0 %v969
      %972 = vmatpush1.bf16.msra.mxu0 %v966
      %973 = vmatprep.subr.bf16.mxu0 0
      %974 = vmatpush1.bf16.msra.mxu0 0
      %975 = vmatprep.subr.bf16.mxu0 0
      %976 = vmatpush1.bf16.msra.mxu0 0
      %977 = vmatprep.subr.bf16.mxu0 0
      %978 = vmatpush1.bf16.msra.mxu0 0
      %979 = vmatprep.subr.bf16.mxu0 0
      %980 = vmatpush1.bf16.msra.mxu0 0
      %981 = vmatprep.subr.bf16.mxu0 0
      %982 = vmatpush1.bf16.msra.mxu0 0
      %983 = vmatprep.subr.bf16.mxu0 0
      %984 = vmatpush1.bf16.msra.mxu0 0
      %985 = vmatprep.subr.bf16.mxu0 0
      %986 = vmatpush1.bf16.msra.mxu0 0
      %987 = vmatprep.subr.bf16.mxu0 0
      %988 = vmatpush1.bf16.msra.mxu0 0
      %989 = vmatprep.subr.bf16.mxu0 0
      %990 = vmatpush1.bf16.msra.mxu0 0
      %991 = vmatprep.subr.bf16.mxu0 0
      %992 = vmatpush1.bf16.msra.mxu0 0
      %993 = vmatprep.subr.bf16.mxu0 0
      %994 = vmatpush1.bf16.msra.mxu0 0
      %995 = vmatprep.subr.bf16.mxu0 0
      %996 = vmatpush1.bf16.msra.mxu0 0
      %997 = vmatprep.subr.bf16.mxu0 0
      %998 = vmatpush1.bf16.msra.mxu0 0
      %999 = vmatprep.subr.bf16.mxu0 0
      %1000 = vmatpush1.bf16.msra.mxu0 0
      %1001 = vmatprep.subr.bf16.mxu0 0
      %1002 = vmatpush1.bf16.msra.mxu0 0
      %1003 = vmatprep.mubr.bf16.mxu0 0
      %1004 = vmatmul.mubr.bf16.gmra.mrb[0].mxu0 %v963
      %v1005 = vpop.f32.mrb[0].mxu0
      %v1006 = vadd.f32 0.0, %v1005
      %v1007 = vpop.f32.mrb[0].mxu0
      %v1008 = vadd.f32 0.0, %v1007
      %v1009 = vpop.f32.mrb[0].mxu0
      %v1010 = vadd.f32 0.0, %v1009
      %v1011 = vpop.f32.mrb[0].mxu0
      %v1012 = vadd.f32 0.0, %v1011
      %1013 = vdwg.mxu0
      %v1014 = vadd.f32 %v916, %v1006
      %v1015 = vadd.f32 %v917, %v1008
      %v1016 = vadd.f32 %v918, %v1010
      %v1017 = vadd.f32 %v919, %v1012
      %v1018 = vld [vmem:[#allocation2] sm:$0x3f]
      %s1019 = scalar_lea.vmem %s2, 56
      %v1020 = vld [vmem:[%s1019] sm:$0xf]
      %v1021 = vld [vmem:[%s1019 + $0x4] sm:$0xf]
      %v1024 = vunpack.c.l.b16 %v1020
      %v1025 = vunpack.c.l.b16 %v1021
      %v1026 = vpack.c.b16 %v1025, %v1024
      %v1028 = vcombine.high %v1018, %v1018
      %v1030 = vunpack.c.l.s4 1983009808
      %v1031 = vunpack.c.0.s8 %v1030
      %v1032 = vlaneseq
      %v1033 = vshrl.u32 %v1032, 7
      %v1034 = vsub.s32 %v1031, %v1033
      %v1035 = vrot.slane %v1018, %v1034
      %v1037 = vunpack.c.l.s4 1983009808
      %v1038 = vunpack.c.0.s8 %v1037
      %v1039 = vlaneseq
      %v1040 = vshrl.u32 %v1039, 7
      %v1041 = vsub.s32 %v1038, %v1040
      %v1042 = vrot.slane %v1028, %v1041
      %v1043 = vcombine.high %v1035, %v1035
      %1044 = vrot.lane.b32.xlu0 %v1035, 95
      %v1045 = vpop.permute.xlu0 %1044
      %1046 = vrot.lane.b32.xlu0 %v1043, 95
      %v1047 = vpop.permute.xlu0 %1046
      %1048 = vrot.lane.b32.xlu0 %v1042, 95
      %v1049 = vpop.permute.xlu0 %1048
      %vm1050 = vcmask 777216
      %v1051 = vsel %vm1050, %v1045, %v1047
      %v1052 = vsel %vm1050, %v1047, %v1049
      %v1054 = vsel %vm365, %v1026, 0
      %v1057 = vsel %vm369, %v1051, 0
      %v1060 = vsel %vm369, %v1052, 0
      %1062 = vmatprep.subr.bf16.mxu0 %v1060
      %1063 = vmatpush1.bf16.msra.mxu0 %v1057
      %1064 = vmatprep.subr.bf16.mxu0 0
      %1065 = vmatpush1.bf16.msra.mxu0 0
      %1066 = vmatprep.subr.bf16.mxu0 0
      %1067 = vmatpush1.bf16.msra.mxu0 0
      %1068 = vmatprep.subr.bf16.mxu0 0
      %1069 = vmatpush1.bf16.msra.mxu0 0
      %1070 = vmatprep.subr.bf16.mxu0 0
      %1071 = vmatpush1.bf16.msra.mxu0 0
      %1072 = vmatprep.subr.bf16.mxu0 0
      %1073 = vmatpush1.bf16.msra.mxu0 0
      %1074 = vmatprep.subr.bf16.mxu0 0
      %1075 = vmatpush1.bf16.msra.mxu0 0
      %1076 = vmatprep.subr.bf16.mxu0 0
      %1077 = vmatpush1.bf16.msra.mxu0 0
      %1078 = vmatprep.subr.bf16.mxu0 0
      %1079 = vmatpush1.bf16.msra.mxu0 0
      %1080 = vmatprep.subr.bf16.mxu0 0
      %1081 = vmatpush1.bf16.msra.mxu0 0
      %1082 = vmatprep.subr.bf16.mxu0 0
      %1083 = vmatpush1.bf16.msra.mxu0 0
      %1084 = vmatprep.subr.bf16.mxu0 0
      %1085 = vmatpush1.bf16.msra.mxu0 0
      %1086 = vmatprep.subr.bf16.mxu0 0
      %1087 = vmatpush1.bf16.msra.mxu0 0
      %1088 = vmatprep.subr.bf16.mxu0 0
      %1089 = vmatpush1.bf16.msra.mxu0 0
      %1090 = vmatprep.subr.bf16.mxu0 0
      %1091 = vmatpush1.bf16.msra.mxu0 0
      %1092 = vmatprep.subr.bf16.mxu0 0
      %1093 = vmatpush1.bf16.msra.mxu0 0
      %1094 = vmatprep.mubr.bf16.mxu0 0
      %1095 = vmatmul.mubr.bf16.gmra.mrb[0].mxu0 %v1054
      %v1096 = vpop.f32.mrb[0].mxu0
      %v1097 = vadd.f32 0.0, %v1096
      %v1098 = vpop.f32.mrb[0].mxu0
      %v1099 = vadd.f32 0.0, %v1098
      %v1100 = vpop.f32.mrb[0].mxu0
      %v1101 = vadd.f32 0.0, %v1100
      %v1102 = vpop.f32.mrb[0].mxu0
      %v1103 = vadd.f32 0.0, %v1102
      %1104 = vdwg.mxu0
      %v1105 = vadd.f32 %v1014, %v1097
      %v1106 = vadd.f32 %v1015, %v1099
      %v1107 = vadd.f32 %v1016, %v1101
      %v1108 = vadd.f32 %v1017, %v1103
      %v1109 = vld [vmem:[#allocation2] sm:$0x3f]
      %1110 = vrot.lane.b32.xlu0 %v535, 34
      %v1111 = vpop.permute.xlu0 %1110
      %v1112 = vrot.slane %v1111, 6
      %vm1113 = vcmask 277504
      %v1114 = vsel %vm1113, %v1112, %v1111
      %v1116 = vmul.bf16 %v1109, %v1114
      %s1117 = scalar_lea.vmem %s2, 64
      %v1118 = vld [vmem:[%s1117] sm:$0xf]
      %v1119 = vld [vmem:[%s1117 + $0x4] sm:$0xf]
      %v1122 = vunpack.c.l.b16 %v1118
      %v1123 = vunpack.c.l.b16 %v1119
      %v1124 = vpack.c.b16 %v1123, %v1122
      %v1126 = vcombine.high %v1116, %v1116
      %v1128 = vunpack.c.l.s4 1983009808
      %v1129 = vunpack.c.0.s8 %v1128
      %v1130 = vlaneseq
      %v1131 = vshrl.u32 %v1130, 7
      %v1132 = vsub.s32 %v1129, %v1131
      %v1133 = vrot.slane %v1116, %v1132
      %v1135 = vunpack.c.l.s4 1983009808
      %v1136 = vunpack.c.0.s8 %v1135
      %v1137 = vlaneseq
      %v1138 = vshrl.u32 %v1137, 7
      %v1139 = vsub.s32 %v1136, %v1138
      %v1140 = vrot.slane %v1126, %v1139
      %v1141 = vcombine.high %v1133, %v1133
      %1142 = vrot.lane.b32.xlu0 %v1133, 94
      %v1143 = vpop.permute.xlu0 %1142
      %1144 = vrot.lane.b32.xlu0 %v1141, 94
      %v1145 = vpop.permute.xlu0 %1144
      %1146 = vrot.lane.b32.xlu0 %v1140, 94
      %v1147 = vpop.permute.xlu0 %1146
      %vm1148 = vcmask 769024
      %v1149 = vsel %vm1148, %v1143, %v1145
      %v1150 = vsel %vm1148, %v1145, %v1147
      %v1152 = vsel %vm365, %v1124, 0
      %v1155 = vsel %vm369, %v1149, 0
      %v1158 = vsel %vm369, %v1150, 0
      %1160 = vmatprep.subr.bf16.mxu0 %v1158
      %1161 = vmatpush1.bf16.msra.mxu0 %v1155
      %1162 = vmatprep.subr.bf16.mxu0 0
      %1163 = vmatpush1.bf16.msra.mxu0 0
      %1164 = vmatprep.subr.bf16.mxu0 0
      %1165 = vmatpush1.bf16.msra.mxu0 0
      %1166 = vmatprep.subr.bf16.mxu0 0
      %1167 = vmatpush1.bf16.msra.mxu0 0
      %1168 = vmatprep.subr.bf16.mxu0 0
      %1169 = vmatpush1.bf16.msra.mxu0 0
      %1170 = vmatprep.subr.bf16.mxu0 0
      %1171 = vmatpush1.bf16.msra.mxu0 0
      %1172 = vmatprep.subr.bf16.mxu0 0
      %1173 = vmatpush1.bf16.msra.mxu0 0
      %1174 = vmatprep.subr.bf16.mxu0 0
      %1175 = vmatpush1.bf16.msra.mxu0 0
      %1176 = vmatprep.subr.bf16.mxu0 0
      %1177 = vmatpush1.bf16.msra.mxu0 0
      %1178 = vmatprep.subr.bf16.mxu0 0
      %1179 = vmatpush1.bf16.msra.mxu0 0
      %1180 = vmatprep.subr.bf16.mxu0 0
      %1181 = vmatpush1.bf16.msra.mxu0 0
      %1182 = vmatprep.subr.bf16.mxu0 0
      %1183 = vmatpush1.bf16.msra.mxu0 0
      %1184 = vmatprep.subr.bf16.mxu0 0
      %1185 = vmatpush1.bf16.msra.mxu0 0
      %1186 = vmatprep.subr.bf16.mxu0 0
      %1187 = vmatpush1.bf16.msra.mxu0 0
      %1188 = vmatprep.subr.bf16.mxu0 0
      %1189 = vmatpush1.bf16.msra.mxu0 0
      %1190 = vmatprep.subr.bf16.mxu0 0
      %1191 = vmatpush1.bf16.msra.mxu0 0
      %1192 = vmatprep.mubr.bf16.mxu0 0
      %1193 = vmatmul.mubr.bf16.gmra.mrb[0].mxu0 %v1152
      %v1194 = vpop.f32.mrb[0].mxu0
      %v1195 = vadd.f32 0.0, %v1194
      %v1196 = vpop.f32.mrb[0].mxu0
      %v1197 = vadd.f32 0.0, %v1196
      %v1198 = vpop.f32.mrb[0].mxu0
      %v1199 = vadd.f32 0.0, %v1198
      %v1200 = vpop.f32.mrb[0].mxu0
      %v1201 = vadd.f32 0.0, %v1200
      %1202 = vdwg.mxu0
      %v1203 = vadd.f32 %v1105, %v1195
      %v1204 = vadd.f32 %v1106, %v1197
      %v1205 = vadd.f32 %v1107, %v1199
      %v1206 = vadd.f32 %v1108, %v1201
      %v1207 = vpack.c.bf16 %v1205, %v1203
      %v1208 = vpack.c.bf16 %v1206, %v1204
      %v1211 = vunpack.c.l.b16 %v1207
      %v1212 = vunpack.c.l.b16 %v1208
      %v1213 = vunpack.c.h.b16 %v1207
      %v1214 = vunpack.c.h.b16 %v1208
      %v1215 = vpack.c.b16 %v1212, %v1211
      %v1216 = vpack.c.b16 %v1214, %v1213
      %1219 = vst [vmem:[%s214] sm:$0xff] %v1215
      %1220 = vst [vmem:[%s214 + $0x8] sm:$0xff] %v1216
      %p1221 = scmp.lt.s32.totalorder %s15, 7
      %s1222 = scalar_select %p1221, %s15, 7
      %s1223 = smul.addr %s1222, 4
      %s1224 = smul.addr %s1223, 4
      %s1225 = scalar_lea.vmem %s4, %s1224
      // Predicated region
      $region37: #{up_forward.4} parent=35 // pred_check
        %p1226 = pneg %p127
      $region38: #{up_forward.4} parent=35 // pred_check_branch
        %1228 = sbr.rel (%p1226) target = $region40
      $region39: #{up_forward.4} parent=35 // pred_region
        _
      $region40: #{up_forward.4} parent=35 // pred_fallthru
        _
    $region36: #{up_forward.4} parent=5 // pred_fallthru
      _
    %p1229 = scmp.le.s32.totalorder 2, %s10
    // Predicated region
    $region41: #{up_forward.4} parent=5 // pred_check
      %p1230 = pneg %p1229
    $region42: #{up_forward.4} parent=5 // pred_check_branch
      %1232 = sbr.rel (%p1230) target = $region44
    $region43: #{up_forward.4} parent=5 // pred_region
      %s1233 = ssub.s32 %s10, 2
      // Predicated region
      $region45: #{up_forward.4} parent=43 // pred_check
        %p1234 = pneg %p133
      $region46: #{up_forward.4} parent=43 // pred_check_branch
        %1236 = sbr.rel (%p1234) target = $region48
      $region47: #{up_forward.4} parent=43 // pred_region
        %p1237 = scmp.lt.s32.totalorder %s16, 7
        %s1238 = scalar_select %p1237, %s16, 7
        %s1239 = smul.addr %s1238, 4
        %s1240 = smul.addr %s1239, 4
        %s1241 = scalar_lea.vmem %s4, %s1240
      $region48: #{up_forward.4} parent=43 // pred_fallthru
        _
    $region44: #{up_forward.4} parent=5 // pred_fallthru
      _
  $region6: #{up_forward.4} parent=0 // loop_footer
    %s14 = sadd.s32 1, %s10
  $region7: #{up_forward.4} parent=0 // loop_footer_branch
    %9 = sbr.rel target = $region3
  $region8: #{up_forward.4} parent=0 // loop_exit
    _

// kernel: up_forward.5
$region0: #{up_forward.5}
  #allocation0 [shape = 'u32[]', space=smem, size = 0x4, offset = 0x4, fixed_abs, tag = 'smem constant byte address 0x4 - core index']
  #allocation1 [shape = 'u32[144,128]{1,0:T(1,128)}', space=vmem, size = 0x12000, scoped, tag = 'internal scratch']
  #allocation2 [shape = 'bf16[4,290]{1,0:T(4,128)(2,1)}', space=vmem, size = 0xc00, scoped, tag = 'scratch operand']
  #allocation3 [shape = 'f32[4,256]{1,0:T(4,128)}', space=vmem, size = 0x1000, scoped, tag = 'scratch operand']
  %s0 = inlined_call_operand.vmem [shape: bf16[2,4,16,256], index: 0, kind: input, shape index: {}]
  %s1 = inlined_call_operand.vmem [shape: bf16[9,16,4], index: 1, kind: input, shape index: {}]
  %s2 = inlined_call_operand.vmem [shape: bf16[2,256], index: 2, kind: input, shape index: {}]
  %s3 = inlined_call_operand.vmem [shape: f32[2,4,4,256], index: 3, kind: output, shape index: {}]
  %s4 = sld [smem:[#allocation0]]
  $region49: #{up_forward.5} parent=0
    _
  %s6 = ssub.s32 1, %s4
  %s7 = scalar_select 0, %s6, %s4
  loop: start=0, step=1, limit=10
  $region2: #{up_forward.5} parent=0 // loop_pre_header
    _
  $region3: #{up_forward.5} parent=0 // loop_header
    %s9 = sphi 0, %s13
    %p10 = scmp.ge.s32.totalorder %s9, 10
    %s16 = sphi 0, %s28
    %s17 = sphi 0, %s24
    %s18 = sphi 0, %s16
    %s19 = sphi 0, %s17
    %s20 = sphi 0, %s18
    %s21 = sphi 0, %s19
    %s33 = sphi 0, %s35
    %s36 = sphi 0, %s33
    %s37 = sphi 0, %s36
    %s53 = sphi 0, %s37
    %s57 = sphi 0, %s57
    %s59 = sphi 0, %s57
    %s60 = sphi 0, %s59
    %s74 = sphi 0, %s60
    %s78 = sphi 0, %s78
    %s80 = sphi 0, %s78
    %s81 = sphi 0, %s80
    %s95 = sphi 0, %s81
    %s103 = sphi 0, %s105
    %s106 = sphi 0, %s103
    %s107 = sphi 0, %s106
    %s123 = sphi 0, %s107
  $region4: #{up_forward.5} parent=0 // loop_header_branch
    %12 = sbr.rel (%p10) target = $region8
  $region5: #{up_forward.5} parent=0 // loop_body
    %s14 = ssub.s32 %s9, 1
    %s15 = ssub.s32 %s9, 2
    %s22 = sadd.s32 1, %s17
    %p23 = scmp.ge.s32.totalorder %s22, 4
    %s24 = scalar_select %p23, 0, %s22
    %s25 = sadd.s32 1, %s16
    %s26 = scalar_select %p23, %s25, %s16
    %p27 = scmp.ge.s32.totalorder %s26, 2
    %s28 = scalar_select %p27, 0, %s26
    %s29 = ssub.s32 %s16, %s28
    %s30 = ssub.s32 %s17, %s24
    %s31 = sor.u32 %s29, %s30
    %p32 = scmp.eq.s32.totalorder %s31, 0
    %s34 = sadd.s32 %s33, 1
    %s35 = scalar_select %p32, %s33, %s34
    %p38 = pneg %p32
    %p39 = scmp.eq.s32.totalorder %s9, 7
    %p40 = por %p38, %p39
    %p41 = scmp.ne.s32.totalorder %s33, %s36
    %p42 = scmp.eq.s32.totalorder %s9, 0
    %p43 = por %p41, %p42
    %p44 = scmp.ne.s32.totalorder %s33, %s36
    %p45 = scmp.eq.s32.totalorder %s14, 7
    %p46 = por %p44, %p45
    %p47 = scmp.ne.s32.totalorder %s36, %s37
    %p48 = scmp.eq.s32.totalorder %s14, 0
    %p49 = por %p47, %p48
    %p50 = scmp.ne.s32.totalorder %s36, %s37
    %p51 = scmp.eq.s32.totalorder %s15, 7
    %p52 = por %p50, %p51
    %p54 = scmp.ne.s32.totalorder %s37, %s53
    %p55 = scmp.eq.s32.totalorder %s15, 0
    %p56 = por %p54, %p55
    %s58 = sadd.s32 %s57, 1
    %p61 = scmp.eq.s32.totalorder %s9, 7
    %p62 = scmp.ne.s32.totalorder %s57, %s59
    %p63 = scmp.eq.s32.totalorder %s9, 0
    %p64 = por %p62, %p63
    %p65 = scmp.ne.s32.totalorder %s57, %s59
    %p66 = scmp.eq.s32.totalorder %s14, 7
    %p67 = por %p65, %p66
    %p68 = scmp.ne.s32.totalorder %s59, %s60
    %p69 = scmp.eq.s32.totalorder %s14, 0
    %p70 = por %p68, %p69
    %p71 = scmp.ne.s32.totalorder %s59, %s60
    %p72 = scmp.eq.s32.totalorder %s15, 7
    %p73 = por %p71, %p72
    %p75 = scmp.ne.s32.totalorder %s60, %s74
    %p76 = scmp.eq.s32.totalorder %s15, 0
    %p77 = por %p75, %p76
    %s79 = sadd.s32 %s78, 1
    %p82 = scmp.eq.s32.totalorder %s9, 7
    %p83 = scmp.ne.s32.totalorder %s78, %s80
    %p84 = scmp.eq.s32.totalorder %s9, 0
    %p85 = por %p83, %p84
    %p86 = scmp.ne.s32.totalorder %s78, %s80
    %p87 = scmp.eq.s32.totalorder %s14, 7
    %p88 = por %p86, %p87
    %p89 = scmp.ne.s32.totalorder %s80, %s81
    %p90 = scmp.eq.s32.totalorder %s14, 0
    %p91 = por %p89, %p90
    %p92 = scmp.ne.s32.totalorder %s80, %s81
    %p93 = scmp.eq.s32.totalorder %s15, 7
    %p94 = por %p92, %p93
    %p96 = scmp.ne.s32.totalorder %s81, %s95
    %p97 = scmp.eq.s32.totalorder %s15, 0
    %p98 = por %p96, %p97
    %s99 = ssub.s32 %s16, %s28
    %s100 = ssub.s32 %s17, %s24
    %s101 = sor.u32 %s99, %s100
    %p102 = scmp.eq.s32.totalorder %s101, 0
    %s104 = sadd.s32 %s103, 1
    %s105 = scalar_select %p102, %s103, %s104
    %p108 = pneg %p102
    %p109 = scmp.eq.s32.totalorder %s9, 7
    %p110 = por %p108, %p109
    %p111 = scmp.ne.s32.totalorder %s103, %s106
    %p112 = scmp.eq.s32.totalorder %s9, 0
    %p113 = por %p111, %p112
    %p114 = scmp.ne.s32.totalorder %s103, %s106
    %p115 = scmp.eq.s32.totalorder %s14, 7
    %p116 = por %p114, %p115
    %p117 = scmp.ne.s32.totalorder %s106, %s107
    %p118 = scmp.eq.s32.totalorder %s14, 0
    %p119 = por %p117, %p118
    %p120 = scmp.ne.s32.totalorder %s106, %s107
    %p121 = scmp.eq.s32.totalorder %s15, 7
    %p122 = por %p120, %p121
    %p124 = scmp.ne.s32.totalorder %s107, %s123
    %p125 = scmp.eq.s32.totalorder %s15, 0
    %p126 = por %p124, %p125
    %p127 = scmp.le.s32.totalorder 1, %s9
    %p128 = scmp.lt.s32.totalorder %s9, 9
    %p129 = pnand %p127, %p128
    %p130 = pneg %p129
    // Predicated region
    $region9: #{up_forward.5} parent=5 // pred_check
      _
    $region10: #{up_forward.5} parent=5 // pred_check_branch
      %132 = sbr.rel (%p129) target = $region12
    $region11: #{up_forward.5} parent=5 // pred_region
      %s133 = ssub.s32 %s9, 1
      // Predicated region
      $region13: #{up_forward.5} parent=11 // pred_check
        %p134 = pneg %p70
      $region14: #{up_forward.5} parent=11 // pred_check_branch
        %136 = sbr.rel (%p134) target = $region16
      $region15: #{up_forward.5} parent=11 // pred_region
        _
      $region16: #{up_forward.5} parent=11 // pred_fallthru
        _
      // Predicated region
      $region17: #{up_forward.5} parent=11 // pred_check
        %p137 = pneg %p91
      $region18: #{up_forward.5} parent=11 // pred_check_branch
        %139 = sbr.rel (%p137) target = $region20
      $region19: #{up_forward.5} parent=11 // pred_region
        _
      $region20: #{up_forward.5} parent=11 // pred_fallthru
        _
    $region12: #{up_forward.5} parent=5 // pred_fallthru
      _
    %p140 = scmp.lt.s32.totalorder %s9, 8
    // Predicated region
    $region21: #{up_forward.5} parent=5 // pred_check
      %p141 = pneg %p140
    $region22: #{up_forward.5} parent=5 // pred_check_branch
      %143 = sbr.rel (%p141) target = $region24
    $region23: #{up_forward.5} parent=5 // pred_region
      // Predicated region
      $region25: #{up_forward.5} parent=23 // pred_check
        %p144 = pneg %p43
      $region26: #{up_forward.5} parent=23 // pred_check_branch
        %146 = sbr.rel (%p144) target = $region28
      $region27: #{up_forward.5} parent=23 // pred_region
        %p147 = scmp.lt.s32.totalorder %s16, 1
        %s148 = scalar_select %p147, %s16, 1
        %p149 = scmp.lt.s32.totalorder %s17, 3
        %s150 = scalar_select %p149, %s17, 3
        %s151 = smul.addr %s150, 4
        %s152 = smul.addr %s148, 16
        %s153 = sadd.s32 %s151, %s152
        %s154 = smul.addr %s153, 4
        %s155 = scalar_lea.vmem %s0, %s154
      $region28: #{up_forward.5} parent=23 // pred_fallthru
        _
    $region24: #{up_forward.5} parent=5 // pred_fallthru
      _
    %p156 = scmp.le.s32.totalorder 1, %s9
    %p157 = scmp.lt.s32.totalorder %s9, 9
    %p158 = pnand %p156, %p157
    %p159 = pneg %p158
    // Predicated region
    $region29: #{up_forward.5} parent=5 // pred_check
      _
    $region30: #{up_forward.5} parent=5 // pred_check_branch
      %161 = sbr.rel (%p158) target = $region32
    $region31: #{up_forward.5} parent=5 // pred_region
      %s162 = ssub.s32 %s9, 1
      %p163 = scmp.lt.s32.totalorder %s18, 1
      %s164 = scalar_select %p163, %s18, 1
      %p165 = scmp.lt.s32.totalorder %s19, 3
      %s166 = scalar_select %p165, %s19, 3
      %s167 = smul.addr %s166, 4
      %s168 = smul.addr %s164, 16
      %s169 = sadd.s32 %s167, %s168
      %s170 = smul.addr %s169, 4
      %s171 = scalar_lea.vmem %s0, %s170
      %p172 = pneg %p49
      %p173 = pneg %p46
      %p174 = pneg %p70
      %p175 = pneg %p67
      %p176 = pneg %p91
      %p177 = pneg %p88
      %p178 = pneg %p119
      %p179 = pneg %p116
      %p180 = scmp.lt.s32.totalorder %s18, 1
      %s181 = scalar_select %p180, %s18, 1
      %p182 = scmp.lt.s32.totalorder %s19, 3
      %s183 = scalar_select %p182, %s19, 3
      %s184 = smul.addr %s183, 2
      %s185 = smul.addr %s181, 8
      %s186 = sadd.s32 %s184, %s185
      %s187 = smul.addr %s186, 4
      %s188 = scalar_lea.vmem %s3, %s187
      %p189 = scmp.lt.s32.totalorder %s18, 1
      %s190 = scalar_select %p189, %s18, 1
      %p191 = scmp.lt.s32.totalorder %s19, 3
      %s192 = scalar_select %p191, %s19, 3
      %s193 = smul.addr %s192, 4
      %s194 = smul.addr %s190, 16
      %s195 = sadd.s32 %s193, %s194
      %s196 = smul.addr %s195, 4
      %s197 = scalar_lea.vmem %s0, %s196
      %p198 = scmp.lt.s32.totalorder %s18, 1
      %s199 = scalar_select %p198, %s18, 1
      %p200 = scmp.lt.s32.totalorder %s19, 3
      %s201 = scalar_select %p200, %s19, 3
      %s202 = smul.addr %s201, 2
      %s203 = smul.addr %s199, 8
      %s204 = sadd.s32 %s202, %s203
      %s205 = smul.addr %s204, 4
      %s206 = scalar_lea.vmem %s3, %s205
      %p208 = scmp.eq.s32.totalorder %s19, 0
      // Predicated region
      $region33: #{up_forward.5} parent=31 // pred_check
        %p209 = pneg %p208
      $region34: #{up_forward.5} parent=31 // pred_check_branch
        %211 = sbr.rel (%p209) target = $region36
      $region35: #{up_forward.5} parent=31 // pred_region
        %vm212 = vcmask 1041408
        %vm213 = vcmask 1043458
        %vm214 = vmor %vm213, %vm212
        %vm215 = vcmask 275460
        %vm216 = vmor %vm215, %vm214
        %217 = vst.msk [vmem:[#allocation2] sm:$0x3f] %vm216, 0
        %218 = vst [vmem:[#allocation3] sm:$0xff] 0.0
      $region36: #{up_forward.5} parent=31 // pred_fallthru
        _
      %v219 = vld [vmem:[%s197] sm:$0xff]
      %v220 = vld [vmem:[%s197 + $0x8] sm:$0xff]
      %v221 = vunpack.c.l.bf16 %v219
      %v222 = vunpack.c.h.bf16 %v219
      %v223 = vunpack.c.l.bf16 %v220
      %v224 = vunpack.c.h.bf16 %v220
      %v225 = vld [vmem:[#allocation2] sm:$0xf]
      %v226 = vld [vmem:[%s2] sm:$0x3]
      %v229 = vunpack.c.l.s4 1966171168
      %v230 = vunpack.c.0.s8 %v229
      %v231 = vlaneseq
      %v232 = vshrl.u32 %v231, 7
      %v233 = vsub.s32 %v230, %v232
      %v234 = vrot.slane %v226, %v233
      %v235 = vcombine.high %v234, %v234
      %v237 = vunpack.c.l.s4 1966171168
      %v238 = vunpack.c.0.s8 %v237
      %v239 = vlaneseq
      %v240 = vshrl.u32 %v239, 7
      %v241 = vsub.s32 %v238, %v240
      %v242 = vrot.slane %v234, %v241
      %v244 = vunpack.c.l.s4 1966171168
      %v245 = vunpack.c.0.s8 %v244
      %v246 = vlaneseq
      %v247 = vshrl.u32 %v246, 7
      %v248 = vsub.s32 %v245, %v247
      %v249 = vrot.slane %v235, %v248
      %v251 = vpack.i.b16 %v242, %v242
      %v253 = vlaneseq
      %v254 = vshrl.u32 %v253, 7
      %v255 = vsub.s32 0, %v254
      %v256 = vrot.slane %v251, %v255
      %v258 = vpack.i.b16 %v249, %v249
      %v260 = vlaneseq
      %v261 = vshrl.u32 %v260, 7
      %v262 = vsub.s32 0, %v261
      %v263 = vrot.slane %v258, %v262
      %v266 = vcombine.low %v256, %v263
      %v268 = vunpack.c.l.s4 1983009808
      %v269 = vunpack.c.0.s8 %v268
      %v270 = vlaneseq
      %v271 = vshrl.u32 %v270, 7
      %v272 = vsub.s32 %v269, %v271
      %v273 = vrot.slane %v266, %v272
      %v275 = vmul.bf16 %v225, %v273
      %v276 = vld [vmem:[%s1] sm:$0xf]
      %v277 = vld [vmem:[%s1 + $0x4] sm:$0xf]
      %v280 = vunpack.c.l.b16 %v276
      %v281 = vunpack.c.l.b16 %v277
      %v282 = vpack.c.b16 %v281, %v280
      %v285 = vunpack.c.l.s4 1983009808
      %v286 = vunpack.c.0.s8 %v285
      %v287 = vlaneseq
      %v288 = vshrl.u32 %v287, 7
      %v289 = vsub.s32 %v286, %v288
      %v290 = vrot.slane %v275, %v289
      %v291 = vcombine.high %v290, %v290
      %vm292 = vcmask 31744
      %v294 = vsel %vm292, %v282, 0
      %vm296 = vcmask 1041408
      %v298 = vsel %vm296, %v290, 0
      %v301 = vsel %vm296, %v291, 0
      %303 = vmatprep.subr.bf16.mxu0 %v301
      %304 = vmatpush1.bf16.msra.mxu0 %v298
      %305 = vmatprep.subr.bf16.mxu0 0
      %306 = vmatpush1.bf16.msra.mxu0 0
      %307 = vmatprep.subr.bf16.mxu0 0
      %308 = vmatpush1.bf16.msra.mxu0 0
      %309 = vmatprep.subr.bf16.mxu0 0
      %310 = vmatpush1.bf16.msra.mxu0 0
      %311 = vmatprep.subr.bf16.mxu0 0
      %312 = vmatpush1.bf16.msra.mxu0 0
      %313 = vmatprep.subr.bf16.mxu0 0
      %314 = vmatpush1.bf16.msra.mxu0 0
      %315 = vmatprep.subr.bf16.mxu0 0
      %316 = vmatpush1.bf16.msra.mxu0 0
      %317 = vmatprep.subr.bf16.mxu0 0
      %318 = vmatpush1.bf16.msra.mxu0 0
      %319 = vmatprep.subr.bf16.mxu0 0
      %320 = vmatpush1.bf16.msra.mxu0 0
      %321 = vmatprep.subr.bf16.mxu0 0
      %322 = vmatpush1.bf16.msra.mxu0 0
      %323 = vmatprep.subr.bf16.mxu0 0
      %324 = vmatpush1.bf16.msra.mxu0 0
      %325 = vmatprep.subr.bf16.mxu0 0
      %326 = vmatpush1.bf16.msra.mxu0 0
      %327 = vmatprep.subr.bf16.mxu0 0
      %328 = vmatpush1.bf16.msra.mxu0 0
      %329 = vmatprep.subr.bf16.mxu0 0
      %330 = vmatpush1.bf16.msra.mxu0 0
      %331 = vmatprep.subr.bf16.mxu0 0
      %332 = vmatpush1.bf16.msra.mxu0 0
      %333 = vmatprep.subr.bf16.mxu0 0
      %334 = vmatpush1.bf16.msra.mxu0 0
      %335 = vmatprep.mubr.bf16.mxu0 0
      %336 = vmatmul.mubr.bf16.gmra.mrb[0].mxu0 %v294
      %v337 = vpop.f32.mrb[0].mxu0
      %v338 = vadd.f32 0.0, %v337
      %v339 = vpop.f32.mrb[0].mxu0
      %v340 = vadd.f32 0.0, %v339
      %v341 = vpop.f32.mrb[0].mxu0
      %v342 = vadd.f32 0.0, %v341
      %v343 = vpop.f32.mrb[0].mxu0
      %v344 = vadd.f32 0.0, %v343
      %345 = vdwg.mxu0
      %v346 = vadd.f32 %v221, %v338
      %v347 = vadd.f32 %v222, %v340
      %v348 = vadd.f32 %v223, %v342
      %v349 = vadd.f32 %v224, %v344
      %v350 = vld [vmem:[#allocation2] sm:$0x3f]
      %s351 = scalar_lea.vmem %s1, 8
      %v352 = vld [vmem:[%s351] sm:$0xf]
      %v353 = vld [vmem:[%s351 + $0x4] sm:$0xf]
      %v356 = vunpack.c.l.b16 %v352
      %v357 = vunpack.c.l.b16 %v353
      %v358 = vpack.c.b16 %v357, %v356
      %v360 = vcombine.high %v350, %v350
      %v362 = vunpack.c.l.s4 1983009808
      %v363 = vunpack.c.0.s8 %v362
      %v364 = vlaneseq
      %v365 = vshrl.u32 %v364, 7
      %v366 = vsub.s32 %v363, %v365
      %v367 = vrot.slane %v350, %v366
      %v369 = vunpack.c.l.s4 1983009808
      %v370 = vunpack.c.0.s8 %v369
      %v371 = vlaneseq
      %v372 = vshrl.u32 %v371, 7
      %v373 = vsub.s32 %v370, %v372
      %v374 = vrot.slane %v360, %v373
      %v375 = vcombine.high %v367, %v367
      %376 = vrot.lane.b32.xlu0 %v367, 127
      %v377 = vpop.permute.xlu0 %376
      %378 = vrot.lane.b32.xlu0 %v375, 127
      %v379 = vpop.permute.xlu0 %378
      %380 = vrot.lane.b32.xlu0 %v374, 127
      %v381 = vpop.permute.xlu0 %380
      %vm382 = vcmask 1039360
      %v383 = vsel %vm382, %v377, %v379
      %v384 = vsel %vm382, %v379, %v381
      %v386 = vsel %vm292, %v358, 0
      %v389 = vsel %vm296, %v383, 0
      %v392 = vsel %vm296, %v384, 0
      %394 = vmatprep.subr.bf16.mxu0 %v392
      %395 = vmatpush1.bf16.msra.mxu0 %v389
      %396 = vmatprep.subr.bf16.mxu0 0
      %397 = vmatpush1.bf16.msra.mxu0 0
      %398 = vmatprep.subr.bf16.mxu0 0
      %399 = vmatpush1.bf16.msra.mxu0 0
      %400 = vmatprep.subr.bf16.mxu0 0
      %401 = vmatpush1.bf16.msra.mxu0 0
      %402 = vmatprep.subr.bf16.mxu0 0
      %403 = vmatpush1.bf16.msra.mxu0 0
      %404 = vmatprep.subr.bf16.mxu0 0
      %405 = vmatpush1.bf16.msra.mxu0 0
      %406 = vmatprep.subr.bf16.mxu0 0
      %407 = vmatpush1.bf16.msra.mxu0 0
      %408 = vmatprep.subr.bf16.mxu0 0
      %409 = vmatpush1.bf16.msra.mxu0 0
      %410 = vmatprep.subr.bf16.mxu0 0
      %411 = vmatpush1.bf16.msra.mxu0 0
      %412 = vmatprep.subr.bf16.mxu0 0
      %413 = vmatpush1.bf16.msra.mxu0 0
      %414 = vmatprep.subr.bf16.mxu0 0
      %415 = vmatpush1.bf16.msra.mxu0 0
      %416 = vmatprep.subr.bf16.mxu0 0
      %417 = vmatpush1.bf16.msra.mxu0 0
      %418 = vmatprep.subr.bf16.mxu0 0
      %419 = vmatpush1.bf16.msra.mxu0 0
      %420 = vmatprep.subr.bf16.mxu0 0
      %421 = vmatpush1.bf16.msra.mxu0 0
      %422 = vmatprep.subr.bf16.mxu0 0
      %423 = vmatpush1.bf16.msra.mxu0 0
      %424 = vmatprep.subr.bf16.mxu0 0
      %425 = vmatpush1.bf16.msra.mxu0 0
      %426 = vmatprep.mubr.bf16.mxu0 0
      %427 = vmatmul.mubr.bf16.gmra.mrb[0].mxu0 %v386
      %v428 = vpop.f32.mrb[0].mxu0
      %v429 = vadd.f32 0.0, %v428
      %v430 = vpop.f32.mrb[0].mxu0
      %v431 = vadd.f32 0.0, %v430
      %v432 = vpop.f32.mrb[0].mxu0
      %v433 = vadd.f32 0.0, %v432
      %v434 = vpop.f32.mrb[0].mxu0
      %v435 = vadd.f32 0.0, %v434
      %436 = vdwg.mxu0
      %v437 = vadd.f32 %v346, %v429
      %v438 = vadd.f32 %v347, %v431
      %v439 = vadd.f32 %v348, %v433
      %v440 = vadd.f32 %v349, %v435
      %v441 = vld [vmem:[#allocation2] sm:$0x3f]
      %v442 = vld [vmem:[%s2] sm:$0x3]
      %v445 = vunpack.c.l.s4 1966171168
      %v446 = vunpack.c.0.s8 %v445
      %v447 = vlaneseq
      %v448 = vshrl.u32 %v447, 7
      %v449 = vsub.s32 %v446, %v448
      %v450 = vrot.slane %v442, %v449
      %v451 = vcombine.high %v450, %v450
      %v453 = vunpack.c.l.s4 1966171168
      %v454 = vunpack.c.0.s8 %v453
      %v455 = vlaneseq
      %v456 = vshrl.u32 %v455, 7
      %v457 = vsub.s32 %v454, %v456
      %v458 = vrot.slane %v450, %v457
      %v460 = vunpack.c.l.s4 1966171168
      %v461 = vunpack.c.0.s8 %v460
      %v462 = vlaneseq
      %v463 = vshrl.u32 %v462, 7
      %v464 = vsub.s32 %v461, %v463
      %v465 = vrot.slane %v451, %v464
      %v467 = vshrl.u32 %v458, 16
      %v468 = vpack.i.b16 %v467, %v467
      %v470 = vlaneseq
      %v471 = vshrl.u32 %v470, 7
      %v472 = vsub.s32 0, %v471
      %v473 = vrot.slane %v468, %v472
      %v475 = vshrl.u32 %v465, 16
      %v476 = vpack.i.b16 %v475, %v475
      %v478 = vlaneseq
      %v479 = vshrl.u32 %v478, 7
      %v480 = vsub.s32 0, %v479
      %v481 = vrot.slane %v476, %v480
      %v484 = vcombine.low %v473, %v481
      %v486 = vunpack.c.l.s4 1983009808
      %v487 = vunpack.c.0.s8 %v486
      %v488 = vlaneseq
      %v489 = vshrl.u32 %v488, 7
      %v490 = vsub.s32 %v487, %v489
      %v491 = vrot.slane %v484, %v490
      %492 = vrot.lane.b32.xlu0 %v491, 2
      %v493 = vpop.permute.xlu0 %492
      %v494 = vrot.slane %v493, 6
      %vm495 = vcmask 15360
      %v496 = vsel %vm495, %v494, %v493
      %v498 = vmul.bf16 %v441, %v496
      %s499 = scalar_lea.vmem %s1, 16
      %v500 = vld [vmem:[%s499] sm:$0xf]
      %v501 = vld [vmem:[%s499 + $0x4] sm:$0xf]
      %v504 = vunpack.c.l.b16 %v500
      %v505 = vunpack.c.l.b16 %v501
      %v506 = vpack.c.b16 %v505, %v504
      %v508 = vcombine.high %v498, %v498
      %v510 = vunpack.c.l.s4 1983009808
      %v511 = vunpack.c.0.s8 %v510
      %v512 = vlaneseq
      %v513 = vshrl.u32 %v512, 7
      %v514 = vsub.s32 %v511, %v513
      %v515 = vrot.slane %v498, %v514
      %v517 = vunpack.c.l.s4 1983009808
      %v518 = vunpack.c.0.s8 %v517
      %v519 = vlaneseq
      %v520 = vshrl.u32 %v519, 7
      %v521 = vsub.s32 %v518, %v520
      %v522 = vrot.slane %v508, %v521
      %v523 = vcombine.high %v515, %v515
      %524 = vrot.lane.b32.xlu0 %v515, 126
      %v525 = vpop.permute.xlu0 %524
      %526 = vrot.lane.b32.xlu0 %v523, 126
      %v527 = vpop.permute.xlu0 %526
      %528 = vrot.lane.b32.xlu0 %v522, 126
      %v529 = vpop.permute.xlu0 %528
      %vm530 = vcmask 1031168
      %v531 = vsel %vm530, %v525, %v527
      %v532 = vsel %vm530, %v527, %v529
      %v534 = vsel %vm292, %v506, 0
      %v537 = vsel %vm296, %v531, 0
      %v540 = vsel %vm296, %v532, 0
      %542 = vmatprep.subr.bf16.mxu0 %v540
      %543 = vmatpush1.bf16.msra.mxu0 %v537
      %544 = vmatprep.subr.bf16.mxu0 0
      %545 = vmatpush1.bf16.msra.mxu0 0
      %546 = vmatprep.subr.bf16.mxu0 0
      %547 = vmatpush1.bf16.msra.mxu0 0
      %548 = vmatprep.subr.bf16.mxu0 0
      %549 = vmatpush1.bf16.msra.mxu0 0
      %550 = vmatprep.subr.bf16.mxu0 0
      %551 = vmatpush1.bf16.msra.mxu0 0
      %552 = vmatprep.subr.bf16.mxu0 0
      %553 = vmatpush1.bf16.msra.mxu0 0
      %554 = vmatprep.subr.bf16.mxu0 0
      %555 = vmatpush1.bf16.msra.mxu0 0
      %556 = vmatprep.subr.bf16.mxu0 0
      %557 = vmatpush1.bf16.msra.mxu0 0
      %558 = vmatprep.subr.bf16.mxu0 0
      %559 = vmatpush1.bf16.msra.mxu0 0
      %560 = vmatprep.subr.bf16.mxu0 0
      %561 = vmatpush1.bf16.msra.mxu0 0
      %562 = vmatprep.subr.bf16.mxu0 0
      %563 = vmatpush1.bf16.msra.mxu0 0
      %564 = vmatprep.subr.bf16.mxu0 0
      %565 = vmatpush1.bf16.msra.mxu0 0
      %566 = vmatprep.subr.bf16.mxu0 0
      %567 = vmatpush1.bf16.msra.mxu0 0
      %568 = vmatprep.subr.bf16.mxu0 0
      %569 = vmatpush1.bf16.msra.mxu0 0
      %570 = vmatprep.subr.bf16.mxu0 0
      %571 = vmatpush1.bf16.msra.mxu0 0
      %572 = vmatprep.subr.bf16.mxu0 0
      %573 = vmatpush1.bf16.msra.mxu0 0
      %574 = vmatprep.mubr.bf16.mxu0 0
      %575 = vmatmul.mubr.bf16.gmra.mrb[0].mxu0 %v534
      %v576 = vpop.f32.mrb[0].mxu0
      %v577 = vadd.f32 0.0, %v576
      %v578 = vpop.f32.mrb[0].mxu0
      %v579 = vadd.f32 0.0, %v578
      %v580 = vpop.f32.mrb[0].mxu0
      %v581 = vadd.f32 0.0, %v580
      %v582 = vpop.f32.mrb[0].mxu0
      %v583 = vadd.f32 0.0, %v582
      %584 = vdwg.mxu0
      %v585 = vadd.f32 %v437, %v577
      %v586 = vadd.f32 %v438, %v579
      %v587 = vadd.f32 %v439, %v581
      %v588 = vadd.f32 %v440, %v583
      %v589 = vld [vmem:[#allocation2] sm:$0x3f]
      %590 = vrot.lane.b32.xlu0 %v273, 16
      %v591 = vpop.permute.xlu0 %590
      %v592 = vrot.slane %v591, 6
      %vm593 = vcmask 130048
      %v594 = vsel %vm593, %v592, %v591
      %v596 = vmul.bf16 %v589, %v594
      %s597 = scalar_lea.vmem %s1, 24
      %v598 = vld [vmem:[%s597] sm:$0xf]
      %v599 = vld [vmem:[%s597 + $0x4] sm:$0xf]
      %v602 = vunpack.c.l.b16 %v598
      %v603 = vunpack.c.l.b16 %v599
      %v604 = vpack.c.b16 %v603, %v602
      %v606 = vcombine.high %v596, %v596
      %v608 = vunpack.c.l.s4 1983009808
      %v609 = vunpack.c.0.s8 %v608
      %v610 = vlaneseq
      %v611 = vshrl.u32 %v610, 7
      %v612 = vsub.s32 %v609, %v611
      %v613 = vrot.slane %v596, %v612
      %v615 = vunpack.c.l.s4 1983009808
      %v616 = vunpack.c.0.s8 %v615
      %v617 = vlaneseq
      %v618 = vshrl.u32 %v617, 7
      %v619 = vsub.s32 %v616, %v618
      %v620 = vrot.slane %v606, %v619
      %v621 = vcombine.high %v613, %v613
      %622 = vrot.lane.b32.xlu0 %v613, 112
      %v623 = vpop.permute.xlu0 %622
      %624 = vrot.lane.b32.xlu0 %v621, 112
      %v625 = vpop.permute.xlu0 %624
      %626 = vrot.lane.b32.xlu0 %v620, 112
      %v627 = vpop.permute.xlu0 %626
      %vm628 = vcmask 916480
      %v629 = vsel %vm628, %v623, %v625
      %v630 = vsel %vm628, %v625, %v627
      %v632 = vsel %vm292, %v604, 0
      %v635 = vsel %vm296, %v629, 0
      %v638 = vsel %vm296, %v630, 0
      %640 = vmatprep.subr.bf16.mxu0 %v638
      %641 = vmatpush1.bf16.msra.mxu0 %v635
      %642 = vmatprep.subr.bf16.mxu0 0
      %643 = vmatpush1.bf16.msra.mxu0 0
      %644 = vmatprep.subr.bf16.mxu0 0
      %645 = vmatpush1.bf16.msra.mxu0 0
      %646 = vmatprep.subr.bf16.mxu0 0
      %647 = vmatpush1.bf16.msra.mxu0 0
      %648 = vmatprep.subr.bf16.mxu0 0
      %649 = vmatpush1.bf16.msra.mxu0 0
      %650 = vmatprep.subr.bf16.mxu0 0
      %651 = vmatpush1.bf16.msra.mxu0 0
      %652 = vmatprep.subr.bf16.mxu0 0
      %653 = vmatpush1.bf16.msra.mxu0 0
      %654 = vmatprep.subr.bf16.mxu0 0
      %655 = vmatpush1.bf16.msra.mxu0 0
      %656 = vmatprep.subr.bf16.mxu0 0
      %657 = vmatpush1.bf16.msra.mxu0 0
      %658 = vmatprep.subr.bf16.mxu0 0
      %659 = vmatpush1.bf16.msra.mxu0 0
      %660 = vmatprep.subr.bf16.mxu0 0
      %661 = vmatpush1.bf16.msra.mxu0 0
      %662 = vmatprep.subr.bf16.mxu0 0
      %663 = vmatpush1.bf16.msra.mxu0 0
      %664 = vmatprep.subr.bf16.mxu0 0
      %665 = vmatpush1.bf16.msra.mxu0 0
      %666 = vmatprep.subr.bf16.mxu0 0
      %667 = vmatpush1.bf16.msra.mxu0 0
      %668 = vmatprep.subr.bf16.mxu0 0
      %669 = vmatpush1.bf16.msra.mxu0 0
      %670 = vmatprep.subr.bf16.mxu0 0
      %671 = vmatpush1.bf16.msra.mxu0 0
      %672 = vmatprep.mubr.bf16.mxu0 0
      %673 = vmatmul.mubr.bf16.gmra.mrb[0].mxu0 %v632
      %v674 = vpop.f32.mrb[0].mxu0
      %v675 = vadd.f32 0.0, %v674
      %v676 = vpop.f32.mrb[0].mxu0
      %v677 = vadd.f32 0.0, %v676
      %v678 = vpop.f32.mrb[0].mxu0
      %v679 = vadd.f32 0.0, %v678
      %v680 = vpop.f32.mrb[0].mxu0
      %v681 = vadd.f32 0.0, %v680
      %682 = vdwg.mxu0
      %v683 = vadd.f32 %v585, %v675
      %v684 = vadd.f32 %v586, %v677
      %v685 = vadd.f32 %v587, %v679
      %v686 = vadd.f32 %v588, %v681
      %v687 = vld [vmem:[#allocation2] sm:$0x3f]
      %s688 = scalar_lea.vmem %s1, 32
      %v689 = vld [vmem:[%s688] sm:$0xf]
      %v690 = vld [vmem:[%s688 + $0x4] sm:$0xf]
      %v693 = vunpack.c.l.b16 %v689
      %v694 = vunpack.c.l.b16 %v690
      %v695 = vpack.c.b16 %v694, %v693
      %v697 = vcombine.high %v687, %v687
      %v699 = vunpack.c.l.s4 1983009808
      %v700 = vunpack.c.0.s8 %v699
      %v701 = vlaneseq
      %v702 = vshrl.u32 %v701, 7
      %v703 = vsub.s32 %v700, %v702
      %v704 = vrot.slane %v687, %v703
      %v706 = vunpack.c.l.s4 1983009808
      %v707 = vunpack.c.0.s8 %v706
      %v708 = vlaneseq
      %v709 = vshrl.u32 %v708, 7
      %v710 = vsub.s32 %v707, %v709
      %v711 = vrot.slane %v697, %v710
      %v712 = vcombine.high %v704, %v704
      %713 = vrot.lane.b32.xlu0 %v704, 111
      %v714 = vpop.permute.xlu0 %713
      %715 = vrot.lane.b32.xlu0 %v712, 111
      %v716 = vpop.permute.xlu0 %715
      %717 = vrot.lane.b32.xlu0 %v711, 111
      %v718 = vpop.permute.xlu0 %717
      %vm719 = vcmask 908288
      %v720 = vsel %vm719, %v714, %v716
      %v721 = vsel %vm719, %v716, %v718
      %v723 = vsel %vm292, %v695, 0
      %v726 = vsel %vm296, %v720, 0
      %v729 = vsel %vm296, %v721, 0
      %731 = vmatprep.subr.bf16.mxu0 %v729
      %732 = vmatpush1.bf16.msra.mxu0 %v726
      %733 = vmatprep.subr.bf16.mxu0 0
      %734 = vmatpush1.bf16.msra.mxu0 0
      %735 = vmatprep.subr.bf16.mxu0 0
      %736 = vmatpush1.bf16.msra.mxu0 0
      %737 = vmatprep.subr.bf16.mxu0 0
      %738 = vmatpush1.bf16.msra.mxu0 0
      %739 = vmatprep.subr.bf16.mxu0 0
      %740 = vmatpush1.bf16.msra.mxu0 0
      %741 = vmatprep.subr.bf16.mxu0 0
      %742 = vmatpush1.bf16.msra.mxu0 0
      %743 = vmatprep.subr.bf16.mxu0 0
      %744 = vmatpush1.bf16.msra.mxu0 0
      %745 = vmatprep.subr.bf16.mxu0 0
      %746 = vmatpush1.bf16.msra.mxu0 0
      %747 = vmatprep.subr.bf16.mxu0 0
      %748 = vmatpush1.bf16.msra.mxu0 0
      %749 = vmatprep.subr.bf16.mxu0 0
      %750 = vmatpush1.bf16.msra.mxu0 0
      %751 = vmatprep.subr.bf16.mxu0 0
      %752 = vmatpush1.bf16.msra.mxu0 0
      %753 = vmatprep.subr.bf16.mxu0 0
      %754 = vmatpush1.bf16.msra.mxu0 0
      %755 = vmatprep.subr.bf16.mxu0 0
      %756 = vmatpush1.bf16.msra.mxu0 0
      %757 = vmatprep.subr.bf16.mxu0 0
      %758 = vmatpush1.bf16.msra.mxu0 0
      %759 = vmatprep.subr.bf16.mxu0 0
      %760 = vmatpush1.bf16.msra.mxu0 0
      %761 = vmatprep.subr.bf16.mxu0 0
      %762 = vmatpush1.bf16.msra.mxu0 0
      %763 = vmatprep.mubr.bf16.mxu0 0
      %764 = vmatmul.mubr.bf16.gmra.mrb[0].mxu0 %v723
      %v765 = vpop.f32.mrb[0].mxu0
      %v766 = vadd.f32 0.0, %v765
      %v767 = vpop.f32.mrb[0].mxu0
      %v768 = vadd.f32 0.0, %v767
      %v769 = vpop.f32.mrb[0].mxu0
      %v770 = vadd.f32 0.0, %v769
      %v771 = vpop.f32.mrb[0].mxu0
      %v772 = vadd.f32 0.0, %v771
      %773 = vdwg.mxu0
      %v774 = vadd.f32 %v683, %v766
      %v775 = vadd.f32 %v684, %v768
      %v776 = vadd.f32 %v685, %v770
      %v777 = vadd.f32 %v686, %v772
      %v778 = vld [vmem:[#allocation2] sm:$0x3f]
      %779 = vrot.lane.b32.xlu0 %v491, 18
      %v780 = vpop.permute.xlu0 %779
      %v781 = vrot.slane %v780, 6
      %vm782 = vcmask 146432
      %v783 = vsel %vm782, %v781, %v780
      %v785 = vmul.bf16 %v778, %v783
      %s786 = scalar_lea.vmem %s1, 40
      %v787 = vld [vmem:[%s786] sm:$0xf]
      %v788 = vld [vmem:[%s786 + $0x4] sm:$0xf]
      %v791 = vunpack.c.l.b16 %v787
      %v792 = vunpack.c.l.b16 %v788
      %v793 = vpack.c.b16 %v792, %v791
      %v795 = vcombine.high %v785, %v785
      %v797 = vunpack.c.l.s4 1983009808
      %v798 = vunpack.c.0.s8 %v797
      %v799 = vlaneseq
      %v800 = vshrl.u32 %v799, 7
      %v801 = vsub.s32 %v798, %v800
      %v802 = vrot.slane %v785, %v801
      %v804 = vunpack.c.l.s4 1983009808
      %v805 = vunpack.c.0.s8 %v804
      %v806 = vlaneseq
      %v807 = vshrl.u32 %v806, 7
      %v808 = vsub.s32 %v805, %v807
      %v809 = vrot.slane %v795, %v808
      %v810 = vcombine.high %v802, %v802
      %811 = vrot.lane.b32.xlu0 %v802, 110
      %v812 = vpop.permute.xlu0 %811
      %813 = vrot.lane.b32.xlu0 %v810, 110
      %v814 = vpop.permute.xlu0 %813
      %815 = vrot.lane.b32.xlu0 %v809, 110
      %v816 = vpop.permute.xlu0 %815
      %vm817 = vcmask 900096
      %v818 = vsel %vm817, %v812, %v814
      %v819 = vsel %vm817, %v814, %v816
      %v821 = vsel %vm292, %v793, 0
      %v824 = vsel %vm296, %v818, 0
      %v827 = vsel %vm296, %v819, 0
      %829 = vmatprep.subr.bf16.mxu0 %v827
      %830 = vmatpush1.bf16.msra.mxu0 %v824
      %831 = vmatprep.subr.bf16.mxu0 0
      %832 = vmatpush1.bf16.msra.mxu0 0
      %833 = vmatprep.subr.bf16.mxu0 0
      %834 = vmatpush1.bf16.msra.mxu0 0
      %835 = vmatprep.subr.bf16.mxu0 0
      %836 = vmatpush1.bf16.msra.mxu0 0
      %837 = vmatprep.subr.bf16.mxu0 0
      %838 = vmatpush1.bf16.msra.mxu0 0
      %839 = vmatprep.subr.bf16.mxu0 0
      %840 = vmatpush1.bf16.msra.mxu0 0
      %841 = vmatprep.subr.bf16.mxu0 0
      %842 = vmatpush1.bf16.msra.mxu0 0
      %843 = vmatprep.subr.bf16.mxu0 0
      %844 = vmatpush1.bf16.msra.mxu0 0
      %845 = vmatprep.subr.bf16.mxu0 0
      %846 = vmatpush1.bf16.msra.mxu0 0
      %847 = vmatprep.subr.bf16.mxu0 0
      %848 = vmatpush1.bf16.msra.mxu0 0
      %849 = vmatprep.subr.bf16.mxu0 0
      %850 = vmatpush1.bf16.msra.mxu0 0
      %851 = vmatprep.subr.bf16.mxu0 0
      %852 = vmatpush1.bf16.msra.mxu0 0
      %853 = vmatprep.subr.bf16.mxu0 0
      %854 = vmatpush1.bf16.msra.mxu0 0
      %855 = vmatprep.subr.bf16.mxu0 0
      %856 = vmatpush1.bf16.msra.mxu0 0
      %857 = vmatprep.subr.bf16.mxu0 0
      %858 = vmatpush1.bf16.msra.mxu0 0
      %859 = vmatprep.subr.bf16.mxu0 0
      %860 = vmatpush1.bf16.msra.mxu0 0
      %861 = vmatprep.mubr.bf16.mxu0 0
      %862 = vmatmul.mubr.bf16.gmra.mrb[0].mxu0 %v821
      %v863 = vpop.f32.mrb[0].mxu0
      %v864 = vadd.f32 0.0, %v863
      %v865 = vpop.f32.mrb[0].mxu0
      %v866 = vadd.f32 0.0, %v865
      %v867 = vpop.f32.mrb[0].mxu0
      %v868 = vadd.f32 0.0, %v867
      %v869 = vpop.f32.mrb[0].mxu0
      %v870 = vadd.f32 0.0, %v869
      %871 = vdwg.mxu0
      %v872 = vadd.f32 %v774, %v864
      %v873 = vadd.f32 %v775, %v866
      %v874 = vadd.f32 %v776, %v868
      %v875 = vadd.f32 %v777, %v870
      %v876 = vld [vmem:[#allocation2] sm:$0x3f]
      %877 = vrot.lane.b32.xlu0 %v273, 32
      %v878 = vpop.permute.xlu0 %877
      %v879 = vrot.slane %v878, 6
      %vm880 = vcmask 261120
      %v881 = vsel %vm880, %v879, %v878
      %v883 = vmul.bf16 %v876, %v881
      %s884 = scalar_lea.vmem %s1, 48
      %v885 = vld [vmem:[%s884] sm:$0xf]
      %v886 = vld [vmem:[%s884 + $0x4] sm:$0xf]
      %v889 = vunpack.c.l.b16 %v885
      %v890 = vunpack.c.l.b16 %v886
      %v891 = vpack.c.b16 %v890, %v889
      %v893 = vcombine.high %v883, %v883
      %v895 = vunpack.c.l.s4 1983009808
      %v896 = vunpack.c.0.s8 %v895
      %v897 = vlaneseq
      %v898 = vshrl.u32 %v897, 7
      %v899 = vsub.s32 %v896, %v898
      %v900 = vrot.slane %v883, %v899
      %v902 = vunpack.c.l.s4 1983009808
      %v903 = vunpack.c.0.s8 %v902
      %v904 = vlaneseq
      %v905 = vshrl.u32 %v904, 7
      %v906 = vsub.s32 %v903, %v905
      %v907 = vrot.slane %v893, %v906
      %v908 = vcombine.high %v900, %v900
      %909 = vrot.lane.b32.xlu0 %v900, 96
      %v910 = vpop.permute.xlu0 %909
      %911 = vrot.lane.b32.xlu0 %v908, 96
      %v912 = vpop.permute.xlu0 %911
      %913 = vrot.lane.b32.xlu0 %v907, 96
      %v914 = vpop.permute.xlu0 %913
      %vm915 = vcmask 785408
      %v916 = vsel %vm915, %v910, %v912
      %v917 = vsel %vm915, %v912, %v914
      %v919 = vsel %vm292, %v891, 0
      %v922 = vsel %vm296, %v916, 0
      %v925 = vsel %vm296, %v917, 0
      %927 = vmatprep.subr.bf16.mxu0 %v925
      %928 = vmatpush1.bf16.msra.mxu0 %v922
      %929 = vmatprep.subr.bf16.mxu0 0
      %930 = vmatpush1.bf16.msra.mxu0 0
      %931 = vmatprep.subr.bf16.mxu0 0
      %932 = vmatpush1.bf16.msra.mxu0 0
      %933 = vmatprep.subr.bf16.mxu0 0
      %934 = vmatpush1.bf16.msra.mxu0 0
      %935 = vmatprep.subr.bf16.mxu0 0
      %936 = vmatpush1.bf16.msra.mxu0 0
      %937 = vmatprep.subr.bf16.mxu0 0
      %938 = vmatpush1.bf16.msra.mxu0 0
      %939 = vmatprep.subr.bf16.mxu0 0
      %940 = vmatpush1.bf16.msra.mxu0 0
      %941 = vmatprep.subr.bf16.mxu0 0
      %942 = vmatpush1.bf16.msra.mxu0 0
      %943 = vmatprep.subr.bf16.mxu0 0
      %944 = vmatpush1.bf16.msra.mxu0 0
      %945 = vmatprep.subr.bf16.mxu0 0
      %946 = vmatpush1.bf16.msra.mxu0 0
      %947 = vmatprep.subr.bf16.mxu0 0
      %948 = vmatpush1.bf16.msra.mxu0 0
      %949 = vmatprep.subr.bf16.mxu0 0
      %950 = vmatpush1.bf16.msra.mxu0 0
      %951 = vmatprep.subr.bf16.mxu0 0
      %952 = vmatpush1.bf16.msra.mxu0 0
      %953 = vmatprep.subr.bf16.mxu0 0
      %954 = vmatpush1.bf16.msra.mxu0 0
      %955 = vmatprep.subr.bf16.mxu0 0
      %956 = vmatpush1.bf16.msra.mxu0 0
      %957 = vmatprep.subr.bf16.mxu0 0
      %958 = vmatpush1.bf16.msra.mxu0 0
      %959 = vmatprep.mubr.bf16.mxu0 0
      %960 = vmatmul.mubr.bf16.gmra.mrb[0].mxu0 %v919
      %v961 = vpop.f32.mrb[0].mxu0
      %v962 = vadd.f32 0.0, %v961
      %v963 = vpop.f32.mrb[0].mxu0
      %v964 = vadd.f32 0.0, %v963
      %v965 = vpop.f32.mrb[0].mxu0
      %v966 = vadd.f32 0.0, %v965
      %v967 = vpop.f32.mrb[0].mxu0
      %v968 = vadd.f32 0.0, %v967
      %969 = vdwg.mxu0
      %v970 = vadd.f32 %v872, %v962
      %v971 = vadd.f32 %v873, %v964
      %v972 = vadd.f32 %v874, %v966
      %v973 = vadd.f32 %v875, %v968
      %v974 = vld [vmem:[#allocation2] sm:$0x3f]
      %s975 = scalar_lea.vmem %s1, 56
      %v976 = vld [vmem:[%s975] sm:$0xf]
      %v977 = vld [vmem:[%s975 + $0x4] sm:$0xf]
      %v980 = vunpack.c.l.b16 %v976
      %v981 = vunpack.c.l.b16 %v977
      %v982 = vpack.c.b16 %v981, %v980
      %v984 = vcombine.high %v974, %v974
      %v986 = vunpack.c.l.s4 1983009808
      %v987 = vunpack.c.0.s8 %v986
      %v988 = vlaneseq
      %v989 = vshrl.u32 %v988, 7
      %v990 = vsub.s32 %v987, %v989
      %v991 = vrot.slane %v974, %v990
      %v993 = vunpack.c.l.s4 1983009808
      %v994 = vunpack.c.0.s8 %v993
      %v995 = vlaneseq
      %v996 = vshrl.u32 %v995, 7
      %v997 = vsub.s32 %v994, %v996
      %v998 = vrot.slane %v984, %v997
      %v999 = vcombine.high %v991, %v991
      %1000 = vrot.lane.b32.xlu0 %v991, 95
      %v1001 = vpop.permute.xlu0 %1000
      %1002 = vrot.lane.b32.xlu0 %v999, 95
      %v1003 = vpop.permute.xlu0 %1002
      %1004 = vrot.lane.b32.xlu0 %v998, 95
      %v1005 = vpop.permute.xlu0 %1004
      %vm1006 = vcmask 777216
      %v1007 = vsel %vm1006, %v1001, %v1003
      %v1008 = vsel %vm1006, %v1003, %v1005
      %v1010 = vsel %vm292, %v982, 0
      %v1013 = vsel %vm296, %v1007, 0
      %v1016 = vsel %vm296, %v1008, 0
      %1018 = vmatprep.subr.bf16.mxu0 %v1016
      %1019 = vmatpush1.bf16.msra.mxu0 %v1013
      %1020 = vmatprep.subr.bf16.mxu0 0
      %1021 = vmatpush1.bf16.msra.mxu0 0
      %1022 = vmatprep.subr.bf16.mxu0 0
      %1023 = vmatpush1.bf16.msra.mxu0 0
      %1024 = vmatprep.subr.bf16.mxu0 0
      %1025 = vmatpush1.bf16.msra.mxu0 0
      %1026 = vmatprep.subr.bf16.mxu0 0
      %1027 = vmatpush1.bf16.msra.mxu0 0
      %1028 = vmatprep.subr.bf16.mxu0 0
      %1029 = vmatpush1.bf16.msra.mxu0 0
      %1030 = vmatprep.subr.bf16.mxu0 0
      %1031 = vmatpush1.bf16.msra.mxu0 0
      %1032 = vmatprep.subr.bf16.mxu0 0
      %1033 = vmatpush1.bf16.msra.mxu0 0
      %1034 = vmatprep.subr.bf16.mxu0 0
      %1035 = vmatpush1.bf16.msra.mxu0 0
      %1036 = vmatprep.subr.bf16.mxu0 0
      %1037 = vmatpush1.bf16.msra.mxu0 0
      %1038 = vmatprep.subr.bf16.mxu0 0
      %1039 = vmatpush1.bf16.msra.mxu0 0
      %1040 = vmatprep.subr.bf16.mxu0 0
      %1041 = vmatpush1.bf16.msra.mxu0 0
      %1042 = vmatprep.subr.bf16.mxu0 0
      %1043 = vmatpush1.bf16.msra.mxu0 0
      %1044 = vmatprep.subr.bf16.mxu0 0
      %1045 = vmatpush1.bf16.msra.mxu0 0
      %1046 = vmatprep.subr.bf16.mxu0 0
      %1047 = vmatpush1.bf16.msra.mxu0 0
      %1048 = vmatprep.subr.bf16.mxu0 0
      %1049 = vmatpush1.bf16.msra.mxu0 0
      %1050 = vmatprep.mubr.bf16.mxu0 0
      %1051 = vmatmul.mubr.bf16.gmra.mrb[0].mxu0 %v1010
      %v1052 = vpop.f32.mrb[0].mxu0
      %v1053 = vadd.f32 0.0, %v1052
      %v1054 = vpop.f32.mrb[0].mxu0
      %v1055 = vadd.f32 0.0, %v1054
      %v1056 = vpop.f32.mrb[0].mxu0
      %v1057 = vadd.f32 0.0, %v1056
      %v1058 = vpop.f32.mrb[0].mxu0
      %v1059 = vadd.f32 0.0, %v1058
      %1060 = vdwg.mxu0
      %v1061 = vadd.f32 %v970, %v1053
      %v1062 = vadd.f32 %v971, %v1055
      %v1063 = vadd.f32 %v972, %v1057
      %v1064 = vadd.f32 %v973, %v1059
      %v1065 = vld [vmem:[#allocation2] sm:$0x3f]
      %1066 = vrot.lane.b32.xlu0 %v491, 34
      %v1067 = vpop.permute.xlu0 %1066
      %v1068 = vrot.slane %v1067, 6
      %vm1069 = vcmask 277504
      %v1070 = vsel %vm1069, %v1068, %v1067
      %v1072 = vmul.bf16 %v1065, %v1070
      %s1073 = scalar_lea.vmem %s1, 64
      %v1074 = vld [vmem:[%s1073] sm:$0xf]
      %v1075 = vld [vmem:[%s1073 + $0x4] sm:$0xf]
      %v1078 = vunpack.c.l.b16 %v1074
      %v1079 = vunpack.c.l.b16 %v1075
      %v1080 = vpack.c.b16 %v1079, %v1078
      %v1082 = vcombine.high %v1072, %v1072
      %v1084 = vunpack.c.l.s4 1983009808
      %v1085 = vunpack.c.0.s8 %v1084
      %v1086 = vlaneseq
      %v1087 = vshrl.u32 %v1086, 7
      %v1088 = vsub.s32 %v1085, %v1087
      %v1089 = vrot.slane %v1072, %v1088
      %v1091 = vunpack.c.l.s4 1983009808
      %v1092 = vunpack.c.0.s8 %v1091
      %v1093 = vlaneseq
      %v1094 = vshrl.u32 %v1093, 7
      %v1095 = vsub.s32 %v1092, %v1094
      %v1096 = vrot.slane %v1082, %v1095
      %v1097 = vcombine.high %v1089, %v1089
      %1098 = vrot.lane.b32.xlu0 %v1089, 94
      %v1099 = vpop.permute.xlu0 %1098
      %1100 = vrot.lane.b32.xlu0 %v1097, 94
      %v1101 = vpop.permute.xlu0 %1100
      %1102 = vrot.lane.b32.xlu0 %v1096, 94
      %v1103 = vpop.permute.xlu0 %1102
      %vm1104 = vcmask 769024
      %v1105 = vsel %vm1104, %v1099, %v1101
      %v1106 = vsel %vm1104, %v1101, %v1103
      %v1108 = vsel %vm292, %v1080, 0
      %v1111 = vsel %vm296, %v1105, 0
      %v1114 = vsel %vm296, %v1106, 0
      %1116 = vmatprep.subr.bf16.mxu0 %v1114
      %1117 = vmatpush1.bf16.msra.mxu0 %v1111
      %1118 = vmatprep.subr.bf16.mxu0 0
      %1119 = vmatpush1.bf16.msra.mxu0 0
      %1120 = vmatprep.subr.bf16.mxu0 0
      %1121 = vmatpush1.bf16.msra.mxu0 0
      %1122 = vmatprep.subr.bf16.mxu0 0
      %1123 = vmatpush1.bf16.msra.mxu0 0
      %1124 = vmatprep.subr.bf16.mxu0 0
      %1125 = vmatpush1.bf16.msra.mxu0 0
      %1126 = vmatprep.subr.bf16.mxu0 0
      %1127 = vmatpush1.bf16.msra.mxu0 0
      %1128 = vmatprep.subr.bf16.mxu0 0
      %1129 = vmatpush1.bf16.msra.mxu0 0
      %1130 = vmatprep.subr.bf16.mxu0 0
      %1131 = vmatpush1.bf16.msra.mxu0 0
      %1132 = vmatprep.subr.bf16.mxu0 0
      %1133 = vmatpush1.bf16.msra.mxu0 0
      %1134 = vmatprep.subr.bf16.mxu0 0
      %1135 = vmatpush1.bf16.msra.mxu0 0
      %1136 = vmatprep.subr.bf16.mxu0 0
      %1137 = vmatpush1.bf16.msra.mxu0 0
      %1138 = vmatprep.subr.bf16.mxu0 0
      %1139 = vmatpush1.bf16.msra.mxu0 0
      %1140 = vmatprep.subr.bf16.mxu0 0
      %1141 = vmatpush1.bf16.msra.mxu0 0
      %1142 = vmatprep.subr.bf16.mxu0 0
      %1143 = vmatpush1.bf16.msra.mxu0 0
      %1144 = vmatprep.subr.bf16.mxu0 0
      %1145 = vmatpush1.bf16.msra.mxu0 0
      %1146 = vmatprep.subr.bf16.mxu0 0
      %1147 = vmatpush1.bf16.msra.mxu0 0
      %1148 = vmatprep.mubr.bf16.mxu0 0
      %1149 = vmatmul.mubr.bf16.gmra.mrb[0].mxu0 %v1108
      %v1150 = vpop.f32.mrb[0].mxu0
      %v1151 = vadd.f32 0.0, %v1150
      %v1152 = vpop.f32.mrb[0].mxu0
      %v1153 = vadd.f32 0.0, %v1152
      %v1154 = vpop.f32.mrb[0].mxu0
      %v1155 = vadd.f32 0.0, %v1154
      %v1156 = vpop.f32.mrb[0].mxu0
      %v1157 = vadd.f32 0.0, %v1156
      %1158 = vdwg.mxu0
      %v1159 = vadd.f32 %v1061, %v1151
      %v1160 = vadd.f32 %v1062, %v1153
      %v1161 = vadd.f32 %v1063, %v1155
      %v1162 = vadd.f32 %v1064, %v1157
      %v1163 = vmul.f32 %v1159, 0.5
      %v1164 = vmul.f32 %v1160, 0.5
      %v1165 = vtanh.pop %v1163
      %v1166 = vtanh.pop %v1164
      %v1167 = vmul.f32 %v1165, 0.5
      %v1168 = vmul.f32 %v1166, 0.5
      %v1169 = vadd.f32 %v1167, 0.5
      %v1170 = vadd.f32 %v1168, 0.5
      %v1171 = vmul.f32 %v1161, 0.5
      %v1172 = vmul.f32 %v1162, 0.5
      %v1173 = vtanh.pop %v1171
      %v1174 = vtanh.pop %v1172
      %v1175 = vmul.f32 %v1173, 0.5
      %v1176 = vmul.f32 %v1174, 0.5
      %v1177 = vadd.f32 %v1175, 0.5
      %v1178 = vadd.f32 %v1176, 0.5
      %v1179 = vld [vmem:[#allocation3] sm:$0xff]
      %v1181 = vcombine.low %v1179, %v1179
      %v1183 = vmul.f32 %v1169, %v1181
      %v1184 = vmul.f32 %v1170, %v1179
      %v1187 = vrot.slane %v1177, 4
      %v1188 = vrot.slane %v1178, 4
      %v1191 = vmul.f32 %v1169, %v1187
      %v1192 = vmul.f32 %v1170, %v1188
      %v1195 = vrot.slane %v1191, 4
      %v1196 = vrot.slane %v1192, 4
      %v1199 = vadd.f32 %v1183, %v1195
      %v1200 = vadd.f32 %v1184, %v1196
      %v1201 = vtanh.pop %v1199
      %v1202 = vtanh.pop %v1200
      %v1205 = vrot.slane %v1201, 4
      %v1206 = vrot.slane %v1202, 4
      %v1209 = vmul.f32 %v1177, %v1205
      %v1210 = vmul.f32 %v1178, %v1206
      %v1213 = vcombine.high %v1199, %v1200
      %1215 = vst [vmem:[#allocation3] sm:$0xff] %v1213
      %v1216 = vpack.c.bf16 %v1209, %v1209
      %v1217 = vpack.c.bf16 %v1210, %v1210
      %v1220 = vcombine.low %v1216, %v1217
      %v1222 = vunpack.c.l.s4 1983009808
      %v1223 = vunpack.c.0.s8 %v1222
      %v1224 = vlaneseq
      %v1225 = vshrl.u32 %v1224, 7
      %v1226 = vsub.s32 %v1223, %v1225
      %v1227 = vrot.slane %v1220, %v1226
      %1228 = vrot.lane.b32.xlu0 %v1227, 17
      %v1229 = vpop.permute.xlu0 %1228
      %v1230 = vrot.slane %v1229, 6
      %vm1231 = vcmask 138240
      %v1232 = vsel %vm1231, %v1230, %v1229
      %vm1234 = vcmask 1041544
      %vm1235 = vcmask 1043458
      %vm1236 = vmor %vm1235, %vm1234
      %vm1237 = vcmask 136196
      %vm1238 = vmor %vm1237, %vm1236
      %1239 = vst.msk [vmem:[#allocation2] sm:$0x3f] %vm1238, %v1232
      %v1242 = vcombine.low %v1209, %v1210
      %1244 = vst [vmem:[%s206] sm:$0xff] %v1242
      %p1245 = scmp.lt.s32.totalorder %s18, 1
      %s1246 = scalar_select %p1245, %s18, 1
      %p1247 = scmp.lt.s32.totalorder %s19, 3
      %s1248 = scalar_select %p1247, %s19, 3
      %s1249 = smul.addr %s1248, 2
      %s1250 = smul.addr %s1246, 8
      %s1251 = sadd.s32 %s1249, %s1250
      %s1252 = smul.addr %s1251, 4
      %s1253 = scalar_lea.vmem %s3, %s1252
      // Predicated region
      $region37: #{up_forward.5} parent=31 // pred_check
        %p1254 = pneg %p116
      $region38: #{up_forward.5} parent=31 // pred_check_branch
        %1256 = sbr.rel (%p1254) target = $region40
      $region39: #{up_forward.5} parent=31 // pred_region
        _
      $region40: #{up_forward.5} parent=31 // pred_fallthru
        _
    $region32: #{up_forward.5} parent=5 // pred_fallthru
      _
    %p1257 = scmp.le.s32.totalorder 2, %s9
    // Predicated region
    $region41: #{up_forward.5} parent=5 // pred_check
      %p1258 = pneg %p1257
    $region42: #{up_forward.5} parent=5 // pred_check_branch
      %1260 = sbr.rel (%p1258) target = $region44
    $region43: #{up_forward.5} parent=5 // pred_region
      %s1261 = ssub.s32 %s9, 2
      // Predicated region
      $region45: #{up_forward.5} parent=43 // pred_check
        %p1262 = pneg %p122
      $region46: #{up_forward.5} parent=43 // pred_check_branch
        %1264 = sbr.rel (%p1262) target = $region48
      $region47: #{up_forward.5} parent=43 // pred_region
        %p1265 = scmp.lt.s32.totalorder %s20, 1
        %s1266 = scalar_select %p1265, %s20, 1
        %p1267 = scmp.lt.s32.totalorder %s21, 3
        %s1268 = scalar_select %p1267, %s21, 3
        %s1269 = smul.addr %s1268, 2
        %s1270 = smul.addr %s1266, 8
        %s1271 = sadd.s32 %s1269, %s1270
        %s1272 = smul.addr %s1271, 4
        %s1273 = scalar_lea.vmem %s3, %s1272
      $region48: #{up_forward.5} parent=43 // pred_fallthru
        _
    $region44: #{up_forward.5} parent=5 // pred_fallthru
      _
  $region6: #{up_forward.5} parent=0 // loop_footer
    %s13 = sadd.s32 1, %s9
  $region7: #{up_forward.5} parent=0 // loop_footer_branch
    %8 = sbr.rel target = $region3
  $region8: #{up_forward.5} parent=0 // loop_exit
    _

</llo_original>
